<compile_context>
chip_gen: v5e
topology: v5e:2x2
jax: 0.10.0
libtpu: 0.0.40
codegen_flags: <defaults>
</compile_context>

<pallas_src>
import functools

import jax
import jax.numpy as jnp
from jax.experimental import pallas as pl
from jax.experimental.pallas import tpu as pltpu


def lp_decoder_kernel(idx_ref, hrep_ref, htil_ref,
                      w1_ref, b1_ref, w2_ref, b2_ref, w3_ref, b3_ref,
                      o_ref, *, num_nodes):
    cdt = hrep_ref.dtype                     # MXU-operand / product dtype
    te = idx_ref.shape[0]

    # ---- fused endpoint gather: one-hot(edge idx) @ node-table on the MXU ----
    idx = idx_ref[...]                                             # [te, 2] i32
    node_iota = jax.lax.broadcasted_iota(jnp.int32, (te, num_nodes), 1)
    src_oh = jnp.where(idx[:, 0:1] == node_iota, 1.0, 0.0).astype(cdt)
    dst_oh = jnp.where(idx[:, 1:2] == node_iota, 1.0, 0.0).astype(cdt)

    # Tables are pre-expanded to cross-layer order, so feature block (i*L + j)
    # of s holds layer-i features and of d holds layer-j features.
    s = jnp.dot(src_oh, hrep_ref[...],
                preferred_element_type=jnp.float32).astype(cdt)    # [te, L*L*C]
    d = jnp.dot(dst_oh, htil_ref[...],
                preferred_element_type=jnp.float32).astype(cdt)    # [te, L*L*C]

    # cross_layer: all (i, j) products, already aligned -> one VPU multiply.
    x = s * d                                                      # [te, L*L*C]

    # Linear 1 + ReLU (dropout: identity in eval mode); f32 accumulation.
    h1 = jnp.dot(x, w1_ref[...],
                 preferred_element_type=jnp.float32) + b1_ref[...]
    h1 = jnp.maximum(h1, 0.0)

    # Linear 2 + ReLU.
    h2 = jnp.dot(h1.astype(cdt), w2_ref[...],
                 preferred_element_type=jnp.float32) + b2_ref[...]
    h2 = jnp.maximum(h2, 0.0)                                      # [te, H] f32

    # Final Linear (out_channels = 1): contract H on the MXU against a
    # lane-dense [8, H] W3 (only row 0 is real) -> lane-dense [1, te] output.
    logits = jnp.einsum("oh,eh->oe", w3_ref[...], h2,
                        preferred_element_type=jnp.float32)        # [8, te]
    o_ref[...] = jax.nn.sigmoid(logits[0:1, :] + b3_ref[0, 0])     # [1, te]


def lp_decoder_forward(h_list, edge, params, *, te=1024,
                       compute_dtype=jnp.bfloat16):
    """h_list: list of L arrays [N, C]; edge: int [2, E]; returns [E, 1] f32.

    compute_dtype: bf16 recommended on v6e/v7x; use jnp.float32 on v5e (no
    bf16 VPU) or when exact f32 parity with the reference is required.
    """
    assert te % 128 == 0, "te must be a multiple of 128 (lane-dense output)"
    L = len(h_list)
    N, C = h_list[0].shape
    E = edge.shape[1]
    D0 = C * L * L

    w1, b1, w2, b2, w3, b3 = params
    H = w2.shape[1]

    # Node tables, pre-expanded to cross-layer (i-major, j-minor) order so the
    # kernel needs no slicing/concat; resident in VMEM across all grid steps.
    # TODO(synk): for very large N (tables > ~16 MiB, esp. on v7x's 64 MiB
    # VMEM) chunk the table over an extra grid axis or fall back to a
    # wrapper-side bf16 gather.
    h_rep = jnp.concatenate([h_list[i] for i in range(L) for _ in range(L)],
                            axis=1).astype(compute_dtype)          # [N, L*L*C]
    h_til = jnp.concatenate([h_list[j] for _ in range(L) for j in range(L)],
                            axis=1).astype(compute_dtype)          # [N, L*L*C]

    # Edge indices: [E_pad, 2] int32 (8 B/edge of HBM traffic). Padded rows
    # use node 0 (always valid); their outputs are sliced off below.
    n_tiles = pl.cdiv(E, te)
    E_pad = n_tiles * te
    idx = jnp.asarray(edge, jnp.int32).T                            # [E, 2]
    if E_pad != E:
        idx = jnp.pad(idx, ((0, E_pad - E), (0, 0)))

    # Matmul operands in compute dtype; biases / accumulation in f32.
    w1c = w1.astype(compute_dtype)
    w2c = w2.astype(compute_dtype)
    b1f = b1.astype(jnp.float32).reshape(1, D0)
    b2f = b2.astype(jnp.float32).reshape(1, H)
    w3f = jnp.zeros((8, H), jnp.float32).at[0, :].set(
        w3.astype(jnp.float32).reshape(H))                          # lane-dense
    b3f = b3.astype(jnp.float32).reshape(1, 1)

    itemsize_c = jnp.dtype(compute_dtype).itemsize
    cost = pl.CostEstimate(
        flops=2 * E_pad * (2 * N * D0 + D0 * D0 + D0 * H + 8 * H) + E_pad * D0,
        transcendentals=E_pad,
        bytes_accessed=(E_pad * 2 * 4                        # edge indices
                        + 2 * N * D0 * itemsize_c            # node tables
                        + (D0 * D0 + D0 * H) * itemsize_c    # W1, W2
                        + (D0 + H + 8 * H + 1) * 4           # biases, W3
                        + E_pad * 4),                        # output
    )

    kernel = functools.partial(lp_decoder_kernel, num_nodes=N)

    out_row = pl.pallas_call(
        kernel,
        out_shape=jax.ShapeDtypeStruct((1, E_pad), jnp.float32),
        grid_spec=pltpu.PrefetchScalarGridSpec(
            num_scalar_prefetch=0,
            grid=(n_tiles,),
            in_specs=[
                pl.BlockSpec((te, 2), lambda e: (e, 0)),            # edge idx
                pl.BlockSpec((N, D0), lambda e: (0, 0)),            # h_rep
                pl.BlockSpec((N, D0), lambda e: (0, 0)),            # h_til
                pl.BlockSpec((D0, D0), lambda e: (0, 0)),           # W1
                pl.BlockSpec((1, D0), lambda e: (0, 0)),            # b1
                pl.BlockSpec((D0, H), lambda e: (0, 0)),            # W2
                pl.BlockSpec((1, H), lambda e: (0, 0)),             # b2
                pl.BlockSpec((8, H), lambda e: (0, 0)),             # W3 (row 0)
                pl.BlockSpec(memory_space=pltpu.MemorySpace.SMEM),  # b3 scalar
            ],
            out_specs=pl.BlockSpec((1, te), lambda e: (0, e)),      # lane-dense
        ),
        compiler_params=pltpu.CompilerParams(
            dimension_semantics=("parallel",),      # shards across v7x's 2 TCs
            vmem_limit_bytes=32 * 1024 * 1024),
        cost_estimate=cost,
    )(idx, h_rep, h_til, w1c, b1f, w2c, b2f, w3f, b3f)

    return out_row[0, :E].reshape(E, 1)


def reference_forward(h_list, edge, params):
    L = len(h_list)
    src = [h_list[i][edge[0]] for i in range(L)]
    dst = [h_list[i][edge[1]] for i in range(L)]
    parts = []
    for i in range(L):
        for j in range(L):
            parts.append(src[i] * dst[j])
    x = jnp.concatenate(parts, axis=1)
    w1, b1, w2, b2, w3, b3 = params
    x = jax.nn.relu(x @ w1 + b1[0])
    x = jax.nn.relu(x @ w2 + b2[0])
    return jax.nn.sigmoid(x @ w3 + b3[0])


if __name__ == "__main__":
    # Module config: in_channels=16, hidden_channels=32, out_channels=1,
    # encoder_layer=2 (L=2, n_layer=4), num_layers=3, dropout=0.5, de_v='v2'
    # (eval mode => dropout is identity).
    in_channels = 16
    hidden_channels = 32
    out_channels = 1
    encoder_layer = 2
    n_layer = encoder_layer * encoder_layer
    D0 = in_channels * n_layer          # 64

    N = 64        # number of nodes
    E = 2500      # number of edges (not a multiple of te -> exercises padding)

    key = jax.random.PRNGKey(0)
    keys = jax.random.split(key, 10)

    # Deterministic synthetic parameters (Linear weights stored [in, out]).
    w1 = jax.random.normal(keys[0], (D0, D0), jnp.float32) * 0.1
    b1 = jax.random.normal(keys[1], (1, D0), jnp.float32) * 0.1
    w2 = jax.random.normal(keys[2], (D0, hidden_channels), jnp.float32) * 0.1
    b2 = jax.random.normal(keys[3], (1, hidden_channels), jnp.float32) * 0.1
    w3 = jax.random.normal(keys[4], (hidden_channels, out_channels), jnp.float32) * 0.1
    b3 = jax.random.normal(keys[5], (1, out_channels), jnp.float32) * 0.1
    params = (w1, b1, w2, b2, w3, b3)

    # Per-encoder-layer node embeddings h[0], h[1]: each [N, in_channels].
    h_list = [
        jax.random.normal(keys[6], (N, in_channels), jnp.float32),
        jax.random.normal(keys[7], (N, in_channels), jnp.float32),
    ]
    edge = jnp.stack([
        jax.random.randint(keys[8], (E,), 0, N, dtype=jnp.int32),
        jax.random.randint(keys[9], (E,), 0, N, dtype=jnp.int32),
    ], axis=0)  # [2, E]

    ref = reference_forward(h_list, edge, params)

    # f32 path: exact one-hot gather + f32 matmuls -> tight match.
    out_f32 = lp_decoder_forward(h_list, edge, params, te=1024,
                                 compute_dtype=jnp.float32)
    out_f32 = jax.block_until_ready(out_f32)
    assert out_f32.shape == (E, 1)
    assert jnp.allclose(out_f32, ref, atol=2e-5, rtol=1e-4), "f32 mismatch"

    # bf16 path (recommended on v6e/v7x): bf16 products/operands, f32 accum.
    out_bf16 = lp_decoder_forward(h_list, edge, params, te=1024,
                                  compute_dtype=jnp.bfloat16)
    out_bf16 = jax.block_until_ready(out_bf16)
    assert out_bf16.shape == (E, 1)
    assert jnp.allclose(out_bf16, ref, atol=3e-2), "bf16 mismatch vs f32 ref"

    print("KERNEL_OK")
</pallas_src>

<mosaic_0001>
module attributes {stable_mosaic.version = 11 : i64} {
  func.func @lp_decoder_kernel(%arg0: i32, %arg1: memref<1024x2xi32, #tpu.memory_space<vmem>>, %arg2: memref<64x64xf32, #tpu.memory_space<vmem>>, %arg3: memref<64x64xf32, #tpu.memory_space<vmem>>, %arg4: memref<64x64xf32, #tpu.memory_space<vmem>>, %arg5: memref<1x64xf32, #tpu.memory_space<vmem>>, %arg6: memref<64x32xf32, #tpu.memory_space<vmem>>, %arg7: memref<1x32xf32, #tpu.memory_space<vmem>>, %arg8: memref<8x32xf32, #tpu.memory_space<vmem>>, %arg9: memref<1x1xf32, #tpu.memory_space<smem>>, %arg10: memref<1x1024xf32, #tpu.memory_space<vmem>>) attributes {dimension_semantics = [#tpu.dimension_semantics<parallel>], iteration_bounds = array<i64: 3>, scalar_prefetch = 0 : i64, scratch_operands = 0 : i64, tpu.core_type = #tpu.core_type<tc>, window_params = [{transform_indices = @transform_0, window_bounds = array<i64: 1024, 2>}, {pipeline_mode = #tpu.pipeline_mode<synchronous>, transform_indices = @transform_1, window_bounds = array<i64: 64, 64>}, {pipeline_mode = #tpu.pipeline_mode<synchronous>, transform_indices = @transform_2, window_bounds = array<i64: 64, 64>}, {pipeline_mode = #tpu.pipeline_mode<synchronous>, transform_indices = @transform_3, window_bounds = array<i64: 64, 64>}, {pipeline_mode = #tpu.pipeline_mode<synchronous>, transform_indices = @transform_4, window_bounds = array<i64: 1, 64>}, {pipeline_mode = #tpu.pipeline_mode<synchronous>, transform_indices = @transform_5, window_bounds = array<i64: 64, 32>}, {pipeline_mode = #tpu.pipeline_mode<synchronous>, transform_indices = @transform_6, window_bounds = array<i64: 1, 32>}, {pipeline_mode = #tpu.pipeline_mode<synchronous>, transform_indices = @transform_7, window_bounds = array<i64: 8, 32>}, {transform_indices = @transform_8, window_bounds = array<i64: 1, 1>}, {transform_indices = @transform_9, window_bounds = array<i64: 1, 1024>}]} {
    %c0 = arith.constant 0 : index
    %c0_0 = arith.constant 0 : index
    %0 = vector.load %arg1[%c0, %c0_0] : memref<1024x2xi32, #tpu.memory_space<vmem>>, vector<1024x2xi32>
    %1 = tpu.iota {dimensions = array<i32: 1>} : vector<1024x64xi32>
    %2 = vector.extract_strided_slice %0 {offsets = [0, 0], sizes = [1024, 1], strides = [1, 1]} : vector<1024x2xi32> to vector<1024x1xi32>
    %3 = vector.broadcast %2 : vector<1024x1xi32> to vector<1024x64xi32>
    %4 = arith.cmpi eq, %3, %1 : vector<1024x64xi32>
    %cst = arith.constant 1.000000e+00 : f32
    %cst_1 = arith.constant 0.000000e+00 : f32
    %5 = vector.broadcast %cst : f32 to vector<1024x64xf32>
    %6 = vector.broadcast %cst_1 : f32 to vector<1024x64xf32>
    %7 = arith.select %4, %5, %6 : vector<1024x64xi1>, vector<1024x64xf32>
    %8 = vector.extract_strided_slice %0 {offsets = [0, 1], sizes = [1024, 1], strides = [1, 1]} : vector<1024x2xi32> to vector<1024x1xi32>
    %9 = vector.broadcast %8 : vector<1024x1xi32> to vector<1024x64xi32>
    %10 = arith.cmpi eq, %9, %1 : vector<1024x64xi32>
    %cst_2 = arith.constant 1.000000e+00 : f32
    %cst_3 = arith.constant 0.000000e+00 : f32
    %11 = vector.broadcast %cst_2 : f32 to vector<1024x64xf32>
    %12 = vector.broadcast %cst_3 : f32 to vector<1024x64xf32>
    %13 = arith.select %10, %11, %12 : vector<1024x64xi1>, vector<1024x64xf32>
    %c0_4 = arith.constant 0 : index
    %c0_5 = arith.constant 0 : index
    %14 = vector.load %arg2[%c0_4, %c0_5] : memref<64x64xf32, #tpu.memory_space<vmem>>, vector<64x64xf32>
    %cst_6 = arith.constant dense<0.000000e+00> : vector<1024x64xf32>
    %15 = tpu.matmul %7, %14, %cst_6 {dimension_numbers = #tpu.dot_dimension_numbers<[1], [0], [0], [1], [0, 0, 1, 1], [], []>} : vector<1024x64xf32>, vector<64x64xf32>, vector<1024x64xf32> -> vector<1024x64xf32>
    %c0_7 = arith.constant 0 : index
    %c0_8 = arith.constant 0 : index
    %16 = vector.load %arg3[%c0_7, %c0_8] : memref<64x64xf32, #tpu.memory_space<vmem>>, vector<64x64xf32>
    %cst_9 = arith.constant dense<0.000000e+00> : vector<1024x64xf32>
    %17 = tpu.matmul %13, %16, %cst_9 {dimension_numbers = #tpu.dot_dimension_numbers<[1], [0], [0], [1], [0, 0, 1, 1], [], []>} : vector<1024x64xf32>, vector<64x64xf32>, vector<1024x64xf32> -> vector<1024x64xf32>
    %18 = arith.mulf %15, %17 : vector<1024x64xf32>
    %c0_10 = arith.constant 0 : index
    %c0_11 = arith.constant 0 : index
    %19 = vector.load %arg4[%c0_10, %c0_11] : memref<64x64xf32, #tpu.memory_space<vmem>>, vector<64x64xf32>
    %cst_12 = arith.constant dense<0.000000e+00> : vector<1024x64xf32>
    %20 = tpu.matmul %18, %19, %cst_12 {dimension_numbers = #tpu.dot_dimension_numbers<[1], [0], [0], [1], [0, 0, 1, 1], [], []>} : vector<1024x64xf32>, vector<64x64xf32>, vector<1024x64xf32> -> vector<1024x64xf32>
    %c0_13 = arith.constant 0 : index
    %c0_14 = arith.constant 0 : index
    %21 = vector.load %arg5[%c0_13, %c0_14] : memref<1x64xf32, #tpu.memory_space<vmem>>, vector<1x64xf32>
    %22 = vector.broadcast %21 : vector<1x64xf32> to vector<1024x64xf32>
    %23 = arith.addf %20, %22 : vector<1024x64xf32>
    %cst_15 = arith.constant 0.000000e+00 : f32
    %24 = vector.broadcast %cst_15 : f32 to vector<1024x64xf32>
    %25 = arith.maximumf %23, %24 : vector<1024x64xf32>
    %c0_16 = arith.constant 0 : index
    %c0_17 = arith.constant 0 : index
    %26 = vector.load %arg6[%c0_16, %c0_17] : memref<64x32xf32, #tpu.memory_space<vmem>>, vector<64x32xf32>
    %cst_18 = arith.constant dense<0.000000e+00> : vector<1024x32xf32>
    %27 = tpu.matmul %25, %26, %cst_18 {dimension_numbers = #tpu.dot_dimension_numbers<[1], [0], [0], [1], [0, 0, 1, 1], [], []>} : vector<1024x64xf32>, vector<64x32xf32>, vector<1024x32xf32> -> vector<1024x32xf32>
    %c0_19 = arith.constant 0 : index
    %c0_20 = arith.constant 0 : index
    %28 = vector.load %arg7[%c0_19, %c0_20] : memref<1x32xf32, #tpu.memory_space<vmem>>, vector<1x32xf32>
    %29 = vector.broadcast %28 : vector<1x32xf32> to vector<1024x32xf32>
    %30 = arith.addf %27, %29 : vector<1024x32xf32>
    %cst_21 = arith.constant 0.000000e+00 : f32
    %31 = vector.broadcast %cst_21 : f32 to vector<1024x32xf32>
    %32 = arith.maximumf %30, %31 : vector<1024x32xf32>
    %c0_22 = arith.constant 0 : index
    %c0_23 = arith.constant 0 : index
    %33 = vector.load %arg8[%c0_22, %c0_23] : memref<8x32xf32, #tpu.memory_space<vmem>>, vector<8x32xf32>
    "tpu.trace_start"() <{level = 10 : i32, message = "oh,eh->oe"}> : () -> ()
    %cst_24 = arith.constant dense<0.000000e+00> : vector<8x1024xf32>
    %34 = tpu.matmul %33, %32, %cst_24 {dimension_numbers = #tpu.dot_dimension_numbers<[1], [1], [0], [0], [0, 0, 1, 0], [], []>} : vector<8x32xf32>, vector<1024x32xf32>, vector<8x1024xf32> -> vector<8x1024xf32>
    "tpu.trace_stop"() : () -> ()
    %35 = vector.extract_strided_slice %34 {offsets = [0, 0], sizes = [1, 1024], strides = [1, 1]} : vector<8x1024xf32> to vector<1x1024xf32>
    %c0_25 = arith.constant 0 : index
    %c0_26 = arith.constant 0 : index
    %36 = memref.load %arg9[%c0_25, %c0_26] : memref<1x1xf32, #tpu.memory_space<smem>>
    %37 = vector.broadcast %36 : f32 to vector<1x1024xf32>
    %38 = arith.addf %35, %37 : vector<1x1024xf32>
    %39 = arith.negf %38 : vector<1x1024xf32>
    %40 = math.exp %39 : vector<1x1024xf32>
    %cst_27 = arith.constant 1.000000e+00 : f32
    %41 = vector.broadcast %cst_27 : f32 to vector<1x1024xf32>
    %42 = arith.addf %41, %40 : vector<1x1024xf32>
    %43 = arith.divf %41, %42 : vector<1x1024xf32>
    %c0_28 = arith.constant 0 : index
    %c0_29 = arith.constant 0 : index
    %44 = vector.load %arg10[%c0_28, %c0_29] : memref<1x1024xf32, #tpu.memory_space<vmem>>, vector<1x1024xf32>
    tpu.vector_store %arg10[%c0_28, %c0_29], %43 {strides = array<i32>} : memref<1x1024xf32, #tpu.memory_space<vmem>>, vector<1x1024xf32>,
    return
  }
  func.func @transform_0(%arg0: i32) -> (i32, i32) {
    %c0_i32 = arith.constant 0 : i32
    %c0_i32_0 = arith.constant 0 : i32
    return %arg0, %c0_i32 : i32, i32
  }
  func.func @transform_1(%arg0: i32) -> (i32, i32) {
    %c0_i32 = arith.constant 0 : i32
    %c0_i32_0 = arith.constant 0 : i32
    %c0_i32_1 = arith.constant 0 : i32
    return %c0_i32, %c0_i32_0 : i32, i32
  }
  func.func @transform_2(%arg0: i32) -> (i32, i32) {
    %c0_i32 = arith.constant 0 : i32
    %c0_i32_0 = arith.constant 0 : i32
    %c0_i32_1 = arith.constant 0 : i32
    return %c0_i32, %c0_i32_0 : i32, i32
  }
  func.func @transform_3(%arg0: i32) -> (i32, i32) {
    %c0_i32 = arith.constant 0 : i32
    %c0_i32_0 = arith.constant 0 : i32
    %c0_i32_1 = arith.constant 0 : i32
    return %c0_i32, %c0_i32_0 : i32, i32
  }
  func.func @transform_4(%arg0: i32) -> (i32, i32) {
    %c0_i32 = arith.constant 0 : i32
    %c0_i32_0 = arith.constant 0 : i32
    %c0_i32_1 = arith.constant 0 : i32
    return %c0_i32, %c0_i32_0 : i32, i32
  }
  func.func @transform_5(%arg0: i32) -> (i32, i32) {
    %c0_i32 = arith.constant 0 : i32
    %c0_i32_0 = arith.constant 0 : i32
    %c0_i32_1 = arith.constant 0 : i32
    return %c0_i32, %c0_i32_0 : i32, i32
  }
  func.func @transform_6(%arg0: i32) -> (i32, i32) {
    %c0_i32 = arith.constant 0 : i32
    %c0_i32_0 = arith.constant 0 : i32
    %c0_i32_1 = arith.constant 0 : i32
    return %c0_i32, %c0_i32_0 : i32, i32
  }
  func.func @transform_7(%arg0: i32) -> (i32, i32) {
    %c0_i32 = arith.constant 0 : i32
    %c0_i32_0 = arith.constant 0 : i32
    %c0_i32_1 = arith.constant 0 : i32
    return %c0_i32, %c0_i32_0 : i32, i32
  }
  func.func @transform_8(%arg0: i32) -> (i32, i32) {
    %c0_i32 = arith.constant 0 : i32
    %c0_i32_0 = arith.constant 0 : i32
    %c0_i32_1 = arith.constant 0 : i32
    return %c0_i32, %c0_i32_0 : i32, i32
  }
  func.func @transform_9(%arg0: i32) -> (i32, i32) {
    %c0_i32 = arith.constant 0 : i32
    %c0_i32_0 = arith.constant 0 : i32
    return %c0_i32, %arg0 : i32, i32
  }
}

</mosaic_0001>

<llo_original>
// kernel: tpu_custom_call.1
$region0: #{tpu_custom_call.1}
  #allocation0 [shape = 'u32[]', space=smem, size = 0x4, offset = 0x4, fixed_abs, tag = 'smem constant byte address 0x4 - core index']
  #allocation1 [shape = 'u32[72,128]{1,0:T(1,128)}', space=vmem, size = 0x9000, scoped, tag = 'internal scratch']
  #allocation2 [shape = 'f32[1,1]{1,0:T(1,128)S(6)}', space=smem, size = 0x200, scoped, tag = 'scoped memory for tpu_custom_call.1']
  %s0 = inlined_call_operand.vmem [shape: s32[3072,2], index: 0, kind: input, shape index: {}]
  %s1 = inlined_call_operand.vmem [shape: f32[64,64], index: 1, kind: input, shape index: {}]
  %s2 = inlined_call_operand.vmem [shape: f32[64,64], index: 2, kind: input, shape index: {}]
  %s3 = inlined_call_operand.vmem [shape: f32[64,64], index: 3, kind: input, shape index: {}]
  %s4 = inlined_call_operand.vmem [shape: f32[1,64], index: 4, kind: input, shape index: {}]
  %s5 = inlined_call_operand.vmem [shape: f32[64,32], index: 5, kind: input, shape index: {}]
  %s6 = inlined_call_operand.vmem [shape: f32[1,32], index: 6, kind: input, shape index: {}]
  %s7 = inlined_call_operand.vmem [shape: f32[8,32], index: 7, kind: input, shape index: {}]
  %s8 = inlined_call_operand.<no memory space> [shape: f32[1,1], index: 8, kind: input, shape index: {}]
  %s9 = inlined_call_operand.hbm [shape: f32[1,3072], index: 9, kind: output, shape index: {}]
  %s10 = sld [smem:[#allocation0]]
  $region69: #{tpu_custom_call.1} parent=0
    _
  %s12 = ssub.s32 1, %s10
  %s13 = scalar_select 0, %s12, %s10
  %14 = sst [smem:[#allocation2]] %s8
  $region1: #{tpu_custom_call.1} parent=0
    #allocation3 [shape = 'u8[8192]{0}', space=vmem, size = 0x2000, scoped, tag = 'output window, operand 0']
    #allocation4 [shape = 's32[2]{0}', space=sflag, size = 0x8, scoped, tag = 'scoped memory for tpu_custom_call.1']
    %15 = vsyncpa [#allocation4], 0
    %s16 = scalar_lea.sflag [#allocation4], 1
    %17 = vsyncpa %s16, 0
    loop: start=0, step=1, limit=5
    $region2: #{tpu_custom_call.1} parent=1 // loop_pre_header
      _
    $region3: #{tpu_custom_call.1} parent=1 // loop_header
      %s19 = sphi 0, %s23
      %p20 = scmp.ge.s32.totalorder %s19, 5
      %s29 = sphi 0, %s31
      %s32 = sphi 0, %s29
      %s33 = sphi 0, %s32
      %s49 = sphi 0, %s33
      %s53 = sphi 0, %s53
      %s55 = sphi 0, %s53
      %s56 = sphi 0, %s55
      %s70 = sphi 0, %s56
      %s74 = sphi 0, %s74
      %s76 = sphi 0, %s74
      %s77 = sphi 0, %s76
      %s91 = sphi 0, %s77
      %s95 = sphi 0, %s95
      %s97 = sphi 0, %s95
      %s98 = sphi 0, %s97
      %s112 = sphi 0, %s98
      %s116 = sphi 0, %s116
      %s118 = sphi 0, %s116
      %s119 = sphi 0, %s118
      %s133 = sphi 0, %s119
      %s137 = sphi 0, %s137
      %s139 = sphi 0, %s137
      %s140 = sphi 0, %s139
      %s154 = sphi 0, %s140
      %s158 = sphi 0, %s158
      %s160 = sphi 0, %s158
      %s161 = sphi 0, %s160
      %s175 = sphi 0, %s161
      %s179 = sphi 0, %s179
      %s181 = sphi 0, %s179
      %s182 = sphi 0, %s181
      %s196 = sphi 0, %s182
      %s200 = sphi 0, %s200
      %s202 = sphi 0, %s200
      %s203 = sphi 0, %s202
      %s217 = sphi 0, %s203
      %s223 = sphi 0, %s225
      %s226 = sphi 0, %s223
      %s227 = sphi 0, %s226
      %s243 = sphi 0, %s227
    $region4: #{tpu_custom_call.1} parent=1 // loop_header_branch
      %22 = sbr.rel (%p20) target = $region8
    $region5: #{tpu_custom_call.1} parent=1 // loop_body
      %s24 = ssub.s32 %s19, 1
      %s25 = ssub.s32 %s19, 2
      %s26 = sadd.s32 %s19, 1
      %s27 = ssub.s32 %s19, %s26
      %p28 = scmp.eq.s32.totalorder %s27, 0
      %s30 = sadd.s32 %s29, 1
      %s31 = scalar_select %p28, %s29, %s30
      %p34 = pneg %p28
      %p35 = scmp.eq.s32.totalorder %s19, 2
      %p36 = por %p34, %p35
      %p37 = scmp.ne.s32.totalorder %s29, %s32
      %p38 = scmp.eq.s32.totalorder %s19, 0
      %p39 = por %p37, %p38
      %p40 = scmp.ne.s32.totalorder %s29, %s32
      %p41 = scmp.eq.s32.totalorder %s24, 2
      %p42 = por %p40, %p41
      %p43 = scmp.ne.s32.totalorder %s32, %s33
      %p44 = scmp.eq.s32.totalorder %s24, 0
      %p45 = por %p43, %p44
      %p46 = scmp.ne.s32.totalorder %s32, %s33
      %p47 = scmp.eq.s32.totalorder %s25, 2
      %p48 = por %p46, %p47
      %p50 = scmp.ne.s32.totalorder %s33, %s49
      %p51 = scmp.eq.s32.totalorder %s25, 0
      %p52 = por %p50, %p51
      %s54 = sadd.s32 %s53, 1
      %p57 = scmp.eq.s32.totalorder %s19, 2
      %p58 = scmp.ne.s32.totalorder %s53, %s55
      %p59 = scmp.eq.s32.totalorder %s19, 0
      %p60 = por %p58, %p59
      %p61 = scmp.ne.s32.totalorder %s53, %s55
      %p62 = scmp.eq.s32.totalorder %s24, 2
      %p63 = por %p61, %p62
      %p64 = scmp.ne.s32.totalorder %s55, %s56
      %p65 = scmp.eq.s32.totalorder %s24, 0
      %p66 = por %p64, %p65
      %p67 = scmp.ne.s32.totalorder %s55, %s56
      %p68 = scmp.eq.s32.totalorder %s25, 2
      %p69 = por %p67, %p68
      %p71 = scmp.ne.s32.totalorder %s56, %s70
      %p72 = scmp.eq.s32.totalorder %s25, 0
      %p73 = por %p71, %p72
      %s75 = sadd.s32 %s74, 1
      %p78 = scmp.eq.s32.totalorder %s19, 2
      %p79 = scmp.ne.s32.totalorder %s74, %s76
      %p80 = scmp.eq.s32.totalorder %s19, 0
      %p81 = por %p79, %p80
      %p82 = scmp.ne.s32.totalorder %s74, %s76
      %p83 = scmp.eq.s32.totalorder %s24, 2
      %p84 = por %p82, %p83
      %p85 = scmp.ne.s32.totalorder %s76, %s77
      %p86 = scmp.eq.s32.totalorder %s24, 0
      %p87 = por %p85, %p86
      %p88 = scmp.ne.s32.totalorder %s76, %s77
      %p89 = scmp.eq.s32.totalorder %s25, 2
      %p90 = por %p88, %p89
      %p92 = scmp.ne.s32.totalorder %s77, %s91
      %p93 = scmp.eq.s32.totalorder %s25, 0
      %p94 = por %p92, %p93
      %s96 = sadd.s32 %s95, 1
      %p99 = scmp.eq.s32.totalorder %s19, 2
      %p100 = scmp.ne.s32.totalorder %s95, %s97
      %p101 = scmp.eq.s32.totalorder %s19, 0
      %p102 = por %p100, %p101
      %p103 = scmp.ne.s32.totalorder %s95, %s97
      %p104 = scmp.eq.s32.totalorder %s24, 2
      %p105 = por %p103, %p104
      %p106 = scmp.ne.s32.totalorder %s97, %s98
      %p107 = scmp.eq.s32.totalorder %s24, 0
      %p108 = por %p106, %p107
      %p109 = scmp.ne.s32.totalorder %s97, %s98
      %p110 = scmp.eq.s32.totalorder %s25, 2
      %p111 = por %p109, %p110
      %p113 = scmp.ne.s32.totalorder %s98, %s112
      %p114 = scmp.eq.s32.totalorder %s25, 0
      %p115 = por %p113, %p114
      %s117 = sadd.s32 %s116, 1
      %p120 = scmp.eq.s32.totalorder %s19, 2
      %p121 = scmp.ne.s32.totalorder %s116, %s118
      %p122 = scmp.eq.s32.totalorder %s19, 0
      %p123 = por %p121, %p122
      %p124 = scmp.ne.s32.totalorder %s116, %s118
      %p125 = scmp.eq.s32.totalorder %s24, 2
      %p126 = por %p124, %p125
      %p127 = scmp.ne.s32.totalorder %s118, %s119
      %p128 = scmp.eq.s32.totalorder %s24, 0
      %p129 = por %p127, %p128
      %p130 = scmp.ne.s32.totalorder %s118, %s119
      %p131 = scmp.eq.s32.totalorder %s25, 2
      %p132 = por %p130, %p131
      %p134 = scmp.ne.s32.totalorder %s119, %s133
      %p135 = scmp.eq.s32.totalorder %s25, 0
      %p136 = por %p134, %p135
      %s138 = sadd.s32 %s137, 1
      %p141 = scmp.eq.s32.totalorder %s19, 2
      %p142 = scmp.ne.s32.totalorder %s137, %s139
      %p143 = scmp.eq.s32.totalorder %s19, 0
      %p144 = por %p142, %p143
      %p145 = scmp.ne.s32.totalorder %s137, %s139
      %p146 = scmp.eq.s32.totalorder %s24, 2
      %p147 = por %p145, %p146
      %p148 = scmp.ne.s32.totalorder %s139, %s140
      %p149 = scmp.eq.s32.totalorder %s24, 0
      %p150 = por %p148, %p149
      %p151 = scmp.ne.s32.totalorder %s139, %s140
      %p152 = scmp.eq.s32.totalorder %s25, 2
      %p153 = por %p151, %p152
      %p155 = scmp.ne.s32.totalorder %s140, %s154
      %p156 = scmp.eq.s32.totalorder %s25, 0
      %p157 = por %p155, %p156
      %s159 = sadd.s32 %s158, 1
      %p162 = scmp.eq.s32.totalorder %s19, 2
      %p163 = scmp.ne.s32.totalorder %s158, %s160
      %p164 = scmp.eq.s32.totalorder %s19, 0
      %p165 = por %p163, %p164
      %p166 = scmp.ne.s32.totalorder %s158, %s160
      %p167 = scmp.eq.s32.totalorder %s24, 2
      %p168 = por %p166, %p167
      %p169 = scmp.ne.s32.totalorder %s160, %s161
      %p170 = scmp.eq.s32.totalorder %s24, 0
      %p171 = por %p169, %p170
      %p172 = scmp.ne.s32.totalorder %s160, %s161
      %p173 = scmp.eq.s32.totalorder %s25, 2
      %p174 = por %p172, %p173
      %p176 = scmp.ne.s32.totalorder %s161, %s175
      %p177 = scmp.eq.s32.totalorder %s25, 0
      %p178 = por %p176, %p177
      %s180 = sadd.s32 %s179, 1
      %p183 = scmp.eq.s32.totalorder %s19, 2
      %p184 = scmp.ne.s32.totalorder %s179, %s181
      %p185 = scmp.eq.s32.totalorder %s19, 0
      %p186 = por %p184, %p185
      %p187 = scmp.ne.s32.totalorder %s179, %s181
      %p188 = scmp.eq.s32.totalorder %s24, 2
      %p189 = por %p187, %p188
      %p190 = scmp.ne.s32.totalorder %s181, %s182
      %p191 = scmp.eq.s32.totalorder %s24, 0
      %p192 = por %p190, %p191
      %p193 = scmp.ne.s32.totalorder %s181, %s182
      %p194 = scmp.eq.s32.totalorder %s25, 2
      %p195 = por %p193, %p194
      %p197 = scmp.ne.s32.totalorder %s182, %s196
      %p198 = scmp.eq.s32.totalorder %s25, 0
      %p199 = por %p197, %p198
      %s201 = sadd.s32 %s200, 1
      %p204 = scmp.eq.s32.totalorder %s19, 2
      %p205 = scmp.ne.s32.totalorder %s200, %s202
      %p206 = scmp.eq.s32.totalorder %s19, 0
      %p207 = por %p205, %p206
      %p208 = scmp.ne.s32.totalorder %s200, %s202
      %p209 = scmp.eq.s32.totalorder %s24, 2
      %p210 = por %p208, %p209
      %p211 = scmp.ne.s32.totalorder %s202, %s203
      %p212 = scmp.eq.s32.totalorder %s24, 0
      %p213 = por %p211, %p212
      %p214 = scmp.ne.s32.totalorder %s202, %s203
      %p215 = scmp.eq.s32.totalorder %s25, 2
      %p216 = por %p214, %p215
      %p218 = scmp.ne.s32.totalorder %s203, %s217
      %p219 = scmp.eq.s32.totalorder %s25, 0
      %p220 = por %p218, %p219
      %s221 = ssub.s32 %s19, %s26
      %p222 = scmp.eq.s32.totalorder %s221, 0
      %s224 = sadd.s32 %s223, 1
      %s225 = scalar_select %p222, %s223, %s224
      %p228 = pneg %p222
      %p229 = scmp.eq.s32.totalorder %s19, 2
      %p230 = por %p228, %p229
      %p231 = scmp.ne.s32.totalorder %s223, %s226
      %p232 = scmp.eq.s32.totalorder %s19, 0
      %p233 = por %p231, %p232
      %p234 = scmp.ne.s32.totalorder %s223, %s226
      %p235 = scmp.eq.s32.totalorder %s24, 2
      %p236 = por %p234, %p235
      %p237 = scmp.ne.s32.totalorder %s226, %s227
      %p238 = scmp.eq.s32.totalorder %s24, 0
      %p239 = por %p237, %p238
      %p240 = scmp.ne.s32.totalorder %s226, %s227
      %p241 = scmp.eq.s32.totalorder %s25, 2
      %p242 = por %p240, %p241
      %p244 = scmp.ne.s32.totalorder %s227, %s243
      %p245 = scmp.eq.s32.totalorder %s25, 0
      %p246 = por %p244, %p245
      %p247 = scmp.le.s32.totalorder 1, %s19
      %p248 = scmp.lt.s32.totalorder %s19, 4
      %p249 = pnand %p247, %p248
      %p250 = pneg %p249
      // Predicated region
      $region9: #{tpu_custom_call.1} parent=5 // pred_check
        _
      $region10: #{tpu_custom_call.1} parent=5 // pred_check_branch
        %252 = sbr.rel (%p249) target = $region12
      $region11: #{tpu_custom_call.1} parent=5 // pred_region
        %s253 = ssub.s32 %s19, 1
        // Predicated region
        $region13: #{tpu_custom_call.1} parent=11 // pred_check
          %p254 = pneg %p66
        $region14: #{tpu_custom_call.1} parent=11 // pred_check_branch
          %256 = sbr.rel (%p254) target = $region16
        $region15: #{tpu_custom_call.1} parent=11 // pred_region
          _
        $region16: #{tpu_custom_call.1} parent=11 // pred_fallthru
          _
        // Predicated region
        $region17: #{tpu_custom_call.1} parent=11 // pred_check
          %p257 = pneg %p87
        $region18: #{tpu_custom_call.1} parent=11 // pred_check_branch
          %259 = sbr.rel (%p257) target = $region20
        $region19: #{tpu_custom_call.1} parent=11 // pred_region
          _
        $region20: #{tpu_custom_call.1} parent=11 // pred_fallthru
          _
        // Predicated region
        $region21: #{tpu_custom_call.1} parent=11 // pred_check
          %p260 = pneg %p108
        $region22: #{tpu_custom_call.1} parent=11 // pred_check_branch
          %262 = sbr.rel (%p260) target = $region24
        $region23: #{tpu_custom_call.1} parent=11 // pred_region
          _
        $region24: #{tpu_custom_call.1} parent=11 // pred_fallthru
          _
        // Predicated region
        $region25: #{tpu_custom_call.1} parent=11 // pred_check
          %p263 = pneg %p129
        $region26: #{tpu_custom_call.1} parent=11 // pred_check_branch
          %265 = sbr.rel (%p263) target = $region28
        $region27: #{tpu_custom_call.1} parent=11 // pred_region
          _
        $region28: #{tpu_custom_call.1} parent=11 // pred_fallthru
          _
        // Predicated region
        $region29: #{tpu_custom_call.1} parent=11 // pred_check
          %p266 = pneg %p150
        $region30: #{tpu_custom_call.1} parent=11 // pred_check_branch
          %268 = sbr.rel (%p266) target = $region32
        $region31: #{tpu_custom_call.1} parent=11 // pred_region
          _
        $region32: #{tpu_custom_call.1} parent=11 // pred_fallthru
          _
        // Predicated region
        $region33: #{tpu_custom_call.1} parent=11 // pred_check
          %p269 = pneg %p171
        $region34: #{tpu_custom_call.1} parent=11 // pred_check_branch
          %271 = sbr.rel (%p269) target = $region36
        $region35: #{tpu_custom_call.1} parent=11 // pred_region
          _
        $region36: #{tpu_custom_call.1} parent=11 // pred_fallthru
          _
        // Predicated region
        $region37: #{tpu_custom_call.1} parent=11 // pred_check
          %p272 = pneg %p192
        $region38: #{tpu_custom_call.1} parent=11 // pred_check_branch
          %274 = sbr.rel (%p272) target = $region40
        $region39: #{tpu_custom_call.1} parent=11 // pred_region
          _
        $region40: #{tpu_custom_call.1} parent=11 // pred_fallthru
          _
        // Predicated region
        $region41: #{tpu_custom_call.1} parent=11 // pred_check
          %p275 = pneg %p213
        $region42: #{tpu_custom_call.1} parent=11 // pred_check_branch
          %277 = sbr.rel (%p275) target = $region44
        $region43: #{tpu_custom_call.1} parent=11 // pred_region
          _
        $region44: #{tpu_custom_call.1} parent=11 // pred_fallthru
          _
      $region12: #{tpu_custom_call.1} parent=5 // pred_fallthru
        _
      %p278 = scmp.lt.s32.totalorder %s19, 3
      // Predicated region
      $region45: #{tpu_custom_call.1} parent=5 // pred_check
        %p279 = pneg %p278
      $region46: #{tpu_custom_call.1} parent=5 // pred_check_branch
        %281 = sbr.rel (%p279) target = $region48
      $region47: #{tpu_custom_call.1} parent=5 // pred_region
        // Predicated region
        $region49: #{tpu_custom_call.1} parent=47 // pred_check
          %p282 = pneg %p39
        $region50: #{tpu_custom_call.1} parent=47 // pred_check_branch
          %284 = sbr.rel (%p282) target = $region52
        $region51: #{tpu_custom_call.1} parent=47 // pred_region
          %s285 = smul.u32 128, %s19
          %p286 = scmp.lt.s32.totalorder %s285, 383
          %s287 = scalar_select %p286, %s285, 383
          %s288 = smul.addr %s287, 8
          %s289 = scalar_lea.vmem %s0, %s288
          %s290 = smul.u32 128, %s19
        $region52: #{tpu_custom_call.1} parent=47 // pred_fallthru
          _
      $region48: #{tpu_custom_call.1} parent=5 // pred_fallthru
        _
      %p291 = scmp.le.s32.totalorder 1, %s19
      %p292 = scmp.lt.s32.totalorder %s19, 4
      %p293 = pnand %p291, %p292
      %p294 = pneg %p293
      // Predicated region
      $region53: #{tpu_custom_call.1} parent=5 // pred_check
        _
      $region54: #{tpu_custom_call.1} parent=5 // pred_check_branch
        %296 = sbr.rel (%p293) target = $region56
      $region55: #{tpu_custom_call.1} parent=5 // pred_region
        %s297 = ssub.s32 %s19, 1
        %s298 = smul.u32 128, %s24
        %p299 = scmp.lt.s32.totalorder %s298, 383
        %s300 = scalar_select %p299, %s298, 383
        %s301 = smul.addr %s300, 8
        %s302 = scalar_lea.vmem %s0, %s301
        %p303 = pneg %p45
        %p304 = pneg %p42
        %p305 = pneg %p66
        %p306 = pneg %p63
        %p307 = pneg %p87
        %p308 = pneg %p84
        %p309 = pneg %p108
        %p310 = pneg %p105
        %p311 = pneg %p129
        %p312 = pneg %p126
        %p313 = pneg %p150
        %p314 = pneg %p147
        %p315 = pneg %p171
        %p316 = pneg %p168
        %p317 = pneg %p192
        %p318 = pneg %p189
        %p319 = pneg %p213
        %p320 = pneg %p210
        %p321 = pneg %p239
        %p322 = pneg %p236
        %s323 = sand.u32 %s226, 1
        %s324 = scalar_lea.sflag [#allocation4], %s323
        %s325 = sand.u32 %s226, 1
        %s326 = smul.addr %s325, 8
        %s327 = scalar_lea.vmem [#allocation3], %s326
        %s328 = smul.u32 128, %s24
        %p329 = scmp.lt.s32.totalorder %s328, 383
        %s330 = scalar_select %p329, %s328, 383
        %s331 = smul.addr %s330, 8
        %s332 = scalar_lea.vmem %s0, %s331
        %s333 = smul.u32 128, %s24
        %s334 = smul.u32 8, %s24
        %v335 = vld [vmem:[%s332] sm:$0xff]
        %v336 = vld [vmem:[%s332 + $0x8] sm:$0xff]
        %v337 = vld [vmem:[%s332 + $0x10] sm:$0xff]
        %v338 = vld [vmem:[%s332 + $0x18] sm:$0xff]
        %v339 = vld [vmem:[%s332 + $0x20] sm:$0xff]
        %v340 = vld [vmem:[%s332 + $0x28] sm:$0xff]
        %v341 = vld [vmem:[%s332 + $0x30] sm:$0xff]
        %v342 = vld [vmem:[%s332 + $0x38] sm:$0xff]
        %v343 = vld [vmem:[%s332 + $0x40] sm:$0xff]
        %v344 = vld [vmem:[%s332 + $0x48] sm:$0xff]
        %v345 = vld [vmem:[%s332 + $0x50] sm:$0xff]
        %v346 = vld [vmem:[%s332 + $0x58] sm:$0xff]
        %v347 = vld [vmem:[%s332 + $0x60] sm:$0xff]
        %v348 = vld [vmem:[%s332 + $0x68] sm:$0xff]
        %v349 = vld [vmem:[%s332 + $0x70] sm:$0xff]
        %v350 = vld [vmem:[%s332 + $0x78] sm:$0xff]
        %v351 = vld [vmem:[%s332 + $0x80] sm:$0xff]
        %v352 = vld [vmem:[%s332 + $0x88] sm:$0xff]
        %v353 = vld [vmem:[%s332 + $0x90] sm:$0xff]
        %v354 = vld [vmem:[%s332 + $0x98] sm:$0xff]
        %v355 = vld [vmem:[%s332 + $0xa0] sm:$0xff]
        %v356 = vld [vmem:[%s332 + $0xa8] sm:$0xff]
        %v357 = vld [vmem:[%s332 + $0xb0] sm:$0xff]
        %v358 = vld [vmem:[%s332 + $0xb8] sm:$0xff]
        %v359 = vld [vmem:[%s332 + $0xc0] sm:$0xff]
        %v360 = vld [vmem:[%s332 + $0xc8] sm:$0xff]
        %v361 = vld [vmem:[%s332 + $0xd0] sm:$0xff]
        %v362 = vld [vmem:[%s332 + $0xd8] sm:$0xff]
        %v363 = vld [vmem:[%s332 + $0xe0] sm:$0xff]
        %v364 = vld [vmem:[%s332 + $0xe8] sm:$0xff]
        %v365 = vld [vmem:[%s332 + $0xf0] sm:$0xff]
        %v366 = vld [vmem:[%s332 + $0xf8] sm:$0xff]
        %v367 = vld [vmem:[%s332 + $0x100] sm:$0xff]
        %v368 = vld [vmem:[%s332 + $0x108] sm:$0xff]
        %v369 = vld [vmem:[%s332 + $0x110] sm:$0xff]
        %v370 = vld [vmem:[%s332 + $0x118] sm:$0xff]
        %v371 = vld [vmem:[%s332 + $0x120] sm:$0xff]
        %v372 = vld [vmem:[%s332 + $0x128] sm:$0xff]
        %v373 = vld [vmem:[%s332 + $0x130] sm:$0xff]
        %v374 = vld [vmem:[%s332 + $0x138] sm:$0xff]
        %v375 = vld [vmem:[%s332 + $0x140] sm:$0xff]
        %v376 = vld [vmem:[%s332 + $0x148] sm:$0xff]
        %v377 = vld [vmem:[%s332 + $0x150] sm:$0xff]
        %v378 = vld [vmem:[%s332 + $0x158] sm:$0xff]
        %v379 = vld [vmem:[%s332 + $0x160] sm:$0xff]
        %v380 = vld [vmem:[%s332 + $0x168] sm:$0xff]
        %v381 = vld [vmem:[%s332 + $0x170] sm:$0xff]
        %v382 = vld [vmem:[%s332 + $0x178] sm:$0xff]
        %v383 = vld [vmem:[%s332 + $0x180] sm:$0xff]
        %v384 = vld [vmem:[%s332 + $0x188] sm:$0xff]
        %v385 = vld [vmem:[%s332 + $0x190] sm:$0xff]
        %v386 = vld [vmem:[%s332 + $0x198] sm:$0xff]
        %v387 = vld [vmem:[%s332 + $0x1a0] sm:$0xff]
        %v388 = vld [vmem:[%s332 + $0x1a8] sm:$0xff]
        %v389 = vld [vmem:[%s332 + $0x1b0] sm:$0xff]
        %v390 = vld [vmem:[%s332 + $0x1b8] sm:$0xff]
        %v391 = vld [vmem:[%s332 + $0x1c0] sm:$0xff]
        %v392 = vld [vmem:[%s332 + $0x1c8] sm:$0xff]
        %v393 = vld [vmem:[%s332 + $0x1d0] sm:$0xff]
        %v394 = vld [vmem:[%s332 + $0x1d8] sm:$0xff]
        %v395 = vld [vmem:[%s332 + $0x1e0] sm:$0xff]
        %v396 = vld [vmem:[%s332 + $0x1e8] sm:$0xff]
        %v397 = vld [vmem:[%s332 + $0x1f0] sm:$0xff]
        %v398 = vld [vmem:[%s332 + $0x1f8] sm:$0xff]
        %v399 = vld [vmem:[%s332 + $0x200] sm:$0xff]
        %v400 = vld [vmem:[%s332 + $0x208] sm:$0xff]
        %v401 = vld [vmem:[%s332 + $0x210] sm:$0xff]
        %v402 = vld [vmem:[%s332 + $0x218] sm:$0xff]
        %v403 = vld [vmem:[%s332 + $0x220] sm:$0xff]
        %v404 = vld [vmem:[%s332 + $0x228] sm:$0xff]
        %v405 = vld [vmem:[%s332 + $0x230] sm:$0xff]
        %v406 = vld [vmem:[%s332 + $0x238] sm:$0xff]
        %v407 = vld [vmem:[%s332 + $0x240] sm:$0xff]
        %v408 = vld [vmem:[%s332 + $0x248] sm:$0xff]
        %v409 = vld [vmem:[%s332 + $0x250] sm:$0xff]
        %v410 = vld [vmem:[%s332 + $0x258] sm:$0xff]
        %v411 = vld [vmem:[%s332 + $0x260] sm:$0xff]
        %v412 = vld [vmem:[%s332 + $0x268] sm:$0xff]
        %v413 = vld [vmem:[%s332 + $0x270] sm:$0xff]
        %v414 = vld [vmem:[%s332 + $0x278] sm:$0xff]
        %v415 = vld [vmem:[%s332 + $0x280] sm:$0xff]
        %v416 = vld [vmem:[%s332 + $0x288] sm:$0xff]
        %v417 = vld [vmem:[%s332 + $0x290] sm:$0xff]
        %v418 = vld [vmem:[%s332 + $0x298] sm:$0xff]
        %v419 = vld [vmem:[%s332 + $0x2a0] sm:$0xff]
        %v420 = vld [vmem:[%s332 + $0x2a8] sm:$0xff]
        %v421 = vld [vmem:[%s332 + $0x2b0] sm:$0xff]
        %v422 = vld [vmem:[%s332 + $0x2b8] sm:$0xff]
        %v423 = vld [vmem:[%s332 + $0x2c0] sm:$0xff]
        %v424 = vld [vmem:[%s332 + $0x2c8] sm:$0xff]
        %v425 = vld [vmem:[%s332 + $0x2d0] sm:$0xff]
        %v426 = vld [vmem:[%s332 + $0x2d8] sm:$0xff]
        %v427 = vld [vmem:[%s332 + $0x2e0] sm:$0xff]
        %v428 = vld [vmem:[%s332 + $0x2e8] sm:$0xff]
        %v429 = vld [vmem:[%s332 + $0x2f0] sm:$0xff]
        %v430 = vld [vmem:[%s332 + $0x2f8] sm:$0xff]
        %v431 = vld [vmem:[%s332 + $0x300] sm:$0xff]
        %v432 = vld [vmem:[%s332 + $0x308] sm:$0xff]
        %v433 = vld [vmem:[%s332 + $0x310] sm:$0xff]
        %v434 = vld [vmem:[%s332 + $0x318] sm:$0xff]
        %v435 = vld [vmem:[%s332 + $0x320] sm:$0xff]
        %v436 = vld [vmem:[%s332 + $0x328] sm:$0xff]
        %v437 = vld [vmem:[%s332 + $0x330] sm:$0xff]
        %v438 = vld [vmem:[%s332 + $0x338] sm:$0xff]
        %v439 = vld [vmem:[%s332 + $0x340] sm:$0xff]
        %v440 = vld [vmem:[%s332 + $0x348] sm:$0xff]
        %v441 = vld [vmem:[%s332 + $0x350] sm:$0xff]
        %v442 = vld [vmem:[%s332 + $0x358] sm:$0xff]
        %v443 = vld [vmem:[%s332 + $0x360] sm:$0xff]
        %v444 = vld [vmem:[%s332 + $0x368] sm:$0xff]
        %v445 = vld [vmem:[%s332 + $0x370] sm:$0xff]
        %v446 = vld [vmem:[%s332 + $0x378] sm:$0xff]
        %v447 = vld [vmem:[%s332 + $0x380] sm:$0xff]
        %v448 = vld [vmem:[%s332 + $0x388] sm:$0xff]
        %v449 = vld [vmem:[%s332 + $0x390] sm:$0xff]
        %v450 = vld [vmem:[%s332 + $0x398] sm:$0xff]
        %v451 = vld [vmem:[%s332 + $0x3a0] sm:$0xff]
        %v452 = vld [vmem:[%s332 + $0x3a8] sm:$0xff]
        %v453 = vld [vmem:[%s332 + $0x3b0] sm:$0xff]
        %v454 = vld [vmem:[%s332 + $0x3b8] sm:$0xff]
        %v455 = vld [vmem:[%s332 + $0x3c0] sm:$0xff]
        %v456 = vld [vmem:[%s332 + $0x3c8] sm:$0xff]
        %v457 = vld [vmem:[%s332 + $0x3d0] sm:$0xff]
        %v458 = vld [vmem:[%s332 + $0x3d8] sm:$0xff]
        %v459 = vld [vmem:[%s332 + $0x3e0] sm:$0xff]
        %v460 = vld [vmem:[%s332 + $0x3e8] sm:$0xff]
        %v461 = vld [vmem:[%s332 + $0x3f0] sm:$0xff]
        %v462 = vld [vmem:[%s332 + $0x3f8] sm:$0xff]
        %v463 = vlaneseq
        %v464 = vand.u32 %v463, 127
        %465 = vset.pattern.permute.xlu0 0
        %466 = vperm.xlu0 %465, %v335
        %v467 = vpop.permute.xlu0 %466
        %468 = vset.pattern.permute.xlu0 0
        %469 = vperm.xlu0 %468, %v336
        %v470 = vpop.permute.xlu0 %469
        %471 = vset.pattern.permute.xlu0 0
        %472 = vperm.xlu0 %471, %v337
        %v473 = vpop.permute.xlu0 %472
        %474 = vset.pattern.permute.xlu0 0
        %475 = vperm.xlu0 %474, %v338
        %v476 = vpop.permute.xlu0 %475
        %477 = vset.pattern.permute.xlu0 0
        %478 = vperm.xlu0 %477, %v339
        %v479 = vpop.permute.xlu0 %478
        %480 = vset.pattern.permute.xlu0 0
        %481 = vperm.xlu0 %480, %v340
        %v482 = vpop.permute.xlu0 %481
        %483 = vset.pattern.permute.xlu0 0
        %484 = vperm.xlu0 %483, %v341
        %v485 = vpop.permute.xlu0 %484
        %486 = vset.pattern.permute.xlu0 0
        %487 = vperm.xlu0 %486, %v342
        %v488 = vpop.permute.xlu0 %487
        %489 = vset.pattern.permute.xlu0 0
        %490 = vperm.xlu0 %489, %v343
        %v491 = vpop.permute.xlu0 %490
        %492 = vset.pattern.permute.xlu0 0
        %493 = vperm.xlu0 %492, %v344
        %v494 = vpop.permute.xlu0 %493
        %495 = vset.pattern.permute.xlu0 0
        %496 = vperm.xlu0 %495, %v345
        %v497 = vpop.permute.xlu0 %496
        %498 = vset.pattern.permute.xlu0 0
        %499 = vperm.xlu0 %498, %v346
        %v500 = vpop.permute.xlu0 %499
        %501 = vset.pattern.permute.xlu0 0
        %502 = vperm.xlu0 %501, %v347
        %v503 = vpop.permute.xlu0 %502
        %504 = vset.pattern.permute.xlu0 0
        %505 = vperm.xlu0 %504, %v348
        %v506 = vpop.permute.xlu0 %505
        %507 = vset.pattern.permute.xlu0 0
        %508 = vperm.xlu0 %507, %v349
        %v509 = vpop.permute.xlu0 %508
        %510 = vset.pattern.permute.xlu0 0
        %511 = vperm.xlu0 %510, %v350
        %v512 = vpop.permute.xlu0 %511
        %513 = vset.pattern.permute.xlu0 0
        %514 = vperm.xlu0 %513, %v351
        %v515 = vpop.permute.xlu0 %514
        %516 = vset.pattern.permute.xlu0 0
        %517 = vperm.xlu0 %516, %v352
        %v518 = vpop.permute.xlu0 %517
        %519 = vset.pattern.permute.xlu0 0
        %520 = vperm.xlu0 %519, %v353
        %v521 = vpop.permute.xlu0 %520
        %522 = vset.pattern.permute.xlu0 0
        %523 = vperm.xlu0 %522, %v354
        %v524 = vpop.permute.xlu0 %523
        %525 = vset.pattern.permute.xlu0 0
        %526 = vperm.xlu0 %525, %v355
        %v527 = vpop.permute.xlu0 %526
        %528 = vset.pattern.permute.xlu0 0
        %529 = vperm.xlu0 %528, %v356
        %v530 = vpop.permute.xlu0 %529
        %531 = vset.pattern.permute.xlu0 0
        %532 = vperm.xlu0 %531, %v357
        %v533 = vpop.permute.xlu0 %532
        %534 = vset.pattern.permute.xlu0 0
        %535 = vperm.xlu0 %534, %v358
        %v536 = vpop.permute.xlu0 %535
        %537 = vset.pattern.permute.xlu0 0
        %538 = vperm.xlu0 %537, %v359
        %v539 = vpop.permute.xlu0 %538
        %540 = vset.pattern.permute.xlu0 0
        %541 = vperm.xlu0 %540, %v360
        %v542 = vpop.permute.xlu0 %541
        %543 = vset.pattern.permute.xlu0 0
        %544 = vperm.xlu0 %543, %v361
        %v545 = vpop.permute.xlu0 %544
        %546 = vset.pattern.permute.xlu0 0
        %547 = vperm.xlu0 %546, %v362
        %v548 = vpop.permute.xlu0 %547
        %549 = vset.pattern.permute.xlu0 0
        %550 = vperm.xlu0 %549, %v363
        %v551 = vpop.permute.xlu0 %550
        %552 = vset.pattern.permute.xlu0 0
        %553 = vperm.xlu0 %552, %v364
        %v554 = vpop.permute.xlu0 %553
        %555 = vset.pattern.permute.xlu0 0
        %556 = vperm.xlu0 %555, %v365
        %v557 = vpop.permute.xlu0 %556
        %558 = vset.pattern.permute.xlu0 0
        %559 = vperm.xlu0 %558, %v366
        %v560 = vpop.permute.xlu0 %559
        %561 = vset.pattern.permute.xlu0 0
        %562 = vperm.xlu0 %561, %v367
        %v563 = vpop.permute.xlu0 %562
        %564 = vset.pattern.permute.xlu0 0
        %565 = vperm.xlu0 %564, %v368
        %v566 = vpop.permute.xlu0 %565
        %567 = vset.pattern.permute.xlu0 0
        %568 = vperm.xlu0 %567, %v369
        %v569 = vpop.permute.xlu0 %568
        %570 = vset.pattern.permute.xlu0 0
        %571 = vperm.xlu0 %570, %v370
        %v572 = vpop.permute.xlu0 %571
        %573 = vset.pattern.permute.xlu0 0
        %574 = vperm.xlu0 %573, %v371
        %v575 = vpop.permute.xlu0 %574
        %576 = vset.pattern.permute.xlu0 0
        %577 = vperm.xlu0 %576, %v372
        %v578 = vpop.permute.xlu0 %577
        %579 = vset.pattern.permute.xlu0 0
        %580 = vperm.xlu0 %579, %v373
        %v581 = vpop.permute.xlu0 %580
        %582 = vset.pattern.permute.xlu0 0
        %583 = vperm.xlu0 %582, %v374
        %v584 = vpop.permute.xlu0 %583
        %585 = vset.pattern.permute.xlu0 0
        %586 = vperm.xlu0 %585, %v375
        %v587 = vpop.permute.xlu0 %586
        %588 = vset.pattern.permute.xlu0 0
        %589 = vperm.xlu0 %588, %v376
        %v590 = vpop.permute.xlu0 %589
        %591 = vset.pattern.permute.xlu0 0
        %592 = vperm.xlu0 %591, %v377
        %v593 = vpop.permute.xlu0 %592
        %594 = vset.pattern.permute.xlu0 0
        %595 = vperm.xlu0 %594, %v378
        %v596 = vpop.permute.xlu0 %595
        %597 = vset.pattern.permute.xlu0 0
        %598 = vperm.xlu0 %597, %v379
        %v599 = vpop.permute.xlu0 %598
        %600 = vset.pattern.permute.xlu0 0
        %601 = vperm.xlu0 %600, %v380
        %v602 = vpop.permute.xlu0 %601
        %603 = vset.pattern.permute.xlu0 0
        %604 = vperm.xlu0 %603, %v381
        %v605 = vpop.permute.xlu0 %604
        %606 = vset.pattern.permute.xlu0 0
        %607 = vperm.xlu0 %606, %v382
        %v608 = vpop.permute.xlu0 %607
        %609 = vset.pattern.permute.xlu0 0
        %610 = vperm.xlu0 %609, %v383
        %v611 = vpop.permute.xlu0 %610
        %612 = vset.pattern.permute.xlu0 0
        %613 = vperm.xlu0 %612, %v384
        %v614 = vpop.permute.xlu0 %613
        %615 = vset.pattern.permute.xlu0 0
        %616 = vperm.xlu0 %615, %v385
        %v617 = vpop.permute.xlu0 %616
        %618 = vset.pattern.permute.xlu0 0
        %619 = vperm.xlu0 %618, %v386
        %v620 = vpop.permute.xlu0 %619
        %621 = vset.pattern.permute.xlu0 0
        %622 = vperm.xlu0 %621, %v387
        %v623 = vpop.permute.xlu0 %622
        %624 = vset.pattern.permute.xlu0 0
        %625 = vperm.xlu0 %624, %v388
        %v626 = vpop.permute.xlu0 %625
        %627 = vset.pattern.permute.xlu0 0
        %628 = vperm.xlu0 %627, %v389
        %v629 = vpop.permute.xlu0 %628
        %630 = vset.pattern.permute.xlu0 0
        %631 = vperm.xlu0 %630, %v390
        %v632 = vpop.permute.xlu0 %631
        %633 = vset.pattern.permute.xlu0 0
        %634 = vperm.xlu0 %633, %v391
        %v635 = vpop.permute.xlu0 %634
        %636 = vset.pattern.permute.xlu0 0
        %637 = vperm.xlu0 %636, %v392
        %v638 = vpop.permute.xlu0 %637
        %639 = vset.pattern.permute.xlu0 0
        %640 = vperm.xlu0 %639, %v393
        %v641 = vpop.permute.xlu0 %640
        %642 = vset.pattern.permute.xlu0 0
        %643 = vperm.xlu0 %642, %v394
        %v644 = vpop.permute.xlu0 %643
        %645 = vset.pattern.permute.xlu0 0
        %646 = vperm.xlu0 %645, %v395
        %v647 = vpop.permute.xlu0 %646
        %648 = vset.pattern.permute.xlu0 0
        %649 = vperm.xlu0 %648, %v396
        %v650 = vpop.permute.xlu0 %649
        %651 = vset.pattern.permute.xlu0 0
        %652 = vperm.xlu0 %651, %v397
        %v653 = vpop.permute.xlu0 %652
        %654 = vset.pattern.permute.xlu0 0
        %655 = vperm.xlu0 %654, %v398
        %v656 = vpop.permute.xlu0 %655
        %657 = vset.pattern.permute.xlu0 0
        %658 = vperm.xlu0 %657, %v399
        %v659 = vpop.permute.xlu0 %658
        %660 = vset.pattern.permute.xlu0 0
        %661 = vperm.xlu0 %660, %v400
        %v662 = vpop.permute.xlu0 %661
        %663 = vset.pattern.permute.xlu0 0
        %664 = vperm.xlu0 %663, %v401
        %v665 = vpop.permute.xlu0 %664
        %666 = vset.pattern.permute.xlu0 0
        %667 = vperm.xlu0 %666, %v402
        %v668 = vpop.permute.xlu0 %667
        %669 = vset.pattern.permute.xlu0 0
        %670 = vperm.xlu0 %669, %v403
        %v671 = vpop.permute.xlu0 %670
        %672 = vset.pattern.permute.xlu0 0
        %673 = vperm.xlu0 %672, %v404
        %v674 = vpop.permute.xlu0 %673
        %675 = vset.pattern.permute.xlu0 0
        %676 = vperm.xlu0 %675, %v405
        %v677 = vpop.permute.xlu0 %676
        %678 = vset.pattern.permute.xlu0 0
        %679 = vperm.xlu0 %678, %v406
        %v680 = vpop.permute.xlu0 %679
        %681 = vset.pattern.permute.xlu0 0
        %682 = vperm.xlu0 %681, %v407
        %v683 = vpop.permute.xlu0 %682
        %684 = vset.pattern.permute.xlu0 0
        %685 = vperm.xlu0 %684, %v408
        %v686 = vpop.permute.xlu0 %685
        %687 = vset.pattern.permute.xlu0 0
        %688 = vperm.xlu0 %687, %v409
        %v689 = vpop.permute.xlu0 %688
        %690 = vset.pattern.permute.xlu0 0
        %691 = vperm.xlu0 %690, %v410
        %v692 = vpop.permute.xlu0 %691
        %693 = vset.pattern.permute.xlu0 0
        %694 = vperm.xlu0 %693, %v411
        %v695 = vpop.permute.xlu0 %694
        %696 = vset.pattern.permute.xlu0 0
        %697 = vperm.xlu0 %696, %v412
        %v698 = vpop.permute.xlu0 %697
        %699 = vset.pattern.permute.xlu0 0
        %700 = vperm.xlu0 %699, %v413
        %v701 = vpop.permute.xlu0 %700
        %702 = vset.pattern.permute.xlu0 0
        %703 = vperm.xlu0 %702, %v414
        %v704 = vpop.permute.xlu0 %703
        %705 = vset.pattern.permute.xlu0 0
        %706 = vperm.xlu0 %705, %v415
        %v707 = vpop.permute.xlu0 %706
        %708 = vset.pattern.permute.xlu0 0
        %709 = vperm.xlu0 %708, %v416
        %v710 = vpop.permute.xlu0 %709
        %711 = vset.pattern.permute.xlu0 0
        %712 = vperm.xlu0 %711, %v417
        %v713 = vpop.permute.xlu0 %712
        %714 = vset.pattern.permute.xlu0 0
        %715 = vperm.xlu0 %714, %v418
        %v716 = vpop.permute.xlu0 %715
        %717 = vset.pattern.permute.xlu0 0
        %718 = vperm.xlu0 %717, %v419
        %v719 = vpop.permute.xlu0 %718
        %720 = vset.pattern.permute.xlu0 0
        %721 = vperm.xlu0 %720, %v420
        %v722 = vpop.permute.xlu0 %721
        %723 = vset.pattern.permute.xlu0 0
        %724 = vperm.xlu0 %723, %v421
        %v725 = vpop.permute.xlu0 %724
        %726 = vset.pattern.permute.xlu0 0
        %727 = vperm.xlu0 %726, %v422
        %v728 = vpop.permute.xlu0 %727
        %729 = vset.pattern.permute.xlu0 0
        %730 = vperm.xlu0 %729, %v423
        %v731 = vpop.permute.xlu0 %730
        %732 = vset.pattern.permute.xlu0 0
        %733 = vperm.xlu0 %732, %v424
        %v734 = vpop.permute.xlu0 %733
        %735 = vset.pattern.permute.xlu0 0
        %736 = vperm.xlu0 %735, %v425
        %v737 = vpop.permute.xlu0 %736
        %738 = vset.pattern.permute.xlu0 0
        %739 = vperm.xlu0 %738, %v426
        %v740 = vpop.permute.xlu0 %739
        %741 = vset.pattern.permute.xlu0 0
        %742 = vperm.xlu0 %741, %v427
        %v743 = vpop.permute.xlu0 %742
        %744 = vset.pattern.permute.xlu0 0
        %745 = vperm.xlu0 %744, %v428
        %v746 = vpop.permute.xlu0 %745
        %747 = vset.pattern.permute.xlu0 0
        %748 = vperm.xlu0 %747, %v429
        %v749 = vpop.permute.xlu0 %748
        %750 = vset.pattern.permute.xlu0 0
        %751 = vperm.xlu0 %750, %v430
        %v752 = vpop.permute.xlu0 %751
        %753 = vset.pattern.permute.xlu0 0
        %754 = vperm.xlu0 %753, %v431
        %v755 = vpop.permute.xlu0 %754
        %756 = vset.pattern.permute.xlu0 0
        %757 = vperm.xlu0 %756, %v432
        %v758 = vpop.permute.xlu0 %757
        %759 = vset.pattern.permute.xlu0 0
        %760 = vperm.xlu0 %759, %v433
        %v761 = vpop.permute.xlu0 %760
        %762 = vset.pattern.permute.xlu0 0
        %763 = vperm.xlu0 %762, %v434
        %v764 = vpop.permute.xlu0 %763
        %765 = vset.pattern.permute.xlu0 0
        %766 = vperm.xlu0 %765, %v435
        %v767 = vpop.permute.xlu0 %766
        %768 = vset.pattern.permute.xlu0 0
        %769 = vperm.xlu0 %768, %v436
        %v770 = vpop.permute.xlu0 %769
        %771 = vset.pattern.permute.xlu0 0
        %772 = vperm.xlu0 %771, %v437
        %v773 = vpop.permute.xlu0 %772
        %774 = vset.pattern.permute.xlu0 0
        %775 = vperm.xlu0 %774, %v438
        %v776 = vpop.permute.xlu0 %775
        %777 = vset.pattern.permute.xlu0 0
        %778 = vperm.xlu0 %777, %v439
        %v779 = vpop.permute.xlu0 %778
        %780 = vset.pattern.permute.xlu0 0
        %781 = vperm.xlu0 %780, %v440
        %v782 = vpop.permute.xlu0 %781
        %783 = vset.pattern.permute.xlu0 0
        %784 = vperm.xlu0 %783, %v441
        %v785 = vpop.permute.xlu0 %784
        %786 = vset.pattern.permute.xlu0 0
        %787 = vperm.xlu0 %786, %v442
        %v788 = vpop.permute.xlu0 %787
        %789 = vset.pattern.permute.xlu0 0
        %790 = vperm.xlu0 %789, %v443
        %v791 = vpop.permute.xlu0 %790
        %792 = vset.pattern.permute.xlu0 0
        %793 = vperm.xlu0 %792, %v444
        %v794 = vpop.permute.xlu0 %793
        %795 = vset.pattern.permute.xlu0 0
        %796 = vperm.xlu0 %795, %v445
        %v797 = vpop.permute.xlu0 %796
        %798 = vset.pattern.permute.xlu0 0
        %799 = vperm.xlu0 %798, %v446
        %v800 = vpop.permute.xlu0 %799
        %801 = vset.pattern.permute.xlu0 0
        %802 = vperm.xlu0 %801, %v447
        %v803 = vpop.permute.xlu0 %802
        %804 = vset.pattern.permute.xlu0 0
        %805 = vperm.xlu0 %804, %v448
        %v806 = vpop.permute.xlu0 %805
        %807 = vset.pattern.permute.xlu0 0
        %808 = vperm.xlu0 %807, %v449
        %v809 = vpop.permute.xlu0 %808
        %810 = vset.pattern.permute.xlu0 0
        %811 = vperm.xlu0 %810, %v450
        %v812 = vpop.permute.xlu0 %811
        %813 = vset.pattern.permute.xlu0 0
        %814 = vperm.xlu0 %813, %v451
        %v815 = vpop.permute.xlu0 %814
        %816 = vset.pattern.permute.xlu0 0
        %817 = vperm.xlu0 %816, %v452
        %v818 = vpop.permute.xlu0 %817
        %819 = vset.pattern.permute.xlu0 0
        %820 = vperm.xlu0 %819, %v453
        %v821 = vpop.permute.xlu0 %820
        %822 = vset.pattern.permute.xlu0 0
        %823 = vperm.xlu0 %822, %v454
        %v824 = vpop.permute.xlu0 %823
        %825 = vset.pattern.permute.xlu0 0
        %826 = vperm.xlu0 %825, %v455
        %v827 = vpop.permute.xlu0 %826
        %828 = vset.pattern.permute.xlu0 0
        %829 = vperm.xlu0 %828, %v456
        %v830 = vpop.permute.xlu0 %829
        %831 = vset.pattern.permute.xlu0 0
        %832 = vperm.xlu0 %831, %v457
        %v833 = vpop.permute.xlu0 %832
        %834 = vset.pattern.permute.xlu0 0
        %835 = vperm.xlu0 %834, %v458
        %v836 = vpop.permute.xlu0 %835
        %837 = vset.pattern.permute.xlu0 0
        %838 = vperm.xlu0 %837, %v459
        %v839 = vpop.permute.xlu0 %838
        %840 = vset.pattern.permute.xlu0 0
        %841 = vperm.xlu0 %840, %v460
        %v842 = vpop.permute.xlu0 %841
        %843 = vset.pattern.permute.xlu0 0
        %844 = vperm.xlu0 %843, %v461
        %v845 = vpop.permute.xlu0 %844
        %846 = vset.pattern.permute.xlu0 0
        %847 = vperm.xlu0 %846, %v462
        %v848 = vpop.permute.xlu0 %847
        %vm849 = vcmp.eq.s32.totalorder %v467, %v464
        %vm850 = vcmp.eq.s32.totalorder %v470, %v464
        %vm851 = vcmp.eq.s32.totalorder %v473, %v464
        %vm852 = vcmp.eq.s32.totalorder %v476, %v464
        %vm853 = vcmp.eq.s32.totalorder %v479, %v464
        %vm854 = vcmp.eq.s32.totalorder %v482, %v464
        %vm855 = vcmp.eq.s32.totalorder %v485, %v464
        %vm856 = vcmp.eq.s32.totalorder %v488, %v464
        %vm857 = vcmp.eq.s32.totalorder %v491, %v464
        %vm858 = vcmp.eq.s32.totalorder %v494, %v464
        %vm859 = vcmp.eq.s32.totalorder %v497, %v464
        %vm860 = vcmp.eq.s32.totalorder %v500, %v464
        %vm861 = vcmp.eq.s32.totalorder %v503, %v464
        %vm862 = vcmp.eq.s32.totalorder %v506, %v464
        %vm863 = vcmp.eq.s32.totalorder %v509, %v464
        %vm864 = vcmp.eq.s32.totalorder %v512, %v464
        %vm865 = vcmp.eq.s32.totalorder %v515, %v464
        %vm866 = vcmp.eq.s32.totalorder %v518, %v464
        %vm867 = vcmp.eq.s32.totalorder %v521, %v464
        %vm868 = vcmp.eq.s32.totalorder %v524, %v464
        %vm869 = vcmp.eq.s32.totalorder %v527, %v464
        %vm870 = vcmp.eq.s32.totalorder %v530, %v464
        %vm871 = vcmp.eq.s32.totalorder %v533, %v464
        %vm872 = vcmp.eq.s32.totalorder %v536, %v464
        %vm873 = vcmp.eq.s32.totalorder %v539, %v464
        %vm874 = vcmp.eq.s32.totalorder %v542, %v464
        %vm875 = vcmp.eq.s32.totalorder %v545, %v464
        %vm876 = vcmp.eq.s32.totalorder %v548, %v464
        %vm877 = vcmp.eq.s32.totalorder %v551, %v464
        %vm878 = vcmp.eq.s32.totalorder %v554, %v464
        %vm879 = vcmp.eq.s32.totalorder %v557, %v464
        %vm880 = vcmp.eq.s32.totalorder %v560, %v464
        %vm881 = vcmp.eq.s32.totalorder %v563, %v464
        %vm882 = vcmp.eq.s32.totalorder %v566, %v464
        %vm883 = vcmp.eq.s32.totalorder %v569, %v464
        %vm884 = vcmp.eq.s32.totalorder %v572, %v464
        %vm885 = vcmp.eq.s32.totalorder %v575, %v464
        %vm886 = vcmp.eq.s32.totalorder %v578, %v464
        %vm887 = vcmp.eq.s32.totalorder %v581, %v464
        %vm888 = vcmp.eq.s32.totalorder %v584, %v464
        %vm889 = vcmp.eq.s32.totalorder %v587, %v464
        %vm890 = vcmp.eq.s32.totalorder %v590, %v464
        %vm891 = vcmp.eq.s32.totalorder %v593, %v464
        %vm892 = vcmp.eq.s32.totalorder %v596, %v464
        %vm893 = vcmp.eq.s32.totalorder %v599, %v464
        %vm894 = vcmp.eq.s32.totalorder %v602, %v464
        %vm895 = vcmp.eq.s32.totalorder %v605, %v464
        %vm896 = vcmp.eq.s32.totalorder %v608, %v464
        %vm897 = vcmp.eq.s32.totalorder %v611, %v464
        %vm898 = vcmp.eq.s32.totalorder %v614, %v464
        %vm899 = vcmp.eq.s32.totalorder %v617, %v464
        %vm900 = vcmp.eq.s32.totalorder %v620, %v464
        %vm901 = vcmp.eq.s32.totalorder %v623, %v464
        %vm902 = vcmp.eq.s32.totalorder %v626, %v464
        %vm903 = vcmp.eq.s32.totalorder %v629, %v464
        %vm904 = vcmp.eq.s32.totalorder %v632, %v464
        %vm905 = vcmp.eq.s32.totalorder %v635, %v464
        %vm906 = vcmp.eq.s32.totalorder %v638, %v464
        %vm907 = vcmp.eq.s32.totalorder %v641, %v464
        %vm908 = vcmp.eq.s32.totalorder %v644, %v464
        %vm909 = vcmp.eq.s32.totalorder %v647, %v464
        %vm910 = vcmp.eq.s32.totalorder %v650, %v464
        %vm911 = vcmp.eq.s32.totalorder %v653, %v464
        %vm912 = vcmp.eq.s32.totalorder %v656, %v464
        %vm913 = vcmp.eq.s32.totalorder %v659, %v464
        %vm914 = vcmp.eq.s32.totalorder %v662, %v464
        %vm915 = vcmp.eq.s32.totalorder %v665, %v464
        %vm916 = vcmp.eq.s32.totalorder %v668, %v464
        %vm917 = vcmp.eq.s32.totalorder %v671, %v464
        %vm918 = vcmp.eq.s32.totalorder %v674, %v464
        %vm919 = vcmp.eq.s32.totalorder %v677, %v464
        %vm920 = vcmp.eq.s32.totalorder %v680, %v464
        %vm921 = vcmp.eq.s32.totalorder %v683, %v464
        %vm922 = vcmp.eq.s32.totalorder %v686, %v464
        %vm923 = vcmp.eq.s32.totalorder %v689, %v464
        %vm924 = vcmp.eq.s32.totalorder %v692, %v464
        %vm925 = vcmp.eq.s32.totalorder %v695, %v464
        %vm926 = vcmp.eq.s32.totalorder %v698, %v464
        %vm927 = vcmp.eq.s32.totalorder %v701, %v464
        %vm928 = vcmp.eq.s32.totalorder %v704, %v464
        %vm929 = vcmp.eq.s32.totalorder %v707, %v464
        %vm930 = vcmp.eq.s32.totalorder %v710, %v464
        %vm931 = vcmp.eq.s32.totalorder %v713, %v464
        %vm932 = vcmp.eq.s32.totalorder %v716, %v464
        %vm933 = vcmp.eq.s32.totalorder %v719, %v464
        %vm934 = vcmp.eq.s32.totalorder %v722, %v464
        %vm935 = vcmp.eq.s32.totalorder %v725, %v464
        %vm936 = vcmp.eq.s32.totalorder %v728, %v464
        %vm937 = vcmp.eq.s32.totalorder %v731, %v464
        %vm938 = vcmp.eq.s32.totalorder %v734, %v464
        %vm939 = vcmp.eq.s32.totalorder %v737, %v464
        %vm940 = vcmp.eq.s32.totalorder %v740, %v464
        %vm941 = vcmp.eq.s32.totalorder %v743, %v464
        %vm942 = vcmp.eq.s32.totalorder %v746, %v464
        %vm943 = vcmp.eq.s32.totalorder %v749, %v464
        %vm944 = vcmp.eq.s32.totalorder %v752, %v464
        %vm945 = vcmp.eq.s32.totalorder %v755, %v464
        %vm946 = vcmp.eq.s32.totalorder %v758, %v464
        %vm947 = vcmp.eq.s32.totalorder %v761, %v464
        %vm948 = vcmp.eq.s32.totalorder %v764, %v464
        %vm949 = vcmp.eq.s32.totalorder %v767, %v464
        %vm950 = vcmp.eq.s32.totalorder %v770, %v464
        %vm951 = vcmp.eq.s32.totalorder %v773, %v464
        %vm952 = vcmp.eq.s32.totalorder %v776, %v464
        %vm953 = vcmp.eq.s32.totalorder %v779, %v464
        %vm954 = vcmp.eq.s32.totalorder %v782, %v464
        %vm955 = vcmp.eq.s32.totalorder %v785, %v464
        %vm956 = vcmp.eq.s32.totalorder %v788, %v464
        %vm957 = vcmp.eq.s32.totalorder %v791, %v464
        %vm958 = vcmp.eq.s32.totalorder %v794, %v464
        %vm959 = vcmp.eq.s32.totalorder %v797, %v464
        %vm960 = vcmp.eq.s32.totalorder %v800, %v464
        %vm961 = vcmp.eq.s32.totalorder %v803, %v464
        %vm962 = vcmp.eq.s32.totalorder %v806, %v464
        %vm963 = vcmp.eq.s32.totalorder %v809, %v464
        %vm964 = vcmp.eq.s32.totalorder %v812, %v464
        %vm965 = vcmp.eq.s32.totalorder %v815, %v464
        %vm966 = vcmp.eq.s32.totalorder %v818, %v464
        %vm967 = vcmp.eq.s32.totalorder %v821, %v464
        %vm968 = vcmp.eq.s32.totalorder %v824, %v464
        %vm969 = vcmp.eq.s32.totalorder %v827, %v464
        %vm970 = vcmp.eq.s32.totalorder %v830, %v464
        %vm971 = vcmp.eq.s32.totalorder %v833, %v464
        %vm972 = vcmp.eq.s32.totalorder %v836, %v464
        %vm973 = vcmp.eq.s32.totalorder %v839, %v464
        %vm974 = vcmp.eq.s32.totalorder %v842, %v464
        %vm975 = vcmp.eq.s32.totalorder %v845, %v464
        %vm976 = vcmp.eq.s32.totalorder %v848, %v464
        %v977 = vsel %vm849, 1.0, 0.0
        %v978 = vsel %vm850, 1.0, 0.0
        %v979 = vsel %vm851, 1.0, 0.0
        %v980 = vsel %vm852, 1.0, 0.0
        %v981 = vsel %vm853, 1.0, 0.0
        %v982 = vsel %vm854, 1.0, 0.0
        %v983 = vsel %vm855, 1.0, 0.0
        %v984 = vsel %vm856, 1.0, 0.0
        %v985 = vsel %vm857, 1.0, 0.0
        %v986 = vsel %vm858, 1.0, 0.0
        %v987 = vsel %vm859, 1.0, 0.0
        %v988 = vsel %vm860, 1.0, 0.0
        %v989 = vsel %vm861, 1.0, 0.0
        %v990 = vsel %vm862, 1.0, 0.0
        %v991 = vsel %vm863, 1.0, 0.0
        %v992 = vsel %vm864, 1.0, 0.0
        %v993 = vsel %vm865, 1.0, 0.0
        %v994 = vsel %vm866, 1.0, 0.0
        %v995 = vsel %vm867, 1.0, 0.0
        %v996 = vsel %vm868, 1.0, 0.0
        %v997 = vsel %vm869, 1.0, 0.0
        %v998 = vsel %vm870, 1.0, 0.0
        %v999 = vsel %vm871, 1.0, 0.0
        %v1000 = vsel %vm872, 1.0, 0.0
        %v1001 = vsel %vm873, 1.0, 0.0
        %v1002 = vsel %vm874, 1.0, 0.0
        %v1003 = vsel %vm875, 1.0, 0.0
        %v1004 = vsel %vm876, 1.0, 0.0
        %v1005 = vsel %vm877, 1.0, 0.0
        %v1006 = vsel %vm878, 1.0, 0.0
        %v1007 = vsel %vm879, 1.0, 0.0
        %v1008 = vsel %vm880, 1.0, 0.0
        %v1009 = vsel %vm881, 1.0, 0.0
        %v1010 = vsel %vm882, 1.0, 0.0
        %v1011 = vsel %vm883, 1.0, 0.0
        %v1012 = vsel %vm884, 1.0, 0.0
        %v1013 = vsel %vm885, 1.0, 0.0
        %v1014 = vsel %vm886, 1.0, 0.0
        %v1015 = vsel %vm887, 1.0, 0.0
        %v1016 = vsel %vm888, 1.0, 0.0
        %v1017 = vsel %vm889, 1.0, 0.0
        %v1018 = vsel %vm890, 1.0, 0.0
        %v1019 = vsel %vm891, 1.0, 0.0
        %v1020 = vsel %vm892, 1.0, 0.0
        %v1021 = vsel %vm893, 1.0, 0.0
        %v1022 = vsel %vm894, 1.0, 0.0
        %v1023 = vsel %vm895, 1.0, 0.0
        %v1024 = vsel %vm896, 1.0, 0.0
        %v1025 = vsel %vm897, 1.0, 0.0
        %v1026 = vsel %vm898, 1.0, 0.0
        %v1027 = vsel %vm899, 1.0, 0.0
        %v1028 = vsel %vm900, 1.0, 0.0
        %v1029 = vsel %vm901, 1.0, 0.0
        %v1030 = vsel %vm902, 1.0, 0.0
        %v1031 = vsel %vm903, 1.0, 0.0
        %v1032 = vsel %vm904, 1.0, 0.0
        %v1033 = vsel %vm905, 1.0, 0.0
        %v1034 = vsel %vm906, 1.0, 0.0
        %v1035 = vsel %vm907, 1.0, 0.0
        %v1036 = vsel %vm908, 1.0, 0.0
        %v1037 = vsel %vm909, 1.0, 0.0
        %v1038 = vsel %vm910, 1.0, 0.0
        %v1039 = vsel %vm911, 1.0, 0.0
        %v1040 = vsel %vm912, 1.0, 0.0
        %v1041 = vsel %vm913, 1.0, 0.0
        %v1042 = vsel %vm914, 1.0, 0.0
        %v1043 = vsel %vm915, 1.0, 0.0
        %v1044 = vsel %vm916, 1.0, 0.0
        %v1045 = vsel %vm917, 1.0, 0.0
        %v1046 = vsel %vm918, 1.0, 0.0
        %v1047 = vsel %vm919, 1.0, 0.0
        %v1048 = vsel %vm920, 1.0, 0.0
        %v1049 = vsel %vm921, 1.0, 0.0
        %v1050 = vsel %vm922, 1.0, 0.0
        %v1051 = vsel %vm923, 1.0, 0.0
        %v1052 = vsel %vm924, 1.0, 0.0
        %v1053 = vsel %vm925, 1.0, 0.0
        %v1054 = vsel %vm926, 1.0, 0.0
        %v1055 = vsel %vm927, 1.0, 0.0
        %v1056 = vsel %vm928, 1.0, 0.0
        %v1057 = vsel %vm929, 1.0, 0.0
        %v1058 = vsel %vm930, 1.0, 0.0
        %v1059 = vsel %vm931, 1.0, 0.0
        %v1060 = vsel %vm932, 1.0, 0.0
        %v1061 = vsel %vm933, 1.0, 0.0
        %v1062 = vsel %vm934, 1.0, 0.0
        %v1063 = vsel %vm935, 1.0, 0.0
        %v1064 = vsel %vm936, 1.0, 0.0
        %v1065 = vsel %vm937, 1.0, 0.0
        %v1066 = vsel %vm938, 1.0, 0.0
        %v1067 = vsel %vm939, 1.0, 0.0
        %v1068 = vsel %vm940, 1.0, 0.0
        %v1069 = vsel %vm941, 1.0, 0.0
        %v1070 = vsel %vm942, 1.0, 0.0
        %v1071 = vsel %vm943, 1.0, 0.0
        %v1072 = vsel %vm944, 1.0, 0.0
        %v1073 = vsel %vm945, 1.0, 0.0
        %v1074 = vsel %vm946, 1.0, 0.0
        %v1075 = vsel %vm947, 1.0, 0.0
        %v1076 = vsel %vm948, 1.0, 0.0
        %v1077 = vsel %vm949, 1.0, 0.0
        %v1078 = vsel %vm950, 1.0, 0.0
        %v1079 = vsel %vm951, 1.0, 0.0
        %v1080 = vsel %vm952, 1.0, 0.0
        %v1081 = vsel %vm953, 1.0, 0.0
        %v1082 = vsel %vm954, 1.0, 0.0
        %v1083 = vsel %vm955, 1.0, 0.0
        %v1084 = vsel %vm956, 1.0, 0.0
        %v1085 = vsel %vm957, 1.0, 0.0
        %v1086 = vsel %vm958, 1.0, 0.0
        %v1087 = vsel %vm959, 1.0, 0.0
        %v1088 = vsel %vm960, 1.0, 0.0
        %v1089 = vsel %vm961, 1.0, 0.0
        %v1090 = vsel %vm962, 1.0, 0.0
        %v1091 = vsel %vm963, 1.0, 0.0
        %v1092 = vsel %vm964, 1.0, 0.0
        %v1093 = vsel %vm965, 1.0, 0.0
        %v1094 = vsel %vm966, 1.0, 0.0
        %v1095 = vsel %vm967, 1.0, 0.0
        %v1096 = vsel %vm968, 1.0, 0.0
        %v1097 = vsel %vm969, 1.0, 0.0
        %v1098 = vsel %vm970, 1.0, 0.0
        %v1099 = vsel %vm971, 1.0, 0.0
        %v1100 = vsel %vm972, 1.0, 0.0
        %v1101 = vsel %vm973, 1.0, 0.0
        %v1102 = vsel %vm974, 1.0, 0.0
        %v1103 = vsel %vm975, 1.0, 0.0
        %v1104 = vsel %vm976, 1.0, 0.0
        %1105 = vset.pattern.permute.xlu0 1
        %1106 = vperm.xlu0 %1105, %v335
        %v1107 = vpop.permute.xlu0 %1106
        %1108 = vset.pattern.permute.xlu0 1
        %1109 = vperm.xlu0 %1108, %v336
        %v1110 = vpop.permute.xlu0 %1109
        %1111 = vset.pattern.permute.xlu0 1
        %1112 = vperm.xlu0 %1111, %v337
        %v1113 = vpop.permute.xlu0 %1112
        %1114 = vset.pattern.permute.xlu0 1
        %1115 = vperm.xlu0 %1114, %v338
        %v1116 = vpop.permute.xlu0 %1115
        %1117 = vset.pattern.permute.xlu0 1
        %1118 = vperm.xlu0 %1117, %v339
        %v1119 = vpop.permute.xlu0 %1118
        %1120 = vset.pattern.permute.xlu0 1
        %1121 = vperm.xlu0 %1120, %v340
        %v1122 = vpop.permute.xlu0 %1121
        %1123 = vset.pattern.permute.xlu0 1
        %1124 = vperm.xlu0 %1123, %v341
        %v1125 = vpop.permute.xlu0 %1124
        %1126 = vset.pattern.permute.xlu0 1
        %1127 = vperm.xlu0 %1126, %v342
        %v1128 = vpop.permute.xlu0 %1127
        %1129 = vset.pattern.permute.xlu0 1
        %1130 = vperm.xlu0 %1129, %v343
        %v1131 = vpop.permute.xlu0 %1130
        %1132 = vset.pattern.permute.xlu0 1
        %1133 = vperm.xlu0 %1132, %v344
        %v1134 = vpop.permute.xlu0 %1133
        %1135 = vset.pattern.permute.xlu0 1
        %1136 = vperm.xlu0 %1135, %v345
        %v1137 = vpop.permute.xlu0 %1136
        %1138 = vset.pattern.permute.xlu0 1
        %1139 = vperm.xlu0 %1138, %v346
        %v1140 = vpop.permute.xlu0 %1139
        %1141 = vset.pattern.permute.xlu0 1
        %1142 = vperm.xlu0 %1141, %v347
        %v1143 = vpop.permute.xlu0 %1142
        %1144 = vset.pattern.permute.xlu0 1
        %1145 = vperm.xlu0 %1144, %v348
        %v1146 = vpop.permute.xlu0 %1145
        %1147 = vset.pattern.permute.xlu0 1
        %1148 = vperm.xlu0 %1147, %v349
        %v1149 = vpop.permute.xlu0 %1148
        %1150 = vset.pattern.permute.xlu0 1
        %1151 = vperm.xlu0 %1150, %v350
        %v1152 = vpop.permute.xlu0 %1151
        %1153 = vset.pattern.permute.xlu0 1
        %1154 = vperm.xlu0 %1153, %v351
        %v1155 = vpop.permute.xlu0 %1154
        %1156 = vset.pattern.permute.xlu0 1
        %1157 = vperm.xlu0 %1156, %v352
        %v1158 = vpop.permute.xlu0 %1157
        %1159 = vset.pattern.permute.xlu0 1
        %1160 = vperm.xlu0 %1159, %v353
        %v1161 = vpop.permute.xlu0 %1160
        %1162 = vset.pattern.permute.xlu0 1
        %1163 = vperm.xlu0 %1162, %v354
        %v1164 = vpop.permute.xlu0 %1163
        %1165 = vset.pattern.permute.xlu0 1
        %1166 = vperm.xlu0 %1165, %v355
        %v1167 = vpop.permute.xlu0 %1166
        %1168 = vset.pattern.permute.xlu0 1
        %1169 = vperm.xlu0 %1168, %v356
        %v1170 = vpop.permute.xlu0 %1169
        %1171 = vset.pattern.permute.xlu0 1
        %1172 = vperm.xlu0 %1171, %v357
        %v1173 = vpop.permute.xlu0 %1172
        %1174 = vset.pattern.permute.xlu0 1
        %1175 = vperm.xlu0 %1174, %v358
        %v1176 = vpop.permute.xlu0 %1175
        %1177 = vset.pattern.permute.xlu0 1
        %1178 = vperm.xlu0 %1177, %v359
        %v1179 = vpop.permute.xlu0 %1178
        %1180 = vset.pattern.permute.xlu0 1
        %1181 = vperm.xlu0 %1180, %v360
        %v1182 = vpop.permute.xlu0 %1181
        %1183 = vset.pattern.permute.xlu0 1
        %1184 = vperm.xlu0 %1183, %v361
        %v1185 = vpop.permute.xlu0 %1184
        %1186 = vset.pattern.permute.xlu0 1
        %1187 = vperm.xlu0 %1186, %v362
        %v1188 = vpop.permute.xlu0 %1187
        %1189 = vset.pattern.permute.xlu0 1
        %1190 = vperm.xlu0 %1189, %v363
        %v1191 = vpop.permute.xlu0 %1190
        %1192 = vset.pattern.permute.xlu0 1
        %1193 = vperm.xlu0 %1192, %v364
        %v1194 = vpop.permute.xlu0 %1193
        %1195 = vset.pattern.permute.xlu0 1
        %1196 = vperm.xlu0 %1195, %v365
        %v1197 = vpop.permute.xlu0 %1196
        %1198 = vset.pattern.permute.xlu0 1
        %1199 = vperm.xlu0 %1198, %v366
        %v1200 = vpop.permute.xlu0 %1199
        %1201 = vset.pattern.permute.xlu0 1
        %1202 = vperm.xlu0 %1201, %v367
        %v1203 = vpop.permute.xlu0 %1202
        %1204 = vset.pattern.permute.xlu0 1
        %1205 = vperm.xlu0 %1204, %v368
        %v1206 = vpop.permute.xlu0 %1205
        %1207 = vset.pattern.permute.xlu0 1
        %1208 = vperm.xlu0 %1207, %v369
        %v1209 = vpop.permute.xlu0 %1208
        %1210 = vset.pattern.permute.xlu0 1
        %1211 = vperm.xlu0 %1210, %v370
        %v1212 = vpop.permute.xlu0 %1211
        %1213 = vset.pattern.permute.xlu0 1
        %1214 = vperm.xlu0 %1213, %v371
        %v1215 = vpop.permute.xlu0 %1214
        %1216 = vset.pattern.permute.xlu0 1
        %1217 = vperm.xlu0 %1216, %v372
        %v1218 = vpop.permute.xlu0 %1217
        %1219 = vset.pattern.permute.xlu0 1
        %1220 = vperm.xlu0 %1219, %v373
        %v1221 = vpop.permute.xlu0 %1220
        %1222 = vset.pattern.permute.xlu0 1
        %1223 = vperm.xlu0 %1222, %v374
        %v1224 = vpop.permute.xlu0 %1223
        %1225 = vset.pattern.permute.xlu0 1
        %1226 = vperm.xlu0 %1225, %v375
        %v1227 = vpop.permute.xlu0 %1226
        %1228 = vset.pattern.permute.xlu0 1
        %1229 = vperm.xlu0 %1228, %v376
        %v1230 = vpop.permute.xlu0 %1229
        %1231 = vset.pattern.permute.xlu0 1
        %1232 = vperm.xlu0 %1231, %v377
        %v1233 = vpop.permute.xlu0 %1232
        %1234 = vset.pattern.permute.xlu0 1
        %1235 = vperm.xlu0 %1234, %v378
        %v1236 = vpop.permute.xlu0 %1235
        %1237 = vset.pattern.permute.xlu0 1
        %1238 = vperm.xlu0 %1237, %v379
        %v1239 = vpop.permute.xlu0 %1238
        %1240 = vset.pattern.permute.xlu0 1
        %1241 = vperm.xlu0 %1240, %v380
        %v1242 = vpop.permute.xlu0 %1241
        %1243 = vset.pattern.permute.xlu0 1
        %1244 = vperm.xlu0 %1243, %v381
        %v1245 = vpop.permute.xlu0 %1244
        %1246 = vset.pattern.permute.xlu0 1
        %1247 = vperm.xlu0 %1246, %v382
        %v1248 = vpop.permute.xlu0 %1247
        %1249 = vset.pattern.permute.xlu0 1
        %1250 = vperm.xlu0 %1249, %v383
        %v1251 = vpop.permute.xlu0 %1250
        %1252 = vset.pattern.permute.xlu0 1
        %1253 = vperm.xlu0 %1252, %v384
        %v1254 = vpop.permute.xlu0 %1253
        %1255 = vset.pattern.permute.xlu0 1
        %1256 = vperm.xlu0 %1255, %v385
        %v1257 = vpop.permute.xlu0 %1256
        %1258 = vset.pattern.permute.xlu0 1
        %1259 = vperm.xlu0 %1258, %v386
        %v1260 = vpop.permute.xlu0 %1259
        %1261 = vset.pattern.permute.xlu0 1
        %1262 = vperm.xlu0 %1261, %v387
        %v1263 = vpop.permute.xlu0 %1262
        %1264 = vset.pattern.permute.xlu0 1
        %1265 = vperm.xlu0 %1264, %v388
        %v1266 = vpop.permute.xlu0 %1265
        %1267 = vset.pattern.permute.xlu0 1
        %1268 = vperm.xlu0 %1267, %v389
        %v1269 = vpop.permute.xlu0 %1268
        %1270 = vset.pattern.permute.xlu0 1
        %1271 = vperm.xlu0 %1270, %v390
        %v1272 = vpop.permute.xlu0 %1271
        %1273 = vset.pattern.permute.xlu0 1
        %1274 = vperm.xlu0 %1273, %v391
        %v1275 = vpop.permute.xlu0 %1274
        %1276 = vset.pattern.permute.xlu0 1
        %1277 = vperm.xlu0 %1276, %v392
        %v1278 = vpop.permute.xlu0 %1277
        %1279 = vset.pattern.permute.xlu0 1
        %1280 = vperm.xlu0 %1279, %v393
        %v1281 = vpop.permute.xlu0 %1280
        %1282 = vset.pattern.permute.xlu0 1
        %1283 = vperm.xlu0 %1282, %v394
        %v1284 = vpop.permute.xlu0 %1283
        %1285 = vset.pattern.permute.xlu0 1
        %1286 = vperm.xlu0 %1285, %v395
        %v1287 = vpop.permute.xlu0 %1286
        %1288 = vset.pattern.permute.xlu0 1
        %1289 = vperm.xlu0 %1288, %v396
        %v1290 = vpop.permute.xlu0 %1289
        %1291 = vset.pattern.permute.xlu0 1
        %1292 = vperm.xlu0 %1291, %v397
        %v1293 = vpop.permute.xlu0 %1292
        %1294 = vset.pattern.permute.xlu0 1
        %1295 = vperm.xlu0 %1294, %v398
        %v1296 = vpop.permute.xlu0 %1295
        %1297 = vset.pattern.permute.xlu0 1
        %1298 = vperm.xlu0 %1297, %v399
        %v1299 = vpop.permute.xlu0 %1298
        %1300 = vset.pattern.permute.xlu0 1
        %1301 = vperm.xlu0 %1300, %v400
        %v1302 = vpop.permute.xlu0 %1301
        %1303 = vset.pattern.permute.xlu0 1
        %1304 = vperm.xlu0 %1303, %v401
        %v1305 = vpop.permute.xlu0 %1304
        %1306 = vset.pattern.permute.xlu0 1
        %1307 = vperm.xlu0 %1306, %v402
        %v1308 = vpop.permute.xlu0 %1307
        %1309 = vset.pattern.permute.xlu0 1
        %1310 = vperm.xlu0 %1309, %v403
        %v1311 = vpop.permute.xlu0 %1310
        %1312 = vset.pattern.permute.xlu0 1
        %1313 = vperm.xlu0 %1312, %v404
        %v1314 = vpop.permute.xlu0 %1313
        %1315 = vset.pattern.permute.xlu0 1
        %1316 = vperm.xlu0 %1315, %v405
        %v1317 = vpop.permute.xlu0 %1316
        %1318 = vset.pattern.permute.xlu0 1
        %1319 = vperm.xlu0 %1318, %v406
        %v1320 = vpop.permute.xlu0 %1319
        %1321 = vset.pattern.permute.xlu0 1
        %1322 = vperm.xlu0 %1321, %v407
        %v1323 = vpop.permute.xlu0 %1322
        %1324 = vset.pattern.permute.xlu0 1
        %1325 = vperm.xlu0 %1324, %v408
        %v1326 = vpop.permute.xlu0 %1325
        %1327 = vset.pattern.permute.xlu0 1
        %1328 = vperm.xlu0 %1327, %v409
        %v1329 = vpop.permute.xlu0 %1328
        %1330 = vset.pattern.permute.xlu0 1
        %1331 = vperm.xlu0 %1330, %v410
        %v1332 = vpop.permute.xlu0 %1331
        %1333 = vset.pattern.permute.xlu0 1
        %1334 = vperm.xlu0 %1333, %v411
        %v1335 = vpop.permute.xlu0 %1334
        %1336 = vset.pattern.permute.xlu0 1
        %1337 = vperm.xlu0 %1336, %v412
        %v1338 = vpop.permute.xlu0 %1337
        %1339 = vset.pattern.permute.xlu0 1
        %1340 = vperm.xlu0 %1339, %v413
        %v1341 = vpop.permute.xlu0 %1340
        %1342 = vset.pattern.permute.xlu0 1
        %1343 = vperm.xlu0 %1342, %v414
        %v1344 = vpop.permute.xlu0 %1343
        %1345 = vset.pattern.permute.xlu0 1
        %1346 = vperm.xlu0 %1345, %v415
        %v1347 = vpop.permute.xlu0 %1346
        %1348 = vset.pattern.permute.xlu0 1
        %1349 = vperm.xlu0 %1348, %v416
        %v1350 = vpop.permute.xlu0 %1349
        %1351 = vset.pattern.permute.xlu0 1
        %1352 = vperm.xlu0 %1351, %v417
        %v1353 = vpop.permute.xlu0 %1352
        %1354 = vset.pattern.permute.xlu0 1
        %1355 = vperm.xlu0 %1354, %v418
        %v1356 = vpop.permute.xlu0 %1355
        %1357 = vset.pattern.permute.xlu0 1
        %1358 = vperm.xlu0 %1357, %v419
        %v1359 = vpop.permute.xlu0 %1358
        %1360 = vset.pattern.permute.xlu0 1
        %1361 = vperm.xlu0 %1360, %v420
        %v1362 = vpop.permute.xlu0 %1361
        %1363 = vset.pattern.permute.xlu0 1
        %1364 = vperm.xlu0 %1363, %v421
        %v1365 = vpop.permute.xlu0 %1364
        %1366 = vset.pattern.permute.xlu0 1
        %1367 = vperm.xlu0 %1366, %v422
        %v1368 = vpop.permute.xlu0 %1367
        %1369 = vset.pattern.permute.xlu0 1
        %1370 = vperm.xlu0 %1369, %v423
        %v1371 = vpop.permute.xlu0 %1370
        %1372 = vset.pattern.permute.xlu0 1
        %1373 = vperm.xlu0 %1372, %v424
        %v1374 = vpop.permute.xlu0 %1373
        %1375 = vset.pattern.permute.xlu0 1
        %1376 = vperm.xlu0 %1375, %v425
        %v1377 = vpop.permute.xlu0 %1376
        %1378 = vset.pattern.permute.xlu0 1
        %1379 = vperm.xlu0 %1378, %v426
        %v1380 = vpop.permute.xlu0 %1379
        %1381 = vset.pattern.permute.xlu0 1
        %1382 = vperm.xlu0 %1381, %v427
        %v1383 = vpop.permute.xlu0 %1382
        %1384 = vset.pattern.permute.xlu0 1
        %1385 = vperm.xlu0 %1384, %v428
        %v1386 = vpop.permute.xlu0 %1385
        %1387 = vset.pattern.permute.xlu0 1
        %1388 = vperm.xlu0 %1387, %v429
        %v1389 = vpop.permute.xlu0 %1388
        %1390 = vset.pattern.permute.xlu0 1
        %1391 = vperm.xlu0 %1390, %v430
        %v1392 = vpop.permute.xlu0 %1391
        %1393 = vset.pattern.permute.xlu0 1
        %1394 = vperm.xlu0 %1393, %v431
        %v1395 = vpop.permute.xlu0 %1394
        %1396 = vset.pattern.permute.xlu0 1
        %1397 = vperm.xlu0 %1396, %v432
        %v1398 = vpop.permute.xlu0 %1397
        %1399 = vset.pattern.permute.xlu0 1
        %1400 = vperm.xlu0 %1399, %v433
        %v1401 = vpop.permute.xlu0 %1400
        %1402 = vset.pattern.permute.xlu0 1
        %1403 = vperm.xlu0 %1402, %v434
        %v1404 = vpop.permute.xlu0 %1403
        %1405 = vset.pattern.permute.xlu0 1
        %1406 = vperm.xlu0 %1405, %v435
        %v1407 = vpop.permute.xlu0 %1406
        %1408 = vset.pattern.permute.xlu0 1
        %1409 = vperm.xlu0 %1408, %v436
        %v1410 = vpop.permute.xlu0 %1409
        %1411 = vset.pattern.permute.xlu0 1
        %1412 = vperm.xlu0 %1411, %v437
        %v1413 = vpop.permute.xlu0 %1412
        %1414 = vset.pattern.permute.xlu0 1
        %1415 = vperm.xlu0 %1414, %v438
        %v1416 = vpop.permute.xlu0 %1415
        %1417 = vset.pattern.permute.xlu0 1
        %1418 = vperm.xlu0 %1417, %v439
        %v1419 = vpop.permute.xlu0 %1418
        %1420 = vset.pattern.permute.xlu0 1
        %1421 = vperm.xlu0 %1420, %v440
        %v1422 = vpop.permute.xlu0 %1421
        %1423 = vset.pattern.permute.xlu0 1
        %1424 = vperm.xlu0 %1423, %v441
        %v1425 = vpop.permute.xlu0 %1424
        %1426 = vset.pattern.permute.xlu0 1
        %1427 = vperm.xlu0 %1426, %v442
        %v1428 = vpop.permute.xlu0 %1427
        %1429 = vset.pattern.permute.xlu0 1
        %1430 = vperm.xlu0 %1429, %v443
        %v1431 = vpop.permute.xlu0 %1430
        %1432 = vset.pattern.permute.xlu0 1
        %1433 = vperm.xlu0 %1432, %v444
        %v1434 = vpop.permute.xlu0 %1433
        %1435 = vset.pattern.permute.xlu0 1
        %1436 = vperm.xlu0 %1435, %v445
        %v1437 = vpop.permute.xlu0 %1436
        %1438 = vset.pattern.permute.xlu0 1
        %1439 = vperm.xlu0 %1438, %v446
        %v1440 = vpop.permute.xlu0 %1439
        %1441 = vset.pattern.permute.xlu0 1
        %1442 = vperm.xlu0 %1441, %v447
        %v1443 = vpop.permute.xlu0 %1442
        %1444 = vset.pattern.permute.xlu0 1
        %1445 = vperm.xlu0 %1444, %v448
        %v1446 = vpop.permute.xlu0 %1445
        %1447 = vset.pattern.permute.xlu0 1
        %1448 = vperm.xlu0 %1447, %v449
        %v1449 = vpop.permute.xlu0 %1448
        %1450 = vset.pattern.permute.xlu0 1
        %1451 = vperm.xlu0 %1450, %v450
        %v1452 = vpop.permute.xlu0 %1451
        %1453 = vset.pattern.permute.xlu0 1
        %1454 = vperm.xlu0 %1453, %v451
        %v1455 = vpop.permute.xlu0 %1454
        %1456 = vset.pattern.permute.xlu0 1
        %1457 = vperm.xlu0 %1456, %v452
        %v1458 = vpop.permute.xlu0 %1457
        %1459 = vset.pattern.permute.xlu0 1
        %1460 = vperm.xlu0 %1459, %v453
        %v1461 = vpop.permute.xlu0 %1460
        %1462 = vset.pattern.permute.xlu0 1
        %1463 = vperm.xlu0 %1462, %v454
        %v1464 = vpop.permute.xlu0 %1463
        %1465 = vset.pattern.permute.xlu0 1
        %1466 = vperm.xlu0 %1465, %v455
        %v1467 = vpop.permute.xlu0 %1466
        %1468 = vset.pattern.permute.xlu0 1
        %1469 = vperm.xlu0 %1468, %v456
        %v1470 = vpop.permute.xlu0 %1469
        %1471 = vset.pattern.permute.xlu0 1
        %1472 = vperm.xlu0 %1471, %v457
        %v1473 = vpop.permute.xlu0 %1472
        %1474 = vset.pattern.permute.xlu0 1
        %1475 = vperm.xlu0 %1474, %v458
        %v1476 = vpop.permute.xlu0 %1475
        %1477 = vset.pattern.permute.xlu0 1
        %1478 = vperm.xlu0 %1477, %v459
        %v1479 = vpop.permute.xlu0 %1478
        %1480 = vset.pattern.permute.xlu0 1
        %1481 = vperm.xlu0 %1480, %v460
        %v1482 = vpop.permute.xlu0 %1481
        %1483 = vset.pattern.permute.xlu0 1
        %1484 = vperm.xlu0 %1483, %v461
        %v1485 = vpop.permute.xlu0 %1484
        %1486 = vset.pattern.permute.xlu0 1
        %1487 = vperm.xlu0 %1486, %v462
        %v1488 = vpop.permute.xlu0 %1487
        %vm1489 = vcmp.eq.s32.totalorder %v1107, %v464
        %vm1490 = vcmp.eq.s32.totalorder %v1110, %v464
        %vm1491 = vcmp.eq.s32.totalorder %v1113, %v464
        %vm1492 = vcmp.eq.s32.totalorder %v1116, %v464
        %vm1493 = vcmp.eq.s32.totalorder %v1119, %v464
        %vm1494 = vcmp.eq.s32.totalorder %v1122, %v464
        %vm1495 = vcmp.eq.s32.totalorder %v1125, %v464
        %vm1496 = vcmp.eq.s32.totalorder %v1128, %v464
        %vm1497 = vcmp.eq.s32.totalorder %v1131, %v464
        %vm1498 = vcmp.eq.s32.totalorder %v1134, %v464
        %vm1499 = vcmp.eq.s32.totalorder %v1137, %v464
        %vm1500 = vcmp.eq.s32.totalorder %v1140, %v464
        %vm1501 = vcmp.eq.s32.totalorder %v1143, %v464
        %vm1502 = vcmp.eq.s32.totalorder %v1146, %v464
        %vm1503 = vcmp.eq.s32.totalorder %v1149, %v464
        %vm1504 = vcmp.eq.s32.totalorder %v1152, %v464
        %vm1505 = vcmp.eq.s32.totalorder %v1155, %v464
        %vm1506 = vcmp.eq.s32.totalorder %v1158, %v464
        %vm1507 = vcmp.eq.s32.totalorder %v1161, %v464
        %vm1508 = vcmp.eq.s32.totalorder %v1164, %v464
        %vm1509 = vcmp.eq.s32.totalorder %v1167, %v464
        %vm1510 = vcmp.eq.s32.totalorder %v1170, %v464
        %vm1511 = vcmp.eq.s32.totalorder %v1173, %v464
        %vm1512 = vcmp.eq.s32.totalorder %v1176, %v464
        %vm1513 = vcmp.eq.s32.totalorder %v1179, %v464
        %vm1514 = vcmp.eq.s32.totalorder %v1182, %v464
        %vm1515 = vcmp.eq.s32.totalorder %v1185, %v464
        %vm1516 = vcmp.eq.s32.totalorder %v1188, %v464
        %vm1517 = vcmp.eq.s32.totalorder %v1191, %v464
        %vm1518 = vcmp.eq.s32.totalorder %v1194, %v464
        %vm1519 = vcmp.eq.s32.totalorder %v1197, %v464
        %vm1520 = vcmp.eq.s32.totalorder %v1200, %v464
        %vm1521 = vcmp.eq.s32.totalorder %v1203, %v464
        %vm1522 = vcmp.eq.s32.totalorder %v1206, %v464
        %vm1523 = vcmp.eq.s32.totalorder %v1209, %v464
        %vm1524 = vcmp.eq.s32.totalorder %v1212, %v464
        %vm1525 = vcmp.eq.s32.totalorder %v1215, %v464
        %vm1526 = vcmp.eq.s32.totalorder %v1218, %v464
        %vm1527 = vcmp.eq.s32.totalorder %v1221, %v464
        %vm1528 = vcmp.eq.s32.totalorder %v1224, %v464
        %vm1529 = vcmp.eq.s32.totalorder %v1227, %v464
        %vm1530 = vcmp.eq.s32.totalorder %v1230, %v464
        %vm1531 = vcmp.eq.s32.totalorder %v1233, %v464
        %vm1532 = vcmp.eq.s32.totalorder %v1236, %v464
        %vm1533 = vcmp.eq.s32.totalorder %v1239, %v464
        %vm1534 = vcmp.eq.s32.totalorder %v1242, %v464
        %vm1535 = vcmp.eq.s32.totalorder %v1245, %v464
        %vm1536 = vcmp.eq.s32.totalorder %v1248, %v464
        %vm1537 = vcmp.eq.s32.totalorder %v1251, %v464
        %vm1538 = vcmp.eq.s32.totalorder %v1254, %v464
        %vm1539 = vcmp.eq.s32.totalorder %v1257, %v464
        %vm1540 = vcmp.eq.s32.totalorder %v1260, %v464
        %vm1541 = vcmp.eq.s32.totalorder %v1263, %v464
        %vm1542 = vcmp.eq.s32.totalorder %v1266, %v464
        %vm1543 = vcmp.eq.s32.totalorder %v1269, %v464
        %vm1544 = vcmp.eq.s32.totalorder %v1272, %v464
        %vm1545 = vcmp.eq.s32.totalorder %v1275, %v464
        %vm1546 = vcmp.eq.s32.totalorder %v1278, %v464
        %vm1547 = vcmp.eq.s32.totalorder %v1281, %v464
        %vm1548 = vcmp.eq.s32.totalorder %v1284, %v464
        %vm1549 = vcmp.eq.s32.totalorder %v1287, %v464
        %vm1550 = vcmp.eq.s32.totalorder %v1290, %v464
        %vm1551 = vcmp.eq.s32.totalorder %v1293, %v464
        %vm1552 = vcmp.eq.s32.totalorder %v1296, %v464
        %vm1553 = vcmp.eq.s32.totalorder %v1299, %v464
        %vm1554 = vcmp.eq.s32.totalorder %v1302, %v464
        %vm1555 = vcmp.eq.s32.totalorder %v1305, %v464
        %vm1556 = vcmp.eq.s32.totalorder %v1308, %v464
        %vm1557 = vcmp.eq.s32.totalorder %v1311, %v464
        %vm1558 = vcmp.eq.s32.totalorder %v1314, %v464
        %vm1559 = vcmp.eq.s32.totalorder %v1317, %v464
        %vm1560 = vcmp.eq.s32.totalorder %v1320, %v464
        %vm1561 = vcmp.eq.s32.totalorder %v1323, %v464
        %vm1562 = vcmp.eq.s32.totalorder %v1326, %v464
        %vm1563 = vcmp.eq.s32.totalorder %v1329, %v464
        %vm1564 = vcmp.eq.s32.totalorder %v1332, %v464
        %vm1565 = vcmp.eq.s32.totalorder %v1335, %v464
        %vm1566 = vcmp.eq.s32.totalorder %v1338, %v464
        %vm1567 = vcmp.eq.s32.totalorder %v1341, %v464
        %vm1568 = vcmp.eq.s32.totalorder %v1344, %v464
        %vm1569 = vcmp.eq.s32.totalorder %v1347, %v464
        %vm1570 = vcmp.eq.s32.totalorder %v1350, %v464
        %vm1571 = vcmp.eq.s32.totalorder %v1353, %v464
        %vm1572 = vcmp.eq.s32.totalorder %v1356, %v464
        %vm1573 = vcmp.eq.s32.totalorder %v1359, %v464
        %vm1574 = vcmp.eq.s32.totalorder %v1362, %v464
        %vm1575 = vcmp.eq.s32.totalorder %v1365, %v464
        %vm1576 = vcmp.eq.s32.totalorder %v1368, %v464
        %vm1577 = vcmp.eq.s32.totalorder %v1371, %v464
        %vm1578 = vcmp.eq.s32.totalorder %v1374, %v464
        %vm1579 = vcmp.eq.s32.totalorder %v1377, %v464
        %vm1580 = vcmp.eq.s32.totalorder %v1380, %v464
        %vm1581 = vcmp.eq.s32.totalorder %v1383, %v464
        %vm1582 = vcmp.eq.s32.totalorder %v1386, %v464
        %vm1583 = vcmp.eq.s32.totalorder %v1389, %v464
        %vm1584 = vcmp.eq.s32.totalorder %v1392, %v464
        %vm1585 = vcmp.eq.s32.totalorder %v1395, %v464
        %vm1586 = vcmp.eq.s32.totalorder %v1398, %v464
        %vm1587 = vcmp.eq.s32.totalorder %v1401, %v464
        %vm1588 = vcmp.eq.s32.totalorder %v1404, %v464
        %vm1589 = vcmp.eq.s32.totalorder %v1407, %v464
        %vm1590 = vcmp.eq.s32.totalorder %v1410, %v464
        %vm1591 = vcmp.eq.s32.totalorder %v1413, %v464
        %vm1592 = vcmp.eq.s32.totalorder %v1416, %v464
        %vm1593 = vcmp.eq.s32.totalorder %v1419, %v464
        %vm1594 = vcmp.eq.s32.totalorder %v1422, %v464
        %vm1595 = vcmp.eq.s32.totalorder %v1425, %v464
        %vm1596 = vcmp.eq.s32.totalorder %v1428, %v464
        %vm1597 = vcmp.eq.s32.totalorder %v1431, %v464
        %vm1598 = vcmp.eq.s32.totalorder %v1434, %v464
        %vm1599 = vcmp.eq.s32.totalorder %v1437, %v464
        %vm1600 = vcmp.eq.s32.totalorder %v1440, %v464
        %vm1601 = vcmp.eq.s32.totalorder %v1443, %v464
        %vm1602 = vcmp.eq.s32.totalorder %v1446, %v464
        %vm1603 = vcmp.eq.s32.totalorder %v1449, %v464
        %vm1604 = vcmp.eq.s32.totalorder %v1452, %v464
        %vm1605 = vcmp.eq.s32.totalorder %v1455, %v464
        %vm1606 = vcmp.eq.s32.totalorder %v1458, %v464
        %vm1607 = vcmp.eq.s32.totalorder %v1461, %v464
        %vm1608 = vcmp.eq.s32.totalorder %v1464, %v464
        %vm1609 = vcmp.eq.s32.totalorder %v1467, %v464
        %vm1610 = vcmp.eq.s32.totalorder %v1470, %v464
        %vm1611 = vcmp.eq.s32.totalorder %v1473, %v464
        %vm1612 = vcmp.eq.s32.totalorder %v1476, %v464
        %vm1613 = vcmp.eq.s32.totalorder %v1479, %v464
        %vm1614 = vcmp.eq.s32.totalorder %v1482, %v464
        %vm1615 = vcmp.eq.s32.totalorder %v1485, %v464
        %vm1616 = vcmp.eq.s32.totalorder %v1488, %v464
        %v1617 = vsel %vm1489, 1.0, 0.0
        %v1618 = vsel %vm1490, 1.0, 0.0
        %v1619 = vsel %vm1491, 1.0, 0.0
        %v1620 = vsel %vm1492, 1.0, 0.0
        %v1621 = vsel %vm1493, 1.0, 0.0
        %v1622 = vsel %vm1494, 1.0, 0.0
        %v1623 = vsel %vm1495, 1.0, 0.0
        %v1624 = vsel %vm1496, 1.0, 0.0
        %v1625 = vsel %vm1497, 1.0, 0.0
        %v1626 = vsel %vm1498, 1.0, 0.0
        %v1627 = vsel %vm1499, 1.0, 0.0
        %v1628 = vsel %vm1500, 1.0, 0.0
        %v1629 = vsel %vm1501, 1.0, 0.0
        %v1630 = vsel %vm1502, 1.0, 0.0
        %v1631 = vsel %vm1503, 1.0, 0.0
        %v1632 = vsel %vm1504, 1.0, 0.0
        %v1633 = vsel %vm1505, 1.0, 0.0
        %v1634 = vsel %vm1506, 1.0, 0.0
        %v1635 = vsel %vm1507, 1.0, 0.0
        %v1636 = vsel %vm1508, 1.0, 0.0
        %v1637 = vsel %vm1509, 1.0, 0.0
        %v1638 = vsel %vm1510, 1.0, 0.0
        %v1639 = vsel %vm1511, 1.0, 0.0
        %v1640 = vsel %vm1512, 1.0, 0.0
        %v1641 = vsel %vm1513, 1.0, 0.0
        %v1642 = vsel %vm1514, 1.0, 0.0
        %v1643 = vsel %vm1515, 1.0, 0.0
        %v1644 = vsel %vm1516, 1.0, 0.0
        %v1645 = vsel %vm1517, 1.0, 0.0
        %v1646 = vsel %vm1518, 1.0, 0.0
        %v1647 = vsel %vm1519, 1.0, 0.0
        %v1648 = vsel %vm1520, 1.0, 0.0
        %v1649 = vsel %vm1521, 1.0, 0.0
        %v1650 = vsel %vm1522, 1.0, 0.0
        %v1651 = vsel %vm1523, 1.0, 0.0
        %v1652 = vsel %vm1524, 1.0, 0.0
        %v1653 = vsel %vm1525, 1.0, 0.0
        %v1654 = vsel %vm1526, 1.0, 0.0
        %v1655 = vsel %vm1527, 1.0, 0.0
        %v1656 = vsel %vm1528, 1.0, 0.0
        %v1657 = vsel %vm1529, 1.0, 0.0
        %v1658 = vsel %vm1530, 1.0, 0.0
        %v1659 = vsel %vm1531, 1.0, 0.0
        %v1660 = vsel %vm1532, 1.0, 0.0
        %v1661 = vsel %vm1533, 1.0, 0.0
        %v1662 = vsel %vm1534, 1.0, 0.0
        %v1663 = vsel %vm1535, 1.0, 0.0
        %v1664 = vsel %vm1536, 1.0, 0.0
        %v1665 = vsel %vm1537, 1.0, 0.0
        %v1666 = vsel %vm1538, 1.0, 0.0
        %v1667 = vsel %vm1539, 1.0, 0.0
        %v1668 = vsel %vm1540, 1.0, 0.0
        %v1669 = vsel %vm1541, 1.0, 0.0
        %v1670 = vsel %vm1542, 1.0, 0.0
        %v1671 = vsel %vm1543, 1.0, 0.0
        %v1672 = vsel %vm1544, 1.0, 0.0
        %v1673 = vsel %vm1545, 1.0, 0.0
        %v1674 = vsel %vm1546, 1.0, 0.0
        %v1675 = vsel %vm1547, 1.0, 0.0
        %v1676 = vsel %vm1548, 1.0, 0.0
        %v1677 = vsel %vm1549, 1.0, 0.0
        %v1678 = vsel %vm1550, 1.0, 0.0
        %v1679 = vsel %vm1551, 1.0, 0.0
        %v1680 = vsel %vm1552, 1.0, 0.0
        %v1681 = vsel %vm1553, 1.0, 0.0
        %v1682 = vsel %vm1554, 1.0, 0.0
        %v1683 = vsel %vm1555, 1.0, 0.0
        %v1684 = vsel %vm1556, 1.0, 0.0
        %v1685 = vsel %vm1557, 1.0, 0.0
        %v1686 = vsel %vm1558, 1.0, 0.0
        %v1687 = vsel %vm1559, 1.0, 0.0
        %v1688 = vsel %vm1560, 1.0, 0.0
        %v1689 = vsel %vm1561, 1.0, 0.0
        %v1690 = vsel %vm1562, 1.0, 0.0
        %v1691 = vsel %vm1563, 1.0, 0.0
        %v1692 = vsel %vm1564, 1.0, 0.0
        %v1693 = vsel %vm1565, 1.0, 0.0
        %v1694 = vsel %vm1566, 1.0, 0.0
        %v1695 = vsel %vm1567, 1.0, 0.0
        %v1696 = vsel %vm1568, 1.0, 0.0
        %v1697 = vsel %vm1569, 1.0, 0.0
        %v1698 = vsel %vm1570, 1.0, 0.0
        %v1699 = vsel %vm1571, 1.0, 0.0
        %v1700 = vsel %vm1572, 1.0, 0.0
        %v1701 = vsel %vm1573, 1.0, 0.0
        %v1702 = vsel %vm1574, 1.0, 0.0
        %v1703 = vsel %vm1575, 1.0, 0.0
        %v1704 = vsel %vm1576, 1.0, 0.0
        %v1705 = vsel %vm1577, 1.0, 0.0
        %v1706 = vsel %vm1578, 1.0, 0.0
        %v1707 = vsel %vm1579, 1.0, 0.0
        %v1708 = vsel %vm1580, 1.0, 0.0
        %v1709 = vsel %vm1581, 1.0, 0.0
        %v1710 = vsel %vm1582, 1.0, 0.0
        %v1711 = vsel %vm1583, 1.0, 0.0
        %v1712 = vsel %vm1584, 1.0, 0.0
        %v1713 = vsel %vm1585, 1.0, 0.0
        %v1714 = vsel %vm1586, 1.0, 0.0
        %v1715 = vsel %vm1587, 1.0, 0.0
        %v1716 = vsel %vm1588, 1.0, 0.0
        %v1717 = vsel %vm1589, 1.0, 0.0
        %v1718 = vsel %vm1590, 1.0, 0.0
        %v1719 = vsel %vm1591, 1.0, 0.0
        %v1720 = vsel %vm1592, 1.0, 0.0
        %v1721 = vsel %vm1593, 1.0, 0.0
        %v1722 = vsel %vm1594, 1.0, 0.0
        %v1723 = vsel %vm1595, 1.0, 0.0
        %v1724 = vsel %vm1596, 1.0, 0.0
        %v1725 = vsel %vm1597, 1.0, 0.0
        %v1726 = vsel %vm1598, 1.0, 0.0
        %v1727 = vsel %vm1599, 1.0, 0.0
        %v1728 = vsel %vm1600, 1.0, 0.0
        %v1729 = vsel %vm1601, 1.0, 0.0
        %v1730 = vsel %vm1602, 1.0, 0.0
        %v1731 = vsel %vm1603, 1.0, 0.0
        %v1732 = vsel %vm1604, 1.0, 0.0
        %v1733 = vsel %vm1605, 1.0, 0.0
        %v1734 = vsel %vm1606, 1.0, 0.0
        %v1735 = vsel %vm1607, 1.0, 0.0
        %v1736 = vsel %vm1608, 1.0, 0.0
        %v1737 = vsel %vm1609, 1.0, 0.0
        %v1738 = vsel %vm1610, 1.0, 0.0
        %v1739 = vsel %vm1611, 1.0, 0.0
        %v1740 = vsel %vm1612, 1.0, 0.0
        %v1741 = vsel %vm1613, 1.0, 0.0
        %v1742 = vsel %vm1614, 1.0, 0.0
        %v1743 = vsel %vm1615, 1.0, 0.0
        %v1744 = vsel %vm1616, 1.0, 0.0
        %v1745 = vld [vmem:[%s1] sm:$0xff]
        %v1746 = vld [vmem:[%s1 + $0x8] sm:$0xff]
        %v1747 = vld [vmem:[%s1 + $0x10] sm:$0xff]
        %v1748 = vld [vmem:[%s1 + $0x18] sm:$0xff]
        %v1749 = vld [vmem:[%s1 + $0x20] sm:$0xff]
        %v1750 = vld [vmem:[%s1 + $0x28] sm:$0xff]
        %v1751 = vld [vmem:[%s1 + $0x30] sm:$0xff]
        %v1752 = vld [vmem:[%s1 + $0x38] sm:$0xff]
        %vm1753 = vcmask 523264
        %v1755 = vsel %vm1753, %v977, 0
        %v1758 = vsel %vm1753, %v978, 0
        %v1761 = vsel %vm1753, %v979, 0
        %v1764 = vsel %vm1753, %v980, 0
        %v1767 = vsel %vm1753, %v981, 0
        %v1770 = vsel %vm1753, %v982, 0
        %v1773 = vsel %vm1753, %v983, 0
        %v1776 = vsel %vm1753, %v984, 0
        %v1779 = vsel %vm1753, %v985, 0
        %v1782 = vsel %vm1753, %v986, 0
        %v1785 = vsel %vm1753, %v987, 0
        %v1788 = vsel %vm1753, %v988, 0
        %v1791 = vsel %vm1753, %v989, 0
        %v1794 = vsel %vm1753, %v990, 0
        %v1797 = vsel %vm1753, %v991, 0
        %v1800 = vsel %vm1753, %v992, 0
        %v1803 = vsel %vm1753, %v993, 0
        %v1806 = vsel %vm1753, %v994, 0
        %v1809 = vsel %vm1753, %v995, 0
        %v1812 = vsel %vm1753, %v996, 0
        %v1815 = vsel %vm1753, %v997, 0
        %v1818 = vsel %vm1753, %v998, 0
        %v1821 = vsel %vm1753, %v999, 0
        %v1824 = vsel %vm1753, %v1000, 0
        %v1827 = vsel %vm1753, %v1001, 0
        %v1830 = vsel %vm1753, %v1002, 0
        %v1833 = vsel %vm1753, %v1003, 0
        %v1836 = vsel %vm1753, %v1004, 0
        %v1839 = vsel %vm1753, %v1005, 0
        %v1842 = vsel %vm1753, %v1006, 0
        %v1845 = vsel %vm1753, %v1007, 0
        %v1848 = vsel %vm1753, %v1008, 0
        %v1851 = vsel %vm1753, %v1009, 0
        %v1854 = vsel %vm1753, %v1010, 0
        %v1857 = vsel %vm1753, %v1011, 0
        %v1860 = vsel %vm1753, %v1012, 0
        %v1863 = vsel %vm1753, %v1013, 0
        %v1866 = vsel %vm1753, %v1014, 0
        %v1869 = vsel %vm1753, %v1015, 0
        %v1872 = vsel %vm1753, %v1016, 0
        %v1875 = vsel %vm1753, %v1017, 0
        %v1878 = vsel %vm1753, %v1018, 0
        %v1881 = vsel %vm1753, %v1019, 0
        %v1884 = vsel %vm1753, %v1020, 0
        %v1887 = vsel %vm1753, %v1021, 0
        %v1890 = vsel %vm1753, %v1022, 0
        %v1893 = vsel %vm1753, %v1023, 0
        %v1896 = vsel %vm1753, %v1024, 0
        %v1899 = vsel %vm1753, %v1025, 0
        %v1902 = vsel %vm1753, %v1026, 0
        %v1905 = vsel %vm1753, %v1027, 0
        %v1908 = vsel %vm1753, %v1028, 0
        %v1911 = vsel %vm1753, %v1029, 0
        %v1914 = vsel %vm1753, %v1030, 0
        %v1917 = vsel %vm1753, %v1031, 0
        %v1920 = vsel %vm1753, %v1032, 0
        %v1923 = vsel %vm1753, %v1033, 0
        %v1926 = vsel %vm1753, %v1034, 0
        %v1929 = vsel %vm1753, %v1035, 0
        %v1932 = vsel %vm1753, %v1036, 0
        %v1935 = vsel %vm1753, %v1037, 0
        %v1938 = vsel %vm1753, %v1038, 0
        %v1941 = vsel %vm1753, %v1039, 0
        %v1944 = vsel %vm1753, %v1040, 0
        %v1947 = vsel %vm1753, %v1041, 0
        %v1950 = vsel %vm1753, %v1042, 0
        %v1953 = vsel %vm1753, %v1043, 0
        %v1956 = vsel %vm1753, %v1044, 0
        %v1959 = vsel %vm1753, %v1045, 0
        %v1962 = vsel %vm1753, %v1046, 0
        %v1965 = vsel %vm1753, %v1047, 0
        %v1968 = vsel %vm1753, %v1048, 0
        %v1971 = vsel %vm1753, %v1049, 0
        %v1974 = vsel %vm1753, %v1050, 0
        %v1977 = vsel %vm1753, %v1051, 0
        %v1980 = vsel %vm1753, %v1052, 0
        %v1983 = vsel %vm1753, %v1053, 0
        %v1986 = vsel %vm1753, %v1054, 0
        %v1989 = vsel %vm1753, %v1055, 0
        %v1992 = vsel %vm1753, %v1056, 0
        %v1995 = vsel %vm1753, %v1057, 0
        %v1998 = vsel %vm1753, %v1058, 0
        %v2001 = vsel %vm1753, %v1059, 0
        %v2004 = vsel %vm1753, %v1060, 0
        %v2007 = vsel %vm1753, %v1061, 0
        %v2010 = vsel %vm1753, %v1062, 0
        %v2013 = vsel %vm1753, %v1063, 0
        %v2016 = vsel %vm1753, %v1064, 0
        %v2019 = vsel %vm1753, %v1065, 0
        %v2022 = vsel %vm1753, %v1066, 0
        %v2025 = vsel %vm1753, %v1067, 0
        %v2028 = vsel %vm1753, %v1068, 0
        %v2031 = vsel %vm1753, %v1069, 0
        %v2034 = vsel %vm1753, %v1070, 0
        %v2037 = vsel %vm1753, %v1071, 0
        %v2040 = vsel %vm1753, %v1072, 0
        %v2043 = vsel %vm1753, %v1073, 0
        %v2046 = vsel %vm1753, %v1074, 0
        %v2049 = vsel %vm1753, %v1075, 0
        %v2052 = vsel %vm1753, %v1076, 0
        %v2055 = vsel %vm1753, %v1077, 0
        %v2058 = vsel %vm1753, %v1078, 0
        %v2061 = vsel %vm1753, %v1079, 0
        %v2064 = vsel %vm1753, %v1080, 0
        %v2067 = vsel %vm1753, %v1081, 0
        %v2070 = vsel %vm1753, %v1082, 0
        %v2073 = vsel %vm1753, %v1083, 0
        %v2076 = vsel %vm1753, %v1084, 0
        %v2079 = vsel %vm1753, %v1085, 0
        %v2082 = vsel %vm1753, %v1086, 0
        %v2085 = vsel %vm1753, %v1087, 0
        %v2088 = vsel %vm1753, %v1088, 0
        %v2091 = vsel %vm1753, %v1089, 0
        %v2094 = vsel %vm1753, %v1090, 0
        %v2097 = vsel %vm1753, %v1091, 0
        %v2100 = vsel %vm1753, %v1092, 0
        %v2103 = vsel %vm1753, %v1093, 0
        %v2106 = vsel %vm1753, %v1094, 0
        %v2109 = vsel %vm1753, %v1095, 0
        %v2112 = vsel %vm1753, %v1096, 0
        %v2115 = vsel %vm1753, %v1097, 0
        %v2118 = vsel %vm1753, %v1098, 0
        %v2121 = vsel %vm1753, %v1099, 0
        %v2124 = vsel %vm1753, %v1100, 0
        %v2127 = vsel %vm1753, %v1101, 0
        %v2130 = vsel %vm1753, %v1102, 0
        %v2133 = vsel %vm1753, %v1103, 0
        %v2136 = vsel %vm1753, %v1104, 0
        %2138 = vmatpush.msra.mxu0 0.0
        %2139 = vmatpush.msra.mxu0 0.0
        %2140 = vmatpush.msra.mxu0 0.0
        %2141 = vmatpush.msra.mxu0 0.0
        %2142 = vmatpush.msra.mxu0 0.0
        %2143 = vmatpush.msra.mxu0 0.0
        %2144 = vmatpush.msra.mxu0 0.0
        %2145 = vmatpush.msra.mxu0 0.0
        %2146 = vmatpush.msra.mxu0 %v1752
        %2147 = vmatpush.msra.mxu0 %v1751
        %2148 = vmatpush.msra.mxu0 %v1750
        %2149 = vmatpush.msra.mxu0 %v1749
        %2150 = vmatpush.msra.mxu0 %v1748
        %2151 = vmatpush.msra.mxu0 %v1747
        %2152 = vmatpush.msra.mxu0 %v1746
        %2153 = vmatpush.msra.mxu0 %v1745
        %2154 = vmatmul.f32.gmra.mxu0 %v1755
        %v2155 = vpop.f32.mrf.mxu0
        %v2156 = vadd.f32 0.0, %v2155
        %2157 = vmatmul.f32.gmra.mxu0 %v1758
        %v2158 = vpop.f32.mrf.mxu0
        %v2159 = vadd.f32 0.0, %v2158
        %2160 = vmatmul.f32.gmra.mxu0 %v1761
        %v2161 = vpop.f32.mrf.mxu0
        %v2162 = vadd.f32 0.0, %v2161
        %2163 = vmatmul.f32.gmra.mxu0 %v1764
        %v2164 = vpop.f32.mrf.mxu0
        %v2165 = vadd.f32 0.0, %v2164
        %2166 = vmatmul.f32.gmra.mxu0 %v1767
        %v2167 = vpop.f32.mrf.mxu0
        %v2168 = vadd.f32 0.0, %v2167
        %2169 = vmatmul.f32.gmra.mxu0 %v1770
        %v2170 = vpop.f32.mrf.mxu0
        %v2171 = vadd.f32 0.0, %v2170
        %2172 = vmatmul.f32.gmra.mxu0 %v1773
        %v2173 = vpop.f32.mrf.mxu0
        %v2174 = vadd.f32 0.0, %v2173
        %2175 = vmatmul.f32.gmra.mxu0 %v1776
        %v2176 = vpop.f32.mrf.mxu0
        %v2177 = vadd.f32 0.0, %v2176
        %2178 = vmatmul.f32.gmra.mxu0 %v1779
        %v2179 = vpop.f32.mrf.mxu0
        %v2180 = vadd.f32 0.0, %v2179
        %2181 = vmatmul.f32.gmra.mxu0 %v1782
        %v2182 = vpop.f32.mrf.mxu0
        %v2183 = vadd.f32 0.0, %v2182
        %2184 = vmatmul.f32.gmra.mxu0 %v1785
        %v2185 = vpop.f32.mrf.mxu0
        %v2186 = vadd.f32 0.0, %v2185
        %2187 = vmatmul.f32.gmra.mxu0 %v1788
        %v2188 = vpop.f32.mrf.mxu0
        %v2189 = vadd.f32 0.0, %v2188
        %2190 = vmatmul.f32.gmra.mxu0 %v1791
        %v2191 = vpop.f32.mrf.mxu0
        %v2192 = vadd.f32 0.0, %v2191
        %2193 = vmatmul.f32.gmra.mxu0 %v1794
        %v2194 = vpop.f32.mrf.mxu0
        %v2195 = vadd.f32 0.0, %v2194
        %2196 = vmatmul.f32.gmra.mxu0 %v1797
        %v2197 = vpop.f32.mrf.mxu0
        %v2198 = vadd.f32 0.0, %v2197
        %2199 = vmatmul.f32.gmra.mxu0 %v1800
        %v2200 = vpop.f32.mrf.mxu0
        %v2201 = vadd.f32 0.0, %v2200
        %2202 = vmatmul.f32.gmra.mxu0 %v1803
        %v2203 = vpop.f32.mrf.mxu0
        %v2204 = vadd.f32 0.0, %v2203
        %2205 = vmatmul.f32.gmra.mxu0 %v1806
        %v2206 = vpop.f32.mrf.mxu0
        %v2207 = vadd.f32 0.0, %v2206
        %2208 = vmatmul.f32.gmra.mxu0 %v1809
        %v2209 = vpop.f32.mrf.mxu0
        %v2210 = vadd.f32 0.0, %v2209
        %2211 = vmatmul.f32.gmra.mxu0 %v1812
        %v2212 = vpop.f32.mrf.mxu0
        %v2213 = vadd.f32 0.0, %v2212
        %2214 = vmatmul.f32.gmra.mxu0 %v1815
        %v2215 = vpop.f32.mrf.mxu0
        %v2216 = vadd.f32 0.0, %v2215
        %2217 = vmatmul.f32.gmra.mxu0 %v1818
        %v2218 = vpop.f32.mrf.mxu0
        %v2219 = vadd.f32 0.0, %v2218
        %2220 = vmatmul.f32.gmra.mxu0 %v1821
        %v2221 = vpop.f32.mrf.mxu0
        %v2222 = vadd.f32 0.0, %v2221
        %2223 = vmatmul.f32.gmra.mxu0 %v1824
        %v2224 = vpop.f32.mrf.mxu0
        %v2225 = vadd.f32 0.0, %v2224
        %2226 = vmatmul.f32.gmra.mxu0 %v1827
        %v2227 = vpop.f32.mrf.mxu0
        %v2228 = vadd.f32 0.0, %v2227
        %2229 = vmatmul.f32.gmra.mxu0 %v1830
        %v2230 = vpop.f32.mrf.mxu0
        %v2231 = vadd.f32 0.0, %v2230
        %2232 = vmatmul.f32.gmra.mxu0 %v1833
        %v2233 = vpop.f32.mrf.mxu0
        %v2234 = vadd.f32 0.0, %v2233
        %2235 = vmatmul.f32.gmra.mxu0 %v1836
        %v2236 = vpop.f32.mrf.mxu0
        %v2237 = vadd.f32 0.0, %v2236
        %2238 = vmatmul.f32.gmra.mxu0 %v1839
        %v2239 = vpop.f32.mrf.mxu0
        %v2240 = vadd.f32 0.0, %v2239
        %2241 = vmatmul.f32.gmra.mxu0 %v1842
        %v2242 = vpop.f32.mrf.mxu0
        %v2243 = vadd.f32 0.0, %v2242
        %2244 = vmatmul.f32.gmra.mxu0 %v1845
        %v2245 = vpop.f32.mrf.mxu0
        %v2246 = vadd.f32 0.0, %v2245
        %2247 = vmatmul.f32.gmra.mxu0 %v1848
        %v2248 = vpop.f32.mrf.mxu0
        %v2249 = vadd.f32 0.0, %v2248
        %2250 = vmatmul.f32.gmra.mxu0 %v1851
        %v2251 = vpop.f32.mrf.mxu0
        %v2252 = vadd.f32 0.0, %v2251
        %2253 = vmatmul.f32.gmra.mxu0 %v1854
        %v2254 = vpop.f32.mrf.mxu0
        %v2255 = vadd.f32 0.0, %v2254
        %2256 = vmatmul.f32.gmra.mxu0 %v1857
        %v2257 = vpop.f32.mrf.mxu0
        %v2258 = vadd.f32 0.0, %v2257
        %2259 = vmatmul.f32.gmra.mxu0 %v1860
        %v2260 = vpop.f32.mrf.mxu0
        %v2261 = vadd.f32 0.0, %v2260
        %2262 = vmatmul.f32.gmra.mxu0 %v1863
        %v2263 = vpop.f32.mrf.mxu0
        %v2264 = vadd.f32 0.0, %v2263
        %2265 = vmatmul.f32.gmra.mxu0 %v1866
        %v2266 = vpop.f32.mrf.mxu0
        %v2267 = vadd.f32 0.0, %v2266
        %2268 = vmatmul.f32.gmra.mxu0 %v1869
        %v2269 = vpop.f32.mrf.mxu0
        %v2270 = vadd.f32 0.0, %v2269
        %2271 = vmatmul.f32.gmra.mxu0 %v1872
        %v2272 = vpop.f32.mrf.mxu0
        %v2273 = vadd.f32 0.0, %v2272
        %2274 = vmatmul.f32.gmra.mxu0 %v1875
        %v2275 = vpop.f32.mrf.mxu0
        %v2276 = vadd.f32 0.0, %v2275
        %2277 = vmatmul.f32.gmra.mxu0 %v1878
        %v2278 = vpop.f32.mrf.mxu0
        %v2279 = vadd.f32 0.0, %v2278
        %2280 = vmatmul.f32.gmra.mxu0 %v1881
        %v2281 = vpop.f32.mrf.mxu0
        %v2282 = vadd.f32 0.0, %v2281
        %2283 = vmatmul.f32.gmra.mxu0 %v1884
        %v2284 = vpop.f32.mrf.mxu0
        %v2285 = vadd.f32 0.0, %v2284
        %2286 = vmatmul.f32.gmra.mxu0 %v1887
        %v2287 = vpop.f32.mrf.mxu0
        %v2288 = vadd.f32 0.0, %v2287
        %2289 = vmatmul.f32.gmra.mxu0 %v1890
        %v2290 = vpop.f32.mrf.mxu0
        %v2291 = vadd.f32 0.0, %v2290
        %2292 = vmatmul.f32.gmra.mxu0 %v1893
        %v2293 = vpop.f32.mrf.mxu0
        %v2294 = vadd.f32 0.0, %v2293
        %2295 = vmatmul.f32.gmra.mxu0 %v1896
        %v2296 = vpop.f32.mrf.mxu0
        %v2297 = vadd.f32 0.0, %v2296
        %2298 = vmatmul.f32.gmra.mxu0 %v1899
        %v2299 = vpop.f32.mrf.mxu0
        %v2300 = vadd.f32 0.0, %v2299
        %2301 = vmatmul.f32.gmra.mxu0 %v1902
        %v2302 = vpop.f32.mrf.mxu0
        %v2303 = vadd.f32 0.0, %v2302
        %2304 = vmatmul.f32.gmra.mxu0 %v1905
        %v2305 = vpop.f32.mrf.mxu0
        %v2306 = vadd.f32 0.0, %v2305
        %2307 = vmatmul.f32.gmra.mxu0 %v1908
        %v2308 = vpop.f32.mrf.mxu0
        %v2309 = vadd.f32 0.0, %v2308
        %2310 = vmatmul.f32.gmra.mxu0 %v1911
        %v2311 = vpop.f32.mrf.mxu0
        %v2312 = vadd.f32 0.0, %v2311
        %2313 = vmatmul.f32.gmra.mxu0 %v1914
        %v2314 = vpop.f32.mrf.mxu0
        %v2315 = vadd.f32 0.0, %v2314
        %2316 = vmatmul.f32.gmra.mxu0 %v1917
        %v2317 = vpop.f32.mrf.mxu0
        %v2318 = vadd.f32 0.0, %v2317
        %2319 = vmatmul.f32.gmra.mxu0 %v1920
        %v2320 = vpop.f32.mrf.mxu0
        %v2321 = vadd.f32 0.0, %v2320
        %2322 = vmatmul.f32.gmra.mxu0 %v1923
        %v2323 = vpop.f32.mrf.mxu0
        %v2324 = vadd.f32 0.0, %v2323
        %2325 = vmatmul.f32.gmra.mxu0 %v1926
        %v2326 = vpop.f32.mrf.mxu0
        %v2327 = vadd.f32 0.0, %v2326
        %2328 = vmatmul.f32.gmra.mxu0 %v1929
        %v2329 = vpop.f32.mrf.mxu0
        %v2330 = vadd.f32 0.0, %v2329
        %2331 = vmatmul.f32.gmra.mxu0 %v1932
        %v2332 = vpop.f32.mrf.mxu0
        %v2333 = vadd.f32 0.0, %v2332
        %2334 = vmatmul.f32.gmra.mxu0 %v1935
        %v2335 = vpop.f32.mrf.mxu0
        %v2336 = vadd.f32 0.0, %v2335
        %2337 = vmatmul.f32.gmra.mxu0 %v1938
        %v2338 = vpop.f32.mrf.mxu0
        %v2339 = vadd.f32 0.0, %v2338
        %2340 = vmatmul.f32.gmra.mxu0 %v1941
        %v2341 = vpop.f32.mrf.mxu0
        %v2342 = vadd.f32 0.0, %v2341
        %2343 = vmatmul.f32.gmra.mxu0 %v1944
        %v2344 = vpop.f32.mrf.mxu0
        %v2345 = vadd.f32 0.0, %v2344
        %2346 = vmatmul.f32.gmra.mxu0 %v1947
        %v2347 = vpop.f32.mrf.mxu0
        %v2348 = vadd.f32 0.0, %v2347
        %2349 = vmatmul.f32.gmra.mxu0 %v1950
        %v2350 = vpop.f32.mrf.mxu0
        %v2351 = vadd.f32 0.0, %v2350
        %2352 = vmatmul.f32.gmra.mxu0 %v1953
        %v2353 = vpop.f32.mrf.mxu0
        %v2354 = vadd.f32 0.0, %v2353
        %2355 = vmatmul.f32.gmra.mxu0 %v1956
        %v2356 = vpop.f32.mrf.mxu0
        %v2357 = vadd.f32 0.0, %v2356
        %2358 = vmatmul.f32.gmra.mxu0 %v1959
        %v2359 = vpop.f32.mrf.mxu0
        %v2360 = vadd.f32 0.0, %v2359
        %2361 = vmatmul.f32.gmra.mxu0 %v1962
        %v2362 = vpop.f32.mrf.mxu0
        %v2363 = vadd.f32 0.0, %v2362
        %2364 = vmatmul.f32.gmra.mxu0 %v1965
        %v2365 = vpop.f32.mrf.mxu0
        %v2366 = vadd.f32 0.0, %v2365
        %2367 = vmatmul.f32.gmra.mxu0 %v1968
        %v2368 = vpop.f32.mrf.mxu0
        %v2369 = vadd.f32 0.0, %v2368
        %2370 = vmatmul.f32.gmra.mxu0 %v1971
        %v2371 = vpop.f32.mrf.mxu0
        %v2372 = vadd.f32 0.0, %v2371
        %2373 = vmatmul.f32.gmra.mxu0 %v1974
        %v2374 = vpop.f32.mrf.mxu0
        %v2375 = vadd.f32 0.0, %v2374
        %2376 = vmatmul.f32.gmra.mxu0 %v1977
        %v2377 = vpop.f32.mrf.mxu0
        %v2378 = vadd.f32 0.0, %v2377
        %2379 = vmatmul.f32.gmra.mxu0 %v1980
        %v2380 = vpop.f32.mrf.mxu0
        %v2381 = vadd.f32 0.0, %v2380
        %2382 = vmatmul.f32.gmra.mxu0 %v1983
        %v2383 = vpop.f32.mrf.mxu0
        %v2384 = vadd.f32 0.0, %v2383
        %2385 = vmatmul.f32.gmra.mxu0 %v1986
        %v2386 = vpop.f32.mrf.mxu0
        %v2387 = vadd.f32 0.0, %v2386
        %2388 = vmatmul.f32.gmra.mxu0 %v1989
        %v2389 = vpop.f32.mrf.mxu0
        %v2390 = vadd.f32 0.0, %v2389
        %2391 = vmatmul.f32.gmra.mxu0 %v1992
        %v2392 = vpop.f32.mrf.mxu0
        %v2393 = vadd.f32 0.0, %v2392
        %2394 = vmatmul.f32.gmra.mxu0 %v1995
        %v2395 = vpop.f32.mrf.mxu0
        %v2396 = vadd.f32 0.0, %v2395
        %2397 = vmatmul.f32.gmra.mxu0 %v1998
        %v2398 = vpop.f32.mrf.mxu0
        %v2399 = vadd.f32 0.0, %v2398
        %2400 = vmatmul.f32.gmra.mxu0 %v2001
        %v2401 = vpop.f32.mrf.mxu0
        %v2402 = vadd.f32 0.0, %v2401
        %2403 = vmatmul.f32.gmra.mxu0 %v2004
        %v2404 = vpop.f32.mrf.mxu0
        %v2405 = vadd.f32 0.0, %v2404
        %2406 = vmatmul.f32.gmra.mxu0 %v2007
        %v2407 = vpop.f32.mrf.mxu0
        %v2408 = vadd.f32 0.0, %v2407
        %2409 = vmatmul.f32.gmra.mxu0 %v2010
        %v2410 = vpop.f32.mrf.mxu0
        %v2411 = vadd.f32 0.0, %v2410
        %2412 = vmatmul.f32.gmra.mxu0 %v2013
        %v2413 = vpop.f32.mrf.mxu0
        %v2414 = vadd.f32 0.0, %v2413
        %2415 = vmatmul.f32.gmra.mxu0 %v2016
        %v2416 = vpop.f32.mrf.mxu0
        %v2417 = vadd.f32 0.0, %v2416
        %2418 = vmatmul.f32.gmra.mxu0 %v2019
        %v2419 = vpop.f32.mrf.mxu0
        %v2420 = vadd.f32 0.0, %v2419
        %2421 = vmatmul.f32.gmra.mxu0 %v2022
        %v2422 = vpop.f32.mrf.mxu0
        %v2423 = vadd.f32 0.0, %v2422
        %2424 = vmatmul.f32.gmra.mxu0 %v2025
        %v2425 = vpop.f32.mrf.mxu0
        %v2426 = vadd.f32 0.0, %v2425
        %2427 = vmatmul.f32.gmra.mxu0 %v2028
        %v2428 = vpop.f32.mrf.mxu0
        %v2429 = vadd.f32 0.0, %v2428
        %2430 = vmatmul.f32.gmra.mxu0 %v2031
        %v2431 = vpop.f32.mrf.mxu0
        %v2432 = vadd.f32 0.0, %v2431
        %2433 = vmatmul.f32.gmra.mxu0 %v2034
        %v2434 = vpop.f32.mrf.mxu0
        %v2435 = vadd.f32 0.0, %v2434
        %2436 = vmatmul.f32.gmra.mxu0 %v2037
        %v2437 = vpop.f32.mrf.mxu0
        %v2438 = vadd.f32 0.0, %v2437
        %2439 = vmatmul.f32.gmra.mxu0 %v2040
        %v2440 = vpop.f32.mrf.mxu0
        %v2441 = vadd.f32 0.0, %v2440
        %2442 = vmatmul.f32.gmra.mxu0 %v2043
        %v2443 = vpop.f32.mrf.mxu0
        %v2444 = vadd.f32 0.0, %v2443
        %2445 = vmatmul.f32.gmra.mxu0 %v2046
        %v2446 = vpop.f32.mrf.mxu0
        %v2447 = vadd.f32 0.0, %v2446
        %2448 = vmatmul.f32.gmra.mxu0 %v2049
        %v2449 = vpop.f32.mrf.mxu0
        %v2450 = vadd.f32 0.0, %v2449
        %2451 = vmatmul.f32.gmra.mxu0 %v2052
        %v2452 = vpop.f32.mrf.mxu0
        %v2453 = vadd.f32 0.0, %v2452
        %2454 = vmatmul.f32.gmra.mxu0 %v2055
        %v2455 = vpop.f32.mrf.mxu0
        %v2456 = vadd.f32 0.0, %v2455
        %2457 = vmatmul.f32.gmra.mxu0 %v2058
        %v2458 = vpop.f32.mrf.mxu0
        %v2459 = vadd.f32 0.0, %v2458
        %2460 = vmatmul.f32.gmra.mxu0 %v2061
        %v2461 = vpop.f32.mrf.mxu0
        %v2462 = vadd.f32 0.0, %v2461
        %2463 = vmatmul.f32.gmra.mxu0 %v2064
        %v2464 = vpop.f32.mrf.mxu0
        %v2465 = vadd.f32 0.0, %v2464
        %2466 = vmatmul.f32.gmra.mxu0 %v2067
        %v2467 = vpop.f32.mrf.mxu0
        %v2468 = vadd.f32 0.0, %v2467
        %2469 = vmatmul.f32.gmra.mxu0 %v2070
        %v2470 = vpop.f32.mrf.mxu0
        %v2471 = vadd.f32 0.0, %v2470
        %2472 = vmatmul.f32.gmra.mxu0 %v2073
        %v2473 = vpop.f32.mrf.mxu0
        %v2474 = vadd.f32 0.0, %v2473
        %2475 = vmatmul.f32.gmra.mxu0 %v2076
        %v2476 = vpop.f32.mrf.mxu0
        %v2477 = vadd.f32 0.0, %v2476
        %2478 = vmatmul.f32.gmra.mxu0 %v2079
        %v2479 = vpop.f32.mrf.mxu0
        %v2480 = vadd.f32 0.0, %v2479
        %2481 = vmatmul.f32.gmra.mxu0 %v2082
        %v2482 = vpop.f32.mrf.mxu0
        %v2483 = vadd.f32 0.0, %v2482
        %2484 = vmatmul.f32.gmra.mxu0 %v2085
        %v2485 = vpop.f32.mrf.mxu0
        %v2486 = vadd.f32 0.0, %v2485
        %2487 = vmatmul.f32.gmra.mxu0 %v2088
        %v2488 = vpop.f32.mrf.mxu0
        %v2489 = vadd.f32 0.0, %v2488
        %2490 = vmatmul.f32.gmra.mxu0 %v2091
        %v2491 = vpop.f32.mrf.mxu0
        %v2492 = vadd.f32 0.0, %v2491
        %2493 = vmatmul.f32.gmra.mxu0 %v2094
        %v2494 = vpop.f32.mrf.mxu0
        %v2495 = vadd.f32 0.0, %v2494
        %2496 = vmatmul.f32.gmra.mxu0 %v2097
        %v2497 = vpop.f32.mrf.mxu0
        %v2498 = vadd.f32 0.0, %v2497
        %2499 = vmatmul.f32.gmra.mxu0 %v2100
        %v2500 = vpop.f32.mrf.mxu0
        %v2501 = vadd.f32 0.0, %v2500
        %2502 = vmatmul.f32.gmra.mxu0 %v2103
        %v2503 = vpop.f32.mrf.mxu0
        %v2504 = vadd.f32 0.0, %v2503
        %2505 = vmatmul.f32.gmra.mxu0 %v2106
        %v2506 = vpop.f32.mrf.mxu0
        %v2507 = vadd.f32 0.0, %v2506
        %2508 = vmatmul.f32.gmra.mxu0 %v2109
        %v2509 = vpop.f32.mrf.mxu0
        %v2510 = vadd.f32 0.0, %v2509
        %2511 = vmatmul.f32.gmra.mxu0 %v2112
        %v2512 = vpop.f32.mrf.mxu0
        %v2513 = vadd.f32 0.0, %v2512
        %2514 = vmatmul.f32.gmra.mxu0 %v2115
        %v2515 = vpop.f32.mrf.mxu0
        %v2516 = vadd.f32 0.0, %v2515
        %2517 = vmatmul.f32.gmra.mxu0 %v2118
        %v2518 = vpop.f32.mrf.mxu0
        %v2519 = vadd.f32 0.0, %v2518
        %2520 = vmatmul.f32.gmra.mxu0 %v2121
        %v2521 = vpop.f32.mrf.mxu0
        %v2522 = vadd.f32 0.0, %v2521
        %2523 = vmatmul.f32.gmra.mxu0 %v2124
        %v2524 = vpop.f32.mrf.mxu0
        %v2525 = vadd.f32 0.0, %v2524
        %2526 = vmatmul.f32.gmra.mxu0 %v2127
        %v2527 = vpop.f32.mrf.mxu0
        %v2528 = vadd.f32 0.0, %v2527
        %2529 = vmatmul.f32.gmra.mxu0 %v2130
        %v2530 = vpop.f32.mrf.mxu0
        %v2531 = vadd.f32 0.0, %v2530
        %2532 = vmatmul.f32.gmra.mxu0 %v2133
        %v2533 = vpop.f32.mrf.mxu0
        %v2534 = vadd.f32 0.0, %v2533
        %2535 = vmatmul.f32.gmra.mxu0 %v2136
        %v2536 = vpop.f32.mrf.mxu0
        %v2537 = vadd.f32 0.0, %v2536
        %2538 = vdwg.mxu0
        %v2539 = vld [vmem:[%s2] sm:$0xff]
        %v2540 = vld [vmem:[%s2 + $0x8] sm:$0xff]
        %v2541 = vld [vmem:[%s2 + $0x10] sm:$0xff]
        %v2542 = vld [vmem:[%s2 + $0x18] sm:$0xff]
        %v2543 = vld [vmem:[%s2 + $0x20] sm:$0xff]
        %v2544 = vld [vmem:[%s2 + $0x28] sm:$0xff]
        %v2545 = vld [vmem:[%s2 + $0x30] sm:$0xff]
        %v2546 = vld [vmem:[%s2 + $0x38] sm:$0xff]
        %v2548 = vsel %vm1753, %v1617, 0
        %v2551 = vsel %vm1753, %v1618, 0
        %v2554 = vsel %vm1753, %v1619, 0
        %v2557 = vsel %vm1753, %v1620, 0
        %v2560 = vsel %vm1753, %v1621, 0
        %v2563 = vsel %vm1753, %v1622, 0
        %v2566 = vsel %vm1753, %v1623, 0
        %v2569 = vsel %vm1753, %v1624, 0
        %v2572 = vsel %vm1753, %v1625, 0
        %v2575 = vsel %vm1753, %v1626, 0
        %v2578 = vsel %vm1753, %v1627, 0
        %v2581 = vsel %vm1753, %v1628, 0
        %v2584 = vsel %vm1753, %v1629, 0
        %v2587 = vsel %vm1753, %v1630, 0
        %v2590 = vsel %vm1753, %v1631, 0
        %v2593 = vsel %vm1753, %v1632, 0
        %v2596 = vsel %vm1753, %v1633, 0
        %v2599 = vsel %vm1753, %v1634, 0
        %v2602 = vsel %vm1753, %v1635, 0
        %v2605 = vsel %vm1753, %v1636, 0
        %v2608 = vsel %vm1753, %v1637, 0
        %v2611 = vsel %vm1753, %v1638, 0
        %v2614 = vsel %vm1753, %v1639, 0
        %v2617 = vsel %vm1753, %v1640, 0
        %v2620 = vsel %vm1753, %v1641, 0
        %v2623 = vsel %vm1753, %v1642, 0
        %v2626 = vsel %vm1753, %v1643, 0
        %v2629 = vsel %vm1753, %v1644, 0
        %v2632 = vsel %vm1753, %v1645, 0
        %v2635 = vsel %vm1753, %v1646, 0
        %v2638 = vsel %vm1753, %v1647, 0
        %v2641 = vsel %vm1753, %v1648, 0
        %v2644 = vsel %vm1753, %v1649, 0
        %v2647 = vsel %vm1753, %v1650, 0
        %v2650 = vsel %vm1753, %v1651, 0
        %v2653 = vsel %vm1753, %v1652, 0
        %v2656 = vsel %vm1753, %v1653, 0
        %v2659 = vsel %vm1753, %v1654, 0
        %v2662 = vsel %vm1753, %v1655, 0
        %v2665 = vsel %vm1753, %v1656, 0
        %v2668 = vsel %vm1753, %v1657, 0
        %v2671 = vsel %vm1753, %v1658, 0
        %v2674 = vsel %vm1753, %v1659, 0
        %v2677 = vsel %vm1753, %v1660, 0
        %v2680 = vsel %vm1753, %v1661, 0
        %v2683 = vsel %vm1753, %v1662, 0
        %v2686 = vsel %vm1753, %v1663, 0
        %v2689 = vsel %vm1753, %v1664, 0
        %v2692 = vsel %vm1753, %v1665, 0
        %v2695 = vsel %vm1753, %v1666, 0
        %v2698 = vsel %vm1753, %v1667, 0
        %v2701 = vsel %vm1753, %v1668, 0
        %v2704 = vsel %vm1753, %v1669, 0
        %v2707 = vsel %vm1753, %v1670, 0
        %v2710 = vsel %vm1753, %v1671, 0
        %v2713 = vsel %vm1753, %v1672, 0
        %v2716 = vsel %vm1753, %v1673, 0
        %v2719 = vsel %vm1753, %v1674, 0
        %v2722 = vsel %vm1753, %v1675, 0
        %v2725 = vsel %vm1753, %v1676, 0
        %v2728 = vsel %vm1753, %v1677, 0
        %v2731 = vsel %vm1753, %v1678, 0
        %v2734 = vsel %vm1753, %v1679, 0
        %v2737 = vsel %vm1753, %v1680, 0
        %v2740 = vsel %vm1753, %v1681, 0
        %v2743 = vsel %vm1753, %v1682, 0
        %v2746 = vsel %vm1753, %v1683, 0
        %v2749 = vsel %vm1753, %v1684, 0
        %v2752 = vsel %vm1753, %v1685, 0
        %v2755 = vsel %vm1753, %v1686, 0
        %v2758 = vsel %vm1753, %v1687, 0
        %v2761 = vsel %vm1753, %v1688, 0
        %v2764 = vsel %vm1753, %v1689, 0
        %v2767 = vsel %vm1753, %v1690, 0
        %v2770 = vsel %vm1753, %v1691, 0
        %v2773 = vsel %vm1753, %v1692, 0
        %v2776 = vsel %vm1753, %v1693, 0
        %v2779 = vsel %vm1753, %v1694, 0
        %v2782 = vsel %vm1753, %v1695, 0
        %v2785 = vsel %vm1753, %v1696, 0
        %v2788 = vsel %vm1753, %v1697, 0
        %v2791 = vsel %vm1753, %v1698, 0
        %v2794 = vsel %vm1753, %v1699, 0
        %v2797 = vsel %vm1753, %v1700, 0
        %v2800 = vsel %vm1753, %v1701, 0
        %v2803 = vsel %vm1753, %v1702, 0
        %v2806 = vsel %vm1753, %v1703, 0
        %v2809 = vsel %vm1753, %v1704, 0
        %v2812 = vsel %vm1753, %v1705, 0
        %v2815 = vsel %vm1753, %v1706, 0
        %v2818 = vsel %vm1753, %v1707, 0
        %v2821 = vsel %vm1753, %v1708, 0
        %v2824 = vsel %vm1753, %v1709, 0
        %v2827 = vsel %vm1753, %v1710, 0
        %v2830 = vsel %vm1753, %v1711, 0
        %v2833 = vsel %vm1753, %v1712, 0
        %v2836 = vsel %vm1753, %v1713, 0
        %v2839 = vsel %vm1753, %v1714, 0
        %v2842 = vsel %vm1753, %v1715, 0
        %v2845 = vsel %vm1753, %v1716, 0
        %v2848 = vsel %vm1753, %v1717, 0
        %v2851 = vsel %vm1753, %v1718, 0
        %v2854 = vsel %vm1753, %v1719, 0
        %v2857 = vsel %vm1753, %v1720, 0
        %v2860 = vsel %vm1753, %v1721, 0
        %v2863 = vsel %vm1753, %v1722, 0
        %v2866 = vsel %vm1753, %v1723, 0
        %v2869 = vsel %vm1753, %v1724, 0
        %v2872 = vsel %vm1753, %v1725, 0
        %v2875 = vsel %vm1753, %v1726, 0
        %v2878 = vsel %vm1753, %v1727, 0
        %v2881 = vsel %vm1753, %v1728, 0
        %v2884 = vsel %vm1753, %v1729, 0
        %v2887 = vsel %vm1753, %v1730, 0
        %v2890 = vsel %vm1753, %v1731, 0
        %v2893 = vsel %vm1753, %v1732, 0
        %v2896 = vsel %vm1753, %v1733, 0
        %v2899 = vsel %vm1753, %v1734, 0
        %v2902 = vsel %vm1753, %v1735, 0
        %v2905 = vsel %vm1753, %v1736, 0
        %v2908 = vsel %vm1753, %v1737, 0
        %v2911 = vsel %vm1753, %v1738, 0
        %v2914 = vsel %vm1753, %v1739, 0
        %v2917 = vsel %vm1753, %v1740, 0
        %v2920 = vsel %vm1753, %v1741, 0
        %v2923 = vsel %vm1753, %v1742, 0
        %v2926 = vsel %vm1753, %v1743, 0
        %v2929 = vsel %vm1753, %v1744, 0
        %2931 = vmatpush.msra.mxu0 0.0
        %2932 = vmatpush.msra.mxu0 0.0
        %2933 = vmatpush.msra.mxu0 0.0
        %2934 = vmatpush.msra.mxu0 0.0
        %2935 = vmatpush.msra.mxu0 0.0
        %2936 = vmatpush.msra.mxu0 0.0
        %2937 = vmatpush.msra.mxu0 0.0
        %2938 = vmatpush.msra.mxu0 0.0
        %2939 = vmatpush.msra.mxu0 %v2546
        %2940 = vmatpush.msra.mxu0 %v2545
        %2941 = vmatpush.msra.mxu0 %v2544
        %2942 = vmatpush.msra.mxu0 %v2543
        %2943 = vmatpush.msra.mxu0 %v2542
        %2944 = vmatpush.msra.mxu0 %v2541
        %2945 = vmatpush.msra.mxu0 %v2540
        %2946 = vmatpush.msra.mxu0 %v2539
        %2947 = vmatmul.f32.gmra.mxu0 %v2548
        %v2948 = vpop.f32.mrf.mxu0
        %v2949 = vadd.f32 0.0, %v2948
        %2950 = vmatmul.f32.gmra.mxu0 %v2551
        %v2951 = vpop.f32.mrf.mxu0
        %v2952 = vadd.f32 0.0, %v2951
        %2953 = vmatmul.f32.gmra.mxu0 %v2554
        %v2954 = vpop.f32.mrf.mxu0
        %v2955 = vadd.f32 0.0, %v2954
        %2956 = vmatmul.f32.gmra.mxu0 %v2557
        %v2957 = vpop.f32.mrf.mxu0
        %v2958 = vadd.f32 0.0, %v2957
        %2959 = vmatmul.f32.gmra.mxu0 %v2560
        %v2960 = vpop.f32.mrf.mxu0
        %v2961 = vadd.f32 0.0, %v2960
        %2962 = vmatmul.f32.gmra.mxu0 %v2563
        %v2963 = vpop.f32.mrf.mxu0
        %v2964 = vadd.f32 0.0, %v2963
        %2965 = vmatmul.f32.gmra.mxu0 %v2566
        %v2966 = vpop.f32.mrf.mxu0
        %v2967 = vadd.f32 0.0, %v2966
        %2968 = vmatmul.f32.gmra.mxu0 %v2569
        %v2969 = vpop.f32.mrf.mxu0
        %v2970 = vadd.f32 0.0, %v2969
        %2971 = vmatmul.f32.gmra.mxu0 %v2572
        %v2972 = vpop.f32.mrf.mxu0
        %v2973 = vadd.f32 0.0, %v2972
        %2974 = vmatmul.f32.gmra.mxu0 %v2575
        %v2975 = vpop.f32.mrf.mxu0
        %v2976 = vadd.f32 0.0, %v2975
        %2977 = vmatmul.f32.gmra.mxu0 %v2578
        %v2978 = vpop.f32.mrf.mxu0
        %v2979 = vadd.f32 0.0, %v2978
        %2980 = vmatmul.f32.gmra.mxu0 %v2581
        %v2981 = vpop.f32.mrf.mxu0
        %v2982 = vadd.f32 0.0, %v2981
        %2983 = vmatmul.f32.gmra.mxu0 %v2584
        %v2984 = vpop.f32.mrf.mxu0
        %v2985 = vadd.f32 0.0, %v2984
        %2986 = vmatmul.f32.gmra.mxu0 %v2587
        %v2987 = vpop.f32.mrf.mxu0
        %v2988 = vadd.f32 0.0, %v2987
        %2989 = vmatmul.f32.gmra.mxu0 %v2590
        %v2990 = vpop.f32.mrf.mxu0
        %v2991 = vadd.f32 0.0, %v2990
        %2992 = vmatmul.f32.gmra.mxu0 %v2593
        %v2993 = vpop.f32.mrf.mxu0
        %v2994 = vadd.f32 0.0, %v2993
        %2995 = vmatmul.f32.gmra.mxu0 %v2596
        %v2996 = vpop.f32.mrf.mxu0
        %v2997 = vadd.f32 0.0, %v2996
        %2998 = vmatmul.f32.gmra.mxu0 %v2599
        %v2999 = vpop.f32.mrf.mxu0
        %v3000 = vadd.f32 0.0, %v2999
        %3001 = vmatmul.f32.gmra.mxu0 %v2602
        %v3002 = vpop.f32.mrf.mxu0
        %v3003 = vadd.f32 0.0, %v3002
        %3004 = vmatmul.f32.gmra.mxu0 %v2605
        %v3005 = vpop.f32.mrf.mxu0
        %v3006 = vadd.f32 0.0, %v3005
        %3007 = vmatmul.f32.gmra.mxu0 %v2608
        %v3008 = vpop.f32.mrf.mxu0
        %v3009 = vadd.f32 0.0, %v3008
        %3010 = vmatmul.f32.gmra.mxu0 %v2611
        %v3011 = vpop.f32.mrf.mxu0
        %v3012 = vadd.f32 0.0, %v3011
        %3013 = vmatmul.f32.gmra.mxu0 %v2614
        %v3014 = vpop.f32.mrf.mxu0
        %v3015 = vadd.f32 0.0, %v3014
        %3016 = vmatmul.f32.gmra.mxu0 %v2617
        %v3017 = vpop.f32.mrf.mxu0
        %v3018 = vadd.f32 0.0, %v3017
        %3019 = vmatmul.f32.gmra.mxu0 %v2620
        %v3020 = vpop.f32.mrf.mxu0
        %v3021 = vadd.f32 0.0, %v3020
        %3022 = vmatmul.f32.gmra.mxu0 %v2623
        %v3023 = vpop.f32.mrf.mxu0
        %v3024 = vadd.f32 0.0, %v3023
        %3025 = vmatmul.f32.gmra.mxu0 %v2626
        %v3026 = vpop.f32.mrf.mxu0
        %v3027 = vadd.f32 0.0, %v3026
        %3028 = vmatmul.f32.gmra.mxu0 %v2629
        %v3029 = vpop.f32.mrf.mxu0
        %v3030 = vadd.f32 0.0, %v3029
        %3031 = vmatmul.f32.gmra.mxu0 %v2632
        %v3032 = vpop.f32.mrf.mxu0
        %v3033 = vadd.f32 0.0, %v3032
        %3034 = vmatmul.f32.gmra.mxu0 %v2635
        %v3035 = vpop.f32.mrf.mxu0
        %v3036 = vadd.f32 0.0, %v3035
        %3037 = vmatmul.f32.gmra.mxu0 %v2638
        %v3038 = vpop.f32.mrf.mxu0
        %v3039 = vadd.f32 0.0, %v3038
        %3040 = vmatmul.f32.gmra.mxu0 %v2641
        %v3041 = vpop.f32.mrf.mxu0
        %v3042 = vadd.f32 0.0, %v3041
        %3043 = vmatmul.f32.gmra.mxu0 %v2644
        %v3044 = vpop.f32.mrf.mxu0
        %v3045 = vadd.f32 0.0, %v3044
        %3046 = vmatmul.f32.gmra.mxu0 %v2647
        %v3047 = vpop.f32.mrf.mxu0
        %v3048 = vadd.f32 0.0, %v3047
        %3049 = vmatmul.f32.gmra.mxu0 %v2650
        %v3050 = vpop.f32.mrf.mxu0
        %v3051 = vadd.f32 0.0, %v3050
        %3052 = vmatmul.f32.gmra.mxu0 %v2653
        %v3053 = vpop.f32.mrf.mxu0
        %v3054 = vadd.f32 0.0, %v3053
        %3055 = vmatmul.f32.gmra.mxu0 %v2656
        %v3056 = vpop.f32.mrf.mxu0
        %v3057 = vadd.f32 0.0, %v3056
        %3058 = vmatmul.f32.gmra.mxu0 %v2659
        %v3059 = vpop.f32.mrf.mxu0
        %v3060 = vadd.f32 0.0, %v3059
        %3061 = vmatmul.f32.gmra.mxu0 %v2662
        %v3062 = vpop.f32.mrf.mxu0
        %v3063 = vadd.f32 0.0, %v3062
        %3064 = vmatmul.f32.gmra.mxu0 %v2665
        %v3065 = vpop.f32.mrf.mxu0
        %v3066 = vadd.f32 0.0, %v3065
        %3067 = vmatmul.f32.gmra.mxu0 %v2668
        %v3068 = vpop.f32.mrf.mxu0
        %v3069 = vadd.f32 0.0, %v3068
        %3070 = vmatmul.f32.gmra.mxu0 %v2671
        %v3071 = vpop.f32.mrf.mxu0
        %v3072 = vadd.f32 0.0, %v3071
        %3073 = vmatmul.f32.gmra.mxu0 %v2674
        %v3074 = vpop.f32.mrf.mxu0
        %v3075 = vadd.f32 0.0, %v3074
        %3076 = vmatmul.f32.gmra.mxu0 %v2677
        %v3077 = vpop.f32.mrf.mxu0
        %v3078 = vadd.f32 0.0, %v3077
        %3079 = vmatmul.f32.gmra.mxu0 %v2680
        %v3080 = vpop.f32.mrf.mxu0
        %v3081 = vadd.f32 0.0, %v3080
        %3082 = vmatmul.f32.gmra.mxu0 %v2683
        %v3083 = vpop.f32.mrf.mxu0
        %v3084 = vadd.f32 0.0, %v3083
        %3085 = vmatmul.f32.gmra.mxu0 %v2686
        %v3086 = vpop.f32.mrf.mxu0
        %v3087 = vadd.f32 0.0, %v3086
        %3088 = vmatmul.f32.gmra.mxu0 %v2689
        %v3089 = vpop.f32.mrf.mxu0
        %v3090 = vadd.f32 0.0, %v3089
        %3091 = vmatmul.f32.gmra.mxu0 %v2692
        %v3092 = vpop.f32.mrf.mxu0
        %v3093 = vadd.f32 0.0, %v3092
        %3094 = vmatmul.f32.gmra.mxu0 %v2695
        %v3095 = vpop.f32.mrf.mxu0
        %v3096 = vadd.f32 0.0, %v3095
        %3097 = vmatmul.f32.gmra.mxu0 %v2698
        %v3098 = vpop.f32.mrf.mxu0
        %v3099 = vadd.f32 0.0, %v3098
        %3100 = vmatmul.f32.gmra.mxu0 %v2701
        %v3101 = vpop.f32.mrf.mxu0
        %v3102 = vadd.f32 0.0, %v3101
        %3103 = vmatmul.f32.gmra.mxu0 %v2704
        %v3104 = vpop.f32.mrf.mxu0
        %v3105 = vadd.f32 0.0, %v3104
        %3106 = vmatmul.f32.gmra.mxu0 %v2707
        %v3107 = vpop.f32.mrf.mxu0
        %v3108 = vadd.f32 0.0, %v3107
        %3109 = vmatmul.f32.gmra.mxu0 %v2710
        %v3110 = vpop.f32.mrf.mxu0
        %v3111 = vadd.f32 0.0, %v3110
        %3112 = vmatmul.f32.gmra.mxu0 %v2713
        %v3113 = vpop.f32.mrf.mxu0
        %v3114 = vadd.f32 0.0, %v3113
        %3115 = vmatmul.f32.gmra.mxu0 %v2716
        %v3116 = vpop.f32.mrf.mxu0
        %v3117 = vadd.f32 0.0, %v3116
        %3118 = vmatmul.f32.gmra.mxu0 %v2719
        %v3119 = vpop.f32.mrf.mxu0
        %v3120 = vadd.f32 0.0, %v3119
        %3121 = vmatmul.f32.gmra.mxu0 %v2722
        %v3122 = vpop.f32.mrf.mxu0
        %v3123 = vadd.f32 0.0, %v3122
        %3124 = vmatmul.f32.gmra.mxu0 %v2725
        %v3125 = vpop.f32.mrf.mxu0
        %v3126 = vadd.f32 0.0, %v3125
        %3127 = vmatmul.f32.gmra.mxu0 %v2728
        %v3128 = vpop.f32.mrf.mxu0
        %v3129 = vadd.f32 0.0, %v3128
        %3130 = vmatmul.f32.gmra.mxu0 %v2731
        %v3131 = vpop.f32.mrf.mxu0
        %v3132 = vadd.f32 0.0, %v3131
        %3133 = vmatmul.f32.gmra.mxu0 %v2734
        %v3134 = vpop.f32.mrf.mxu0
        %v3135 = vadd.f32 0.0, %v3134
        %3136 = vmatmul.f32.gmra.mxu0 %v2737
        %v3137 = vpop.f32.mrf.mxu0
        %v3138 = vadd.f32 0.0, %v3137
        %3139 = vmatmul.f32.gmra.mxu0 %v2740
        %v3140 = vpop.f32.mrf.mxu0
        %v3141 = vadd.f32 0.0, %v3140
        %3142 = vmatmul.f32.gmra.mxu0 %v2743
        %v3143 = vpop.f32.mrf.mxu0
        %v3144 = vadd.f32 0.0, %v3143
        %3145 = vmatmul.f32.gmra.mxu0 %v2746
        %v3146 = vpop.f32.mrf.mxu0
        %v3147 = vadd.f32 0.0, %v3146
        %3148 = vmatmul.f32.gmra.mxu0 %v2749
        %v3149 = vpop.f32.mrf.mxu0
        %v3150 = vadd.f32 0.0, %v3149
        %3151 = vmatmul.f32.gmra.mxu0 %v2752
        %v3152 = vpop.f32.mrf.mxu0
        %v3153 = vadd.f32 0.0, %v3152
        %3154 = vmatmul.f32.gmra.mxu0 %v2755
        %v3155 = vpop.f32.mrf.mxu0
        %v3156 = vadd.f32 0.0, %v3155
        %3157 = vmatmul.f32.gmra.mxu0 %v2758
        %v3158 = vpop.f32.mrf.mxu0
        %v3159 = vadd.f32 0.0, %v3158
        %3160 = vmatmul.f32.gmra.mxu0 %v2761
        %v3161 = vpop.f32.mrf.mxu0
        %v3162 = vadd.f32 0.0, %v3161
        %3163 = vmatmul.f32.gmra.mxu0 %v2764
        %v3164 = vpop.f32.mrf.mxu0
        %v3165 = vadd.f32 0.0, %v3164
        %3166 = vmatmul.f32.gmra.mxu0 %v2767
        %v3167 = vpop.f32.mrf.mxu0
        %v3168 = vadd.f32 0.0, %v3167
        %3169 = vmatmul.f32.gmra.mxu0 %v2770
        %v3170 = vpop.f32.mrf.mxu0
        %v3171 = vadd.f32 0.0, %v3170
        %3172 = vmatmul.f32.gmra.mxu0 %v2773
        %v3173 = vpop.f32.mrf.mxu0
        %v3174 = vadd.f32 0.0, %v3173
        %3175 = vmatmul.f32.gmra.mxu0 %v2776
        %v3176 = vpop.f32.mrf.mxu0
        %v3177 = vadd.f32 0.0, %v3176
        %3178 = vmatmul.f32.gmra.mxu0 %v2779
        %v3179 = vpop.f32.mrf.mxu0
        %v3180 = vadd.f32 0.0, %v3179
        %3181 = vmatmul.f32.gmra.mxu0 %v2782
        %v3182 = vpop.f32.mrf.mxu0
        %v3183 = vadd.f32 0.0, %v3182
        %3184 = vmatmul.f32.gmra.mxu0 %v2785
        %v3185 = vpop.f32.mrf.mxu0
        %v3186 = vadd.f32 0.0, %v3185
        %3187 = vmatmul.f32.gmra.mxu0 %v2788
        %v3188 = vpop.f32.mrf.mxu0
        %v3189 = vadd.f32 0.0, %v3188
        %3190 = vmatmul.f32.gmra.mxu0 %v2791
        %v3191 = vpop.f32.mrf.mxu0
        %v3192 = vadd.f32 0.0, %v3191
        %3193 = vmatmul.f32.gmra.mxu0 %v2794
        %v3194 = vpop.f32.mrf.mxu0
        %v3195 = vadd.f32 0.0, %v3194
        %3196 = vmatmul.f32.gmra.mxu0 %v2797
        %v3197 = vpop.f32.mrf.mxu0
        %v3198 = vadd.f32 0.0, %v3197
        %3199 = vmatmul.f32.gmra.mxu0 %v2800
        %v3200 = vpop.f32.mrf.mxu0
        %v3201 = vadd.f32 0.0, %v3200
        %3202 = vmatmul.f32.gmra.mxu0 %v2803
        %v3203 = vpop.f32.mrf.mxu0
        %v3204 = vadd.f32 0.0, %v3203
        %3205 = vmatmul.f32.gmra.mxu0 %v2806
        %v3206 = vpop.f32.mrf.mxu0
        %v3207 = vadd.f32 0.0, %v3206
        %3208 = vmatmul.f32.gmra.mxu0 %v2809
        %v3209 = vpop.f32.mrf.mxu0
        %v3210 = vadd.f32 0.0, %v3209
        %3211 = vmatmul.f32.gmra.mxu0 %v2812
        %v3212 = vpop.f32.mrf.mxu0
        %v3213 = vadd.f32 0.0, %v3212
        %3214 = vmatmul.f32.gmra.mxu0 %v2815
        %v3215 = vpop.f32.mrf.mxu0
        %v3216 = vadd.f32 0.0, %v3215
        %3217 = vmatmul.f32.gmra.mxu0 %v2818
        %v3218 = vpop.f32.mrf.mxu0
        %v3219 = vadd.f32 0.0, %v3218
        %3220 = vmatmul.f32.gmra.mxu0 %v2821
        %v3221 = vpop.f32.mrf.mxu0
        %v3222 = vadd.f32 0.0, %v3221
        %3223 = vmatmul.f32.gmra.mxu0 %v2824
        %v3224 = vpop.f32.mrf.mxu0
        %v3225 = vadd.f32 0.0, %v3224
        %3226 = vmatmul.f32.gmra.mxu0 %v2827
        %v3227 = vpop.f32.mrf.mxu0
        %v3228 = vadd.f32 0.0, %v3227
        %3229 = vmatmul.f32.gmra.mxu0 %v2830
        %v3230 = vpop.f32.mrf.mxu0
        %v3231 = vadd.f32 0.0, %v3230
        %3232 = vmatmul.f32.gmra.mxu0 %v2833
        %v3233 = vpop.f32.mrf.mxu0
        %v3234 = vadd.f32 0.0, %v3233
        %3235 = vmatmul.f32.gmra.mxu0 %v2836
        %v3236 = vpop.f32.mrf.mxu0
        %v3237 = vadd.f32 0.0, %v3236
        %3238 = vmatmul.f32.gmra.mxu0 %v2839
        %v3239 = vpop.f32.mrf.mxu0
        %v3240 = vadd.f32 0.0, %v3239
        %3241 = vmatmul.f32.gmra.mxu0 %v2842
        %v3242 = vpop.f32.mrf.mxu0
        %v3243 = vadd.f32 0.0, %v3242
        %3244 = vmatmul.f32.gmra.mxu0 %v2845
        %v3245 = vpop.f32.mrf.mxu0
        %v3246 = vadd.f32 0.0, %v3245
        %3247 = vmatmul.f32.gmra.mxu0 %v2848
        %v3248 = vpop.f32.mrf.mxu0
        %v3249 = vadd.f32 0.0, %v3248
        %3250 = vmatmul.f32.gmra.mxu0 %v2851
        %v3251 = vpop.f32.mrf.mxu0
        %v3252 = vadd.f32 0.0, %v3251
        %3253 = vmatmul.f32.gmra.mxu0 %v2854
        %v3254 = vpop.f32.mrf.mxu0
        %v3255 = vadd.f32 0.0, %v3254
        %3256 = vmatmul.f32.gmra.mxu0 %v2857
        %v3257 = vpop.f32.mrf.mxu0
        %v3258 = vadd.f32 0.0, %v3257
        %3259 = vmatmul.f32.gmra.mxu0 %v2860
        %v3260 = vpop.f32.mrf.mxu0
        %v3261 = vadd.f32 0.0, %v3260
        %3262 = vmatmul.f32.gmra.mxu0 %v2863
        %v3263 = vpop.f32.mrf.mxu0
        %v3264 = vadd.f32 0.0, %v3263
        %3265 = vmatmul.f32.gmra.mxu0 %v2866
        %v3266 = vpop.f32.mrf.mxu0
        %v3267 = vadd.f32 0.0, %v3266
        %3268 = vmatmul.f32.gmra.mxu0 %v2869
        %v3269 = vpop.f32.mrf.mxu0
        %v3270 = vadd.f32 0.0, %v3269
        %3271 = vmatmul.f32.gmra.mxu0 %v2872
        %v3272 = vpop.f32.mrf.mxu0
        %v3273 = vadd.f32 0.0, %v3272
        %3274 = vmatmul.f32.gmra.mxu0 %v2875
        %v3275 = vpop.f32.mrf.mxu0
        %v3276 = vadd.f32 0.0, %v3275
        %3277 = vmatmul.f32.gmra.mxu0 %v2878
        %v3278 = vpop.f32.mrf.mxu0
        %v3279 = vadd.f32 0.0, %v3278
        %3280 = vmatmul.f32.gmra.mxu0 %v2881
        %v3281 = vpop.f32.mrf.mxu0
        %v3282 = vadd.f32 0.0, %v3281
        %3283 = vmatmul.f32.gmra.mxu0 %v2884
        %v3284 = vpop.f32.mrf.mxu0
        %v3285 = vadd.f32 0.0, %v3284
        %3286 = vmatmul.f32.gmra.mxu0 %v2887
        %v3287 = vpop.f32.mrf.mxu0
        %v3288 = vadd.f32 0.0, %v3287
        %3289 = vmatmul.f32.gmra.mxu0 %v2890
        %v3290 = vpop.f32.mrf.mxu0
        %v3291 = vadd.f32 0.0, %v3290
        %3292 = vmatmul.f32.gmra.mxu0 %v2893
        %v3293 = vpop.f32.mrf.mxu0
        %v3294 = vadd.f32 0.0, %v3293
        %3295 = vmatmul.f32.gmra.mxu0 %v2896
        %v3296 = vpop.f32.mrf.mxu0
        %v3297 = vadd.f32 0.0, %v3296
        %3298 = vmatmul.f32.gmra.mxu0 %v2899
        %v3299 = vpop.f32.mrf.mxu0
        %v3300 = vadd.f32 0.0, %v3299
        %3301 = vmatmul.f32.gmra.mxu0 %v2902
        %v3302 = vpop.f32.mrf.mxu0
        %v3303 = vadd.f32 0.0, %v3302
        %3304 = vmatmul.f32.gmra.mxu0 %v2905
        %v3305 = vpop.f32.mrf.mxu0
        %v3306 = vadd.f32 0.0, %v3305
        %3307 = vmatmul.f32.gmra.mxu0 %v2908
        %v3308 = vpop.f32.mrf.mxu0
        %v3309 = vadd.f32 0.0, %v3308
        %3310 = vmatmul.f32.gmra.mxu0 %v2911
        %v3311 = vpop.f32.mrf.mxu0
        %v3312 = vadd.f32 0.0, %v3311
        %3313 = vmatmul.f32.gmra.mxu0 %v2914
        %v3314 = vpop.f32.mrf.mxu0
        %v3315 = vadd.f32 0.0, %v3314
        %3316 = vmatmul.f32.gmra.mxu0 %v2917
        %v3317 = vpop.f32.mrf.mxu0
        %v3318 = vadd.f32 0.0, %v3317
        %3319 = vmatmul.f32.gmra.mxu0 %v2920
        %v3320 = vpop.f32.mrf.mxu0
        %v3321 = vadd.f32 0.0, %v3320
        %3322 = vmatmul.f32.gmra.mxu0 %v2923
        %v3323 = vpop.f32.mrf.mxu0
        %v3324 = vadd.f32 0.0, %v3323
        %3325 = vmatmul.f32.gmra.mxu0 %v2926
        %v3326 = vpop.f32.mrf.mxu0
        %v3327 = vadd.f32 0.0, %v3326
        %3328 = vmatmul.f32.gmra.mxu0 %v2929
        %v3329 = vpop.f32.mrf.mxu0
        %v3330 = vadd.f32 0.0, %v3329
        %3331 = vdwg.mxu0
        %v3332 = vmul.f32 %v2156, %v2949
        %v3333 = vmul.f32 %v2159, %v2952
        %v3334 = vmul.f32 %v2162, %v2955
        %v3335 = vmul.f32 %v2165, %v2958
        %v3336 = vmul.f32 %v2168, %v2961
        %v3337 = vmul.f32 %v2171, %v2964
        %v3338 = vmul.f32 %v2174, %v2967
        %v3339 = vmul.f32 %v2177, %v2970
        %v3340 = vmul.f32 %v2180, %v2973
        %v3341 = vmul.f32 %v2183, %v2976
        %v3342 = vmul.f32 %v2186, %v2979
        %v3343 = vmul.f32 %v2189, %v2982
        %v3344 = vmul.f32 %v2192, %v2985
        %v3345 = vmul.f32 %v2195, %v2988
        %v3346 = vmul.f32 %v2198, %v2991
        %v3347 = vmul.f32 %v2201, %v2994
        %v3348 = vmul.f32 %v2204, %v2997
        %v3349 = vmul.f32 %v2207, %v3000
        %v3350 = vmul.f32 %v2210, %v3003
        %v3351 = vmul.f32 %v2213, %v3006
        %v3352 = vmul.f32 %v2216, %v3009
        %v3353 = vmul.f32 %v2219, %v3012
        %v3354 = vmul.f32 %v2222, %v3015
        %v3355 = vmul.f32 %v2225, %v3018
        %v3356 = vmul.f32 %v2228, %v3021
        %v3357 = vmul.f32 %v2231, %v3024
        %v3358 = vmul.f32 %v2234, %v3027
        %v3359 = vmul.f32 %v2237, %v3030
        %v3360 = vmul.f32 %v2240, %v3033
        %v3361 = vmul.f32 %v2243, %v3036
        %v3362 = vmul.f32 %v2246, %v3039
        %v3363 = vmul.f32 %v2249, %v3042
        %v3364 = vmul.f32 %v2252, %v3045
        %v3365 = vmul.f32 %v2255, %v3048
        %v3366 = vmul.f32 %v2258, %v3051
        %v3367 = vmul.f32 %v2261, %v3054
        %v3368 = vmul.f32 %v2264, %v3057
        %v3369 = vmul.f32 %v2267, %v3060
        %v3370 = vmul.f32 %v2270, %v3063
        %v3371 = vmul.f32 %v2273, %v3066
        %v3372 = vmul.f32 %v2276, %v3069
        %v3373 = vmul.f32 %v2279, %v3072
        %v3374 = vmul.f32 %v2282, %v3075
        %v3375 = vmul.f32 %v2285, %v3078
        %v3376 = vmul.f32 %v2288, %v3081
        %v3377 = vmul.f32 %v2291, %v3084
        %v3378 = vmul.f32 %v2294, %v3087
        %v3379 = vmul.f32 %v2297, %v3090
        %v3380 = vmul.f32 %v2300, %v3093
        %v3381 = vmul.f32 %v2303, %v3096
        %v3382 = vmul.f32 %v2306, %v3099
        %v3383 = vmul.f32 %v2309, %v3102
        %v3384 = vmul.f32 %v2312, %v3105
        %v3385 = vmul.f32 %v2315, %v3108
        %v3386 = vmul.f32 %v2318, %v3111
        %v3387 = vmul.f32 %v2321, %v3114
        %v3388 = vmul.f32 %v2324, %v3117
        %v3389 = vmul.f32 %v2327, %v3120
        %v3390 = vmul.f32 %v2330, %v3123
        %v3391 = vmul.f32 %v2333, %v3126
        %v3392 = vmul.f32 %v2336, %v3129
        %v3393 = vmul.f32 %v2339, %v3132
        %v3394 = vmul.f32 %v2342, %v3135
        %v3395 = vmul.f32 %v2345, %v3138
        %v3396 = vmul.f32 %v2348, %v3141
        %v3397 = vmul.f32 %v2351, %v3144
        %v3398 = vmul.f32 %v2354, %v3147
        %v3399 = vmul.f32 %v2357, %v3150
        %v3400 = vmul.f32 %v2360, %v3153
        %v3401 = vmul.f32 %v2363, %v3156
        %v3402 = vmul.f32 %v2366, %v3159
        %v3403 = vmul.f32 %v2369, %v3162
        %v3404 = vmul.f32 %v2372, %v3165
        %v3405 = vmul.f32 %v2375, %v3168
        %v3406 = vmul.f32 %v2378, %v3171
        %v3407 = vmul.f32 %v2381, %v3174
        %v3408 = vmul.f32 %v2384, %v3177
        %v3409 = vmul.f32 %v2387, %v3180
        %v3410 = vmul.f32 %v2390, %v3183
        %v3411 = vmul.f32 %v2393, %v3186
        %v3412 = vmul.f32 %v2396, %v3189
        %v3413 = vmul.f32 %v2399, %v3192
        %v3414 = vmul.f32 %v2402, %v3195
        %v3415 = vmul.f32 %v2405, %v3198
        %v3416 = vmul.f32 %v2408, %v3201
        %v3417 = vmul.f32 %v2411, %v3204
        %v3418 = vmul.f32 %v2414, %v3207
        %v3419 = vmul.f32 %v2417, %v3210
        %v3420 = vmul.f32 %v2420, %v3213
        %v3421 = vmul.f32 %v2423, %v3216
        %v3422 = vmul.f32 %v2426, %v3219
        %v3423 = vmul.f32 %v2429, %v3222
        %v3424 = vmul.f32 %v2432, %v3225
        %v3425 = vmul.f32 %v2435, %v3228
        %v3426 = vmul.f32 %v2438, %v3231
        %v3427 = vmul.f32 %v2441, %v3234
        %v3428 = vmul.f32 %v2444, %v3237
        %v3429 = vmul.f32 %v2447, %v3240
        %v3430 = vmul.f32 %v2450, %v3243
        %v3431 = vmul.f32 %v2453, %v3246
        %v3432 = vmul.f32 %v2456, %v3249
        %v3433 = vmul.f32 %v2459, %v3252
        %v3434 = vmul.f32 %v2462, %v3255
        %v3435 = vmul.f32 %v2465, %v3258
        %v3436 = vmul.f32 %v2468, %v3261
        %v3437 = vmul.f32 %v2471, %v3264
        %v3438 = vmul.f32 %v2474, %v3267
        %v3439 = vmul.f32 %v2477, %v3270
        %v3440 = vmul.f32 %v2480, %v3273
        %v3441 = vmul.f32 %v2483, %v3276
        %v3442 = vmul.f32 %v2486, %v3279
        %v3443 = vmul.f32 %v2489, %v3282
        %v3444 = vmul.f32 %v2492, %v3285
        %v3445 = vmul.f32 %v2495, %v3288
        %v3446 = vmul.f32 %v2498, %v3291
        %v3447 = vmul.f32 %v2501, %v3294
        %v3448 = vmul.f32 %v2504, %v3297
        %v3449 = vmul.f32 %v2507, %v3300
        %v3450 = vmul.f32 %v2510, %v3303
        %v3451 = vmul.f32 %v2513, %v3306
        %v3452 = vmul.f32 %v2516, %v3309
        %v3453 = vmul.f32 %v2519, %v3312
        %v3454 = vmul.f32 %v2522, %v3315
        %v3455 = vmul.f32 %v2525, %v3318
        %v3456 = vmul.f32 %v2528, %v3321
        %v3457 = vmul.f32 %v2531, %v3324
        %v3458 = vmul.f32 %v2534, %v3327
        %v3459 = vmul.f32 %v2537, %v3330
        %v3460 = vld [vmem:[%s3] sm:$0xff]
        %v3461 = vld [vmem:[%s3 + $0x8] sm:$0xff]
        %v3462 = vld [vmem:[%s3 + $0x10] sm:$0xff]
        %v3463 = vld [vmem:[%s3 + $0x18] sm:$0xff]
        %v3464 = vld [vmem:[%s3 + $0x20] sm:$0xff]
        %v3465 = vld [vmem:[%s3 + $0x28] sm:$0xff]
        %v3466 = vld [vmem:[%s3 + $0x30] sm:$0xff]
        %v3467 = vld [vmem:[%s3 + $0x38] sm:$0xff]
        %v3468 = vld [vmem:[%s4] sm:$0x1]
        %v3470 = vperm.slane %v3468, 0
        %v3473 = vsel %vm1753, %v3332, 0
        %v3476 = vsel %vm1753, %v3333, 0
        %v3479 = vsel %vm1753, %v3334, 0
        %v3482 = vsel %vm1753, %v3335, 0
        %v3485 = vsel %vm1753, %v3336, 0
        %v3488 = vsel %vm1753, %v3337, 0
        %v3491 = vsel %vm1753, %v3338, 0
        %v3494 = vsel %vm1753, %v3339, 0
        %v3497 = vsel %vm1753, %v3340, 0
        %v3500 = vsel %vm1753, %v3341, 0
        %v3503 = vsel %vm1753, %v3342, 0
        %v3506 = vsel %vm1753, %v3343, 0
        %v3509 = vsel %vm1753, %v3344, 0
        %v3512 = vsel %vm1753, %v3345, 0
        %v3515 = vsel %vm1753, %v3346, 0
        %v3518 = vsel %vm1753, %v3347, 0
        %v3521 = vsel %vm1753, %v3348, 0
        %v3524 = vsel %vm1753, %v3349, 0
        %v3527 = vsel %vm1753, %v3350, 0
        %v3530 = vsel %vm1753, %v3351, 0
        %v3533 = vsel %vm1753, %v3352, 0
        %v3536 = vsel %vm1753, %v3353, 0
        %v3539 = vsel %vm1753, %v3354, 0
        %v3542 = vsel %vm1753, %v3355, 0
        %v3545 = vsel %vm1753, %v3356, 0
        %v3548 = vsel %vm1753, %v3357, 0
        %v3551 = vsel %vm1753, %v3358, 0
        %v3554 = vsel %vm1753, %v3359, 0
        %v3557 = vsel %vm1753, %v3360, 0
        %v3560 = vsel %vm1753, %v3361, 0
        %v3563 = vsel %vm1753, %v3362, 0
        %v3566 = vsel %vm1753, %v3363, 0
        %v3569 = vsel %vm1753, %v3364, 0
        %v3572 = vsel %vm1753, %v3365, 0
        %v3575 = vsel %vm1753, %v3366, 0
        %v3578 = vsel %vm1753, %v3367, 0
        %v3581 = vsel %vm1753, %v3368, 0
        %v3584 = vsel %vm1753, %v3369, 0
        %v3587 = vsel %vm1753, %v3370, 0
        %v3590 = vsel %vm1753, %v3371, 0
        %v3593 = vsel %vm1753, %v3372, 0
        %v3596 = vsel %vm1753, %v3373, 0
        %v3599 = vsel %vm1753, %v3374, 0
        %v3602 = vsel %vm1753, %v3375, 0
        %v3605 = vsel %vm1753, %v3376, 0
        %v3608 = vsel %vm1753, %v3377, 0
        %v3611 = vsel %vm1753, %v3378, 0
        %v3614 = vsel %vm1753, %v3379, 0
        %v3617 = vsel %vm1753, %v3380, 0
        %v3620 = vsel %vm1753, %v3381, 0
        %v3623 = vsel %vm1753, %v3382, 0
        %v3626 = vsel %vm1753, %v3383, 0
        %v3629 = vsel %vm1753, %v3384, 0
        %v3632 = vsel %vm1753, %v3385, 0
        %v3635 = vsel %vm1753, %v3386, 0
        %v3638 = vsel %vm1753, %v3387, 0
        %v3641 = vsel %vm1753, %v3388, 0
        %v3644 = vsel %vm1753, %v3389, 0
        %v3647 = vsel %vm1753, %v3390, 0
        %v3650 = vsel %vm1753, %v3391, 0
        %v3653 = vsel %vm1753, %v3392, 0
        %v3656 = vsel %vm1753, %v3393, 0
        %v3659 = vsel %vm1753, %v3394, 0
        %v3662 = vsel %vm1753, %v3395, 0
        %v3665 = vsel %vm1753, %v3396, 0
        %v3668 = vsel %vm1753, %v3397, 0
        %v3671 = vsel %vm1753, %v3398, 0
        %v3674 = vsel %vm1753, %v3399, 0
        %v3677 = vsel %vm1753, %v3400, 0
        %v3680 = vsel %vm1753, %v3401, 0
        %v3683 = vsel %vm1753, %v3402, 0
        %v3686 = vsel %vm1753, %v3403, 0
        %v3689 = vsel %vm1753, %v3404, 0
        %v3692 = vsel %vm1753, %v3405, 0
        %v3695 = vsel %vm1753, %v3406, 0
        %v3698 = vsel %vm1753, %v3407, 0
        %v3701 = vsel %vm1753, %v3408, 0
        %v3704 = vsel %vm1753, %v3409, 0
        %v3707 = vsel %vm1753, %v3410, 0
        %v3710 = vsel %vm1753, %v3411, 0
        %v3713 = vsel %vm1753, %v3412, 0
        %v3716 = vsel %vm1753, %v3413, 0
        %v3719 = vsel %vm1753, %v3414, 0
        %v3722 = vsel %vm1753, %v3415, 0
        %v3725 = vsel %vm1753, %v3416, 0
        %v3728 = vsel %vm1753, %v3417, 0
        %v3731 = vsel %vm1753, %v3418, 0
        %v3734 = vsel %vm1753, %v3419, 0
        %v3737 = vsel %vm1753, %v3420, 0
        %v3740 = vsel %vm1753, %v3421, 0
        %v3743 = vsel %vm1753, %v3422, 0
        %v3746 = vsel %vm1753, %v3423, 0
        %v3749 = vsel %vm1753, %v3424, 0
        %v3752 = vsel %vm1753, %v3425, 0
        %v3755 = vsel %vm1753, %v3426, 0
        %v3758 = vsel %vm1753, %v3427, 0
        %v3761 = vsel %vm1753, %v3428, 0
        %v3764 = vsel %vm1753, %v3429, 0
        %v3767 = vsel %vm1753, %v3430, 0
        %v3770 = vsel %vm1753, %v3431, 0
        %v3773 = vsel %vm1753, %v3432, 0
        %v3776 = vsel %vm1753, %v3433, 0
        %v3779 = vsel %vm1753, %v3434, 0
        %v3782 = vsel %vm1753, %v3435, 0
        %v3785 = vsel %vm1753, %v3436, 0
        %v3788 = vsel %vm1753, %v3437, 0
        %v3791 = vsel %vm1753, %v3438, 0
        %v3794 = vsel %vm1753, %v3439, 0
        %v3797 = vsel %vm1753, %v3440, 0
        %v3800 = vsel %vm1753, %v3441, 0
        %v3803 = vsel %vm1753, %v3442, 0
        %v3806 = vsel %vm1753, %v3443, 0
        %v3809 = vsel %vm1753, %v3444, 0
        %v3812 = vsel %vm1753, %v3445, 0
        %v3815 = vsel %vm1753, %v3446, 0
        %v3818 = vsel %vm1753, %v3447, 0
        %v3821 = vsel %vm1753, %v3448, 0
        %v3824 = vsel %vm1753, %v3449, 0
        %v3827 = vsel %vm1753, %v3450, 0
        %v3830 = vsel %vm1753, %v3451, 0
        %v3833 = vsel %vm1753, %v3452, 0
        %v3836 = vsel %vm1753, %v3453, 0
        %v3839 = vsel %vm1753, %v3454, 0
        %v3842 = vsel %vm1753, %v3455, 0
        %v3845 = vsel %vm1753, %v3456, 0
        %v3848 = vsel %vm1753, %v3457, 0
        %v3851 = vsel %vm1753, %v3458, 0
        %v3854 = vsel %vm1753, %v3459, 0
        %3856 = vmatpush.msra.mxu0 0.0
        %3857 = vmatpush.msra.mxu0 0.0
        %3858 = vmatpush.msra.mxu0 0.0
        %3859 = vmatpush.msra.mxu0 0.0
        %3860 = vmatpush.msra.mxu0 0.0
        %3861 = vmatpush.msra.mxu0 0.0
        %3862 = vmatpush.msra.mxu0 0.0
        %3863 = vmatpush.msra.mxu0 0.0
        %3864 = vmatpush.msra.mxu0 %v3467
        %3865 = vmatpush.msra.mxu0 %v3466
        %3866 = vmatpush.msra.mxu0 %v3465
        %3867 = vmatpush.msra.mxu0 %v3464
        %3868 = vmatpush.msra.mxu0 %v3463
        %3869 = vmatpush.msra.mxu0 %v3462
        %3870 = vmatpush.msra.mxu0 %v3461
        %3871 = vmatpush.msra.mxu0 %v3460
        %3872 = vmatmul.f32.gmra.mxu0 %v3473
        %v3873 = vpop.f32.mrf.mxu0
        %v3874 = vadd.f32 %v3470, %v3873
        %3875 = vmatmul.f32.gmra.mxu0 %v3476
        %v3876 = vpop.f32.mrf.mxu0
        %v3877 = vadd.f32 %v3470, %v3876
        %3878 = vmatmul.f32.gmra.mxu0 %v3479
        %v3879 = vpop.f32.mrf.mxu0
        %v3880 = vadd.f32 %v3470, %v3879
        %3881 = vmatmul.f32.gmra.mxu0 %v3482
        %v3882 = vpop.f32.mrf.mxu0
        %v3883 = vadd.f32 %v3470, %v3882
        %3884 = vmatmul.f32.gmra.mxu0 %v3485
        %v3885 = vpop.f32.mrf.mxu0
        %v3886 = vadd.f32 %v3470, %v3885
        %3887 = vmatmul.f32.gmra.mxu0 %v3488
        %v3888 = vpop.f32.mrf.mxu0
        %v3889 = vadd.f32 %v3470, %v3888
        %3890 = vmatmul.f32.gmra.mxu0 %v3491
        %v3891 = vpop.f32.mrf.mxu0
        %v3892 = vadd.f32 %v3470, %v3891
        %3893 = vmatmul.f32.gmra.mxu0 %v3494
        %v3894 = vpop.f32.mrf.mxu0
        %v3895 = vadd.f32 %v3470, %v3894
        %3896 = vmatmul.f32.gmra.mxu0 %v3497
        %v3897 = vpop.f32.mrf.mxu0
        %v3898 = vadd.f32 %v3470, %v3897
        %3899 = vmatmul.f32.gmra.mxu0 %v3500
        %v3900 = vpop.f32.mrf.mxu0
        %v3901 = vadd.f32 %v3470, %v3900
        %3902 = vmatmul.f32.gmra.mxu0 %v3503
        %v3903 = vpop.f32.mrf.mxu0
        %v3904 = vadd.f32 %v3470, %v3903
        %3905 = vmatmul.f32.gmra.mxu0 %v3506
        %v3906 = vpop.f32.mrf.mxu0
        %v3907 = vadd.f32 %v3470, %v3906
        %3908 = vmatmul.f32.gmra.mxu0 %v3509
        %v3909 = vpop.f32.mrf.mxu0
        %v3910 = vadd.f32 %v3470, %v3909
        %3911 = vmatmul.f32.gmra.mxu0 %v3512
        %v3912 = vpop.f32.mrf.mxu0
        %v3913 = vadd.f32 %v3470, %v3912
        %3914 = vmatmul.f32.gmra.mxu0 %v3515
        %v3915 = vpop.f32.mrf.mxu0
        %v3916 = vadd.f32 %v3470, %v3915
        %3917 = vmatmul.f32.gmra.mxu0 %v3518
        %v3918 = vpop.f32.mrf.mxu0
        %v3919 = vadd.f32 %v3470, %v3918
        %3920 = vmatmul.f32.gmra.mxu0 %v3521
        %v3921 = vpop.f32.mrf.mxu0
        %v3922 = vadd.f32 %v3470, %v3921
        %3923 = vmatmul.f32.gmra.mxu0 %v3524
        %v3924 = vpop.f32.mrf.mxu0
        %v3925 = vadd.f32 %v3470, %v3924
        %3926 = vmatmul.f32.gmra.mxu0 %v3527
        %v3927 = vpop.f32.mrf.mxu0
        %v3928 = vadd.f32 %v3470, %v3927
        %3929 = vmatmul.f32.gmra.mxu0 %v3530
        %v3930 = vpop.f32.mrf.mxu0
        %v3931 = vadd.f32 %v3470, %v3930
        %3932 = vmatmul.f32.gmra.mxu0 %v3533
        %v3933 = vpop.f32.mrf.mxu0
        %v3934 = vadd.f32 %v3470, %v3933
        %3935 = vmatmul.f32.gmra.mxu0 %v3536
        %v3936 = vpop.f32.mrf.mxu0
        %v3937 = vadd.f32 %v3470, %v3936
        %3938 = vmatmul.f32.gmra.mxu0 %v3539
        %v3939 = vpop.f32.mrf.mxu0
        %v3940 = vadd.f32 %v3470, %v3939
        %3941 = vmatmul.f32.gmra.mxu0 %v3542
        %v3942 = vpop.f32.mrf.mxu0
        %v3943 = vadd.f32 %v3470, %v3942
        %3944 = vmatmul.f32.gmra.mxu0 %v3545
        %v3945 = vpop.f32.mrf.mxu0
        %v3946 = vadd.f32 %v3470, %v3945
        %3947 = vmatmul.f32.gmra.mxu0 %v3548
        %v3948 = vpop.f32.mrf.mxu0
        %v3949 = vadd.f32 %v3470, %v3948
        %3950 = vmatmul.f32.gmra.mxu0 %v3551
        %v3951 = vpop.f32.mrf.mxu0
        %v3952 = vadd.f32 %v3470, %v3951
        %3953 = vmatmul.f32.gmra.mxu0 %v3554
        %v3954 = vpop.f32.mrf.mxu0
        %v3955 = vadd.f32 %v3470, %v3954
        %3956 = vmatmul.f32.gmra.mxu0 %v3557
        %v3957 = vpop.f32.mrf.mxu0
        %v3958 = vadd.f32 %v3470, %v3957
        %3959 = vmatmul.f32.gmra.mxu0 %v3560
        %v3960 = vpop.f32.mrf.mxu0
        %v3961 = vadd.f32 %v3470, %v3960
        %3962 = vmatmul.f32.gmra.mxu0 %v3563
        %v3963 = vpop.f32.mrf.mxu0
        %v3964 = vadd.f32 %v3470, %v3963
        %3965 = vmatmul.f32.gmra.mxu0 %v3566
        %v3966 = vpop.f32.mrf.mxu0
        %v3967 = vadd.f32 %v3470, %v3966
        %3968 = vmatmul.f32.gmra.mxu0 %v3569
        %v3969 = vpop.f32.mrf.mxu0
        %v3970 = vadd.f32 %v3470, %v3969
        %3971 = vmatmul.f32.gmra.mxu0 %v3572
        %v3972 = vpop.f32.mrf.mxu0
        %v3973 = vadd.f32 %v3470, %v3972
        %3974 = vmatmul.f32.gmra.mxu0 %v3575
        %v3975 = vpop.f32.mrf.mxu0
        %v3976 = vadd.f32 %v3470, %v3975
        %3977 = vmatmul.f32.gmra.mxu0 %v3578
        %v3978 = vpop.f32.mrf.mxu0
        %v3979 = vadd.f32 %v3470, %v3978
        %3980 = vmatmul.f32.gmra.mxu0 %v3581
        %v3981 = vpop.f32.mrf.mxu0
        %v3982 = vadd.f32 %v3470, %v3981
        %3983 = vmatmul.f32.gmra.mxu0 %v3584
        %v3984 = vpop.f32.mrf.mxu0
        %v3985 = vadd.f32 %v3470, %v3984
        %3986 = vmatmul.f32.gmra.mxu0 %v3587
        %v3987 = vpop.f32.mrf.mxu0
        %v3988 = vadd.f32 %v3470, %v3987
        %3989 = vmatmul.f32.gmra.mxu0 %v3590
        %v3990 = vpop.f32.mrf.mxu0
        %v3991 = vadd.f32 %v3470, %v3990
        %3992 = vmatmul.f32.gmra.mxu0 %v3593
        %v3993 = vpop.f32.mrf.mxu0
        %v3994 = vadd.f32 %v3470, %v3993
        %3995 = vmatmul.f32.gmra.mxu0 %v3596
        %v3996 = vpop.f32.mrf.mxu0
        %v3997 = vadd.f32 %v3470, %v3996
        %3998 = vmatmul.f32.gmra.mxu0 %v3599
        %v3999 = vpop.f32.mrf.mxu0
        %v4000 = vadd.f32 %v3470, %v3999
        %4001 = vmatmul.f32.gmra.mxu0 %v3602
        %v4002 = vpop.f32.mrf.mxu0
        %v4003 = vadd.f32 %v3470, %v4002
        %4004 = vmatmul.f32.gmra.mxu0 %v3605
        %v4005 = vpop.f32.mrf.mxu0
        %v4006 = vadd.f32 %v3470, %v4005
        %4007 = vmatmul.f32.gmra.mxu0 %v3608
        %v4008 = vpop.f32.mrf.mxu0
        %v4009 = vadd.f32 %v3470, %v4008
        %4010 = vmatmul.f32.gmra.mxu0 %v3611
        %v4011 = vpop.f32.mrf.mxu0
        %v4012 = vadd.f32 %v3470, %v4011
        %4013 = vmatmul.f32.gmra.mxu0 %v3614
        %v4014 = vpop.f32.mrf.mxu0
        %v4015 = vadd.f32 %v3470, %v4014
        %4016 = vmatmul.f32.gmra.mxu0 %v3617
        %v4017 = vpop.f32.mrf.mxu0
        %v4018 = vadd.f32 %v3470, %v4017
        %4019 = vmatmul.f32.gmra.mxu0 %v3620
        %v4020 = vpop.f32.mrf.mxu0
        %v4021 = vadd.f32 %v3470, %v4020
        %4022 = vmatmul.f32.gmra.mxu0 %v3623
        %v4023 = vpop.f32.mrf.mxu0
        %v4024 = vadd.f32 %v3470, %v4023
        %4025 = vmatmul.f32.gmra.mxu0 %v3626
        %v4026 = vpop.f32.mrf.mxu0
        %v4027 = vadd.f32 %v3470, %v4026
        %4028 = vmatmul.f32.gmra.mxu0 %v3629
        %v4029 = vpop.f32.mrf.mxu0
        %v4030 = vadd.f32 %v3470, %v4029
        %4031 = vmatmul.f32.gmra.mxu0 %v3632
        %v4032 = vpop.f32.mrf.mxu0
        %v4033 = vadd.f32 %v3470, %v4032
        %4034 = vmatmul.f32.gmra.mxu0 %v3635
        %v4035 = vpop.f32.mrf.mxu0
        %v4036 = vadd.f32 %v3470, %v4035
        %4037 = vmatmul.f32.gmra.mxu0 %v3638
        %v4038 = vpop.f32.mrf.mxu0
        %v4039 = vadd.f32 %v3470, %v4038
        %4040 = vmatmul.f32.gmra.mxu0 %v3641
        %v4041 = vpop.f32.mrf.mxu0
        %v4042 = vadd.f32 %v3470, %v4041
        %4043 = vmatmul.f32.gmra.mxu0 %v3644
        %v4044 = vpop.f32.mrf.mxu0
        %v4045 = vadd.f32 %v3470, %v4044
        %4046 = vmatmul.f32.gmra.mxu0 %v3647
        %v4047 = vpop.f32.mrf.mxu0
        %v4048 = vadd.f32 %v3470, %v4047
        %4049 = vmatmul.f32.gmra.mxu0 %v3650
        %v4050 = vpop.f32.mrf.mxu0
        %v4051 = vadd.f32 %v3470, %v4050
        %4052 = vmatmul.f32.gmra.mxu0 %v3653
        %v4053 = vpop.f32.mrf.mxu0
        %v4054 = vadd.f32 %v3470, %v4053
        %4055 = vmatmul.f32.gmra.mxu0 %v3656
        %v4056 = vpop.f32.mrf.mxu0
        %v4057 = vadd.f32 %v3470, %v4056
        %4058 = vmatmul.f32.gmra.mxu0 %v3659
        %v4059 = vpop.f32.mrf.mxu0
        %v4060 = vadd.f32 %v3470, %v4059
        %4061 = vmatmul.f32.gmra.mxu0 %v3662
        %v4062 = vpop.f32.mrf.mxu0
        %v4063 = vadd.f32 %v3470, %v4062
        %4064 = vmatmul.f32.gmra.mxu0 %v3665
        %v4065 = vpop.f32.mrf.mxu0
        %v4066 = vadd.f32 %v3470, %v4065
        %4067 = vmatmul.f32.gmra.mxu0 %v3668
        %v4068 = vpop.f32.mrf.mxu0
        %v4069 = vadd.f32 %v3470, %v4068
        %4070 = vmatmul.f32.gmra.mxu0 %v3671
        %v4071 = vpop.f32.mrf.mxu0
        %v4072 = vadd.f32 %v3470, %v4071
        %4073 = vmatmul.f32.gmra.mxu0 %v3674
        %v4074 = vpop.f32.mrf.mxu0
        %v4075 = vadd.f32 %v3470, %v4074
        %4076 = vmatmul.f32.gmra.mxu0 %v3677
        %v4077 = vpop.f32.mrf.mxu0
        %v4078 = vadd.f32 %v3470, %v4077
        %4079 = vmatmul.f32.gmra.mxu0 %v3680
        %v4080 = vpop.f32.mrf.mxu0
        %v4081 = vadd.f32 %v3470, %v4080
        %4082 = vmatmul.f32.gmra.mxu0 %v3683
        %v4083 = vpop.f32.mrf.mxu0
        %v4084 = vadd.f32 %v3470, %v4083
        %4085 = vmatmul.f32.gmra.mxu0 %v3686
        %v4086 = vpop.f32.mrf.mxu0
        %v4087 = vadd.f32 %v3470, %v4086
        %4088 = vmatmul.f32.gmra.mxu0 %v3689
        %v4089 = vpop.f32.mrf.mxu0
        %v4090 = vadd.f32 %v3470, %v4089
        %4091 = vmatmul.f32.gmra.mxu0 %v3692
        %v4092 = vpop.f32.mrf.mxu0
        %v4093 = vadd.f32 %v3470, %v4092
        %4094 = vmatmul.f32.gmra.mxu0 %v3695
        %v4095 = vpop.f32.mrf.mxu0
        %v4096 = vadd.f32 %v3470, %v4095
        %4097 = vmatmul.f32.gmra.mxu0 %v3698
        %v4098 = vpop.f32.mrf.mxu0
        %v4099 = vadd.f32 %v3470, %v4098
        %4100 = vmatmul.f32.gmra.mxu0 %v3701
        %v4101 = vpop.f32.mrf.mxu0
        %v4102 = vadd.f32 %v3470, %v4101
        %4103 = vmatmul.f32.gmra.mxu0 %v3704
        %v4104 = vpop.f32.mrf.mxu0
        %v4105 = vadd.f32 %v3470, %v4104
        %4106 = vmatmul.f32.gmra.mxu0 %v3707
        %v4107 = vpop.f32.mrf.mxu0
        %v4108 = vadd.f32 %v3470, %v4107
        %4109 = vmatmul.f32.gmra.mxu0 %v3710
        %v4110 = vpop.f32.mrf.mxu0
        %v4111 = vadd.f32 %v3470, %v4110
        %4112 = vmatmul.f32.gmra.mxu0 %v3713
        %v4113 = vpop.f32.mrf.mxu0
        %v4114 = vadd.f32 %v3470, %v4113
        %4115 = vmatmul.f32.gmra.mxu0 %v3716
        %v4116 = vpop.f32.mrf.mxu0
        %v4117 = vadd.f32 %v3470, %v4116
        %4118 = vmatmul.f32.gmra.mxu0 %v3719
        %v4119 = vpop.f32.mrf.mxu0
        %v4120 = vadd.f32 %v3470, %v4119
        %4121 = vmatmul.f32.gmra.mxu0 %v3722
        %v4122 = vpop.f32.mrf.mxu0
        %v4123 = vadd.f32 %v3470, %v4122
        %4124 = vmatmul.f32.gmra.mxu0 %v3725
        %v4125 = vpop.f32.mrf.mxu0
        %v4126 = vadd.f32 %v3470, %v4125
        %4127 = vmatmul.f32.gmra.mxu0 %v3728
        %v4128 = vpop.f32.mrf.mxu0
        %v4129 = vadd.f32 %v3470, %v4128
        %4130 = vmatmul.f32.gmra.mxu0 %v3731
        %v4131 = vpop.f32.mrf.mxu0
        %v4132 = vadd.f32 %v3470, %v4131
        %4133 = vmatmul.f32.gmra.mxu0 %v3734
        %v4134 = vpop.f32.mrf.mxu0
        %v4135 = vadd.f32 %v3470, %v4134
        %4136 = vmatmul.f32.gmra.mxu0 %v3737
        %v4137 = vpop.f32.mrf.mxu0
        %v4138 = vadd.f32 %v3470, %v4137
        %4139 = vmatmul.f32.gmra.mxu0 %v3740
        %v4140 = vpop.f32.mrf.mxu0
        %v4141 = vadd.f32 %v3470, %v4140
        %4142 = vmatmul.f32.gmra.mxu0 %v3743
        %v4143 = vpop.f32.mrf.mxu0
        %v4144 = vadd.f32 %v3470, %v4143
        %4145 = vmatmul.f32.gmra.mxu0 %v3746
        %v4146 = vpop.f32.mrf.mxu0
        %v4147 = vadd.f32 %v3470, %v4146
        %4148 = vmatmul.f32.gmra.mxu0 %v3749
        %v4149 = vpop.f32.mrf.mxu0
        %v4150 = vadd.f32 %v3470, %v4149
        %4151 = vmatmul.f32.gmra.mxu0 %v3752
        %v4152 = vpop.f32.mrf.mxu0
        %v4153 = vadd.f32 %v3470, %v4152
        %4154 = vmatmul.f32.gmra.mxu0 %v3755
        %v4155 = vpop.f32.mrf.mxu0
        %v4156 = vadd.f32 %v3470, %v4155
        %4157 = vmatmul.f32.gmra.mxu0 %v3758
        %v4158 = vpop.f32.mrf.mxu0
        %v4159 = vadd.f32 %v3470, %v4158
        %4160 = vmatmul.f32.gmra.mxu0 %v3761
        %v4161 = vpop.f32.mrf.mxu0
        %v4162 = vadd.f32 %v3470, %v4161
        %4163 = vmatmul.f32.gmra.mxu0 %v3764
        %v4164 = vpop.f32.mrf.mxu0
        %v4165 = vadd.f32 %v3470, %v4164
        %4166 = vmatmul.f32.gmra.mxu0 %v3767
        %v4167 = vpop.f32.mrf.mxu0
        %v4168 = vadd.f32 %v3470, %v4167
        %4169 = vmatmul.f32.gmra.mxu0 %v3770
        %v4170 = vpop.f32.mrf.mxu0
        %v4171 = vadd.f32 %v3470, %v4170
        %4172 = vmatmul.f32.gmra.mxu0 %v3773
        %v4173 = vpop.f32.mrf.mxu0
        %v4174 = vadd.f32 %v3470, %v4173
        %4175 = vmatmul.f32.gmra.mxu0 %v3776
        %v4176 = vpop.f32.mrf.mxu0
        %v4177 = vadd.f32 %v3470, %v4176
        %4178 = vmatmul.f32.gmra.mxu0 %v3779
        %v4179 = vpop.f32.mrf.mxu0
        %v4180 = vadd.f32 %v3470, %v4179
        %4181 = vmatmul.f32.gmra.mxu0 %v3782
        %v4182 = vpop.f32.mrf.mxu0
        %v4183 = vadd.f32 %v3470, %v4182
        %4184 = vmatmul.f32.gmra.mxu0 %v3785
        %v4185 = vpop.f32.mrf.mxu0
        %v4186 = vadd.f32 %v3470, %v4185
        %4187 = vmatmul.f32.gmra.mxu0 %v3788
        %v4188 = vpop.f32.mrf.mxu0
        %v4189 = vadd.f32 %v3470, %v4188
        %4190 = vmatmul.f32.gmra.mxu0 %v3791
        %v4191 = vpop.f32.mrf.mxu0
        %v4192 = vadd.f32 %v3470, %v4191
        %4193 = vmatmul.f32.gmra.mxu0 %v3794
        %v4194 = vpop.f32.mrf.mxu0
        %v4195 = vadd.f32 %v3470, %v4194
        %4196 = vmatmul.f32.gmra.mxu0 %v3797
        %v4197 = vpop.f32.mrf.mxu0
        %v4198 = vadd.f32 %v3470, %v4197
        %4199 = vmatmul.f32.gmra.mxu0 %v3800
        %v4200 = vpop.f32.mrf.mxu0
        %v4201 = vadd.f32 %v3470, %v4200
        %4202 = vmatmul.f32.gmra.mxu0 %v3803
        %v4203 = vpop.f32.mrf.mxu0
        %v4204 = vadd.f32 %v3470, %v4203
        %4205 = vmatmul.f32.gmra.mxu0 %v3806
        %v4206 = vpop.f32.mrf.mxu0
        %v4207 = vadd.f32 %v3470, %v4206
        %4208 = vmatmul.f32.gmra.mxu0 %v3809
        %v4209 = vpop.f32.mrf.mxu0
        %v4210 = vadd.f32 %v3470, %v4209
        %4211 = vmatmul.f32.gmra.mxu0 %v3812
        %v4212 = vpop.f32.mrf.mxu0
        %v4213 = vadd.f32 %v3470, %v4212
        %4214 = vmatmul.f32.gmra.mxu0 %v3815
        %v4215 = vpop.f32.mrf.mxu0
        %v4216 = vadd.f32 %v3470, %v4215
        %4217 = vmatmul.f32.gmra.mxu0 %v3818
        %v4218 = vpop.f32.mrf.mxu0
        %v4219 = vadd.f32 %v3470, %v4218
        %4220 = vmatmul.f32.gmra.mxu0 %v3821
        %v4221 = vpop.f32.mrf.mxu0
        %v4222 = vadd.f32 %v3470, %v4221
        %4223 = vmatmul.f32.gmra.mxu0 %v3824
        %v4224 = vpop.f32.mrf.mxu0
        %v4225 = vadd.f32 %v3470, %v4224
        %4226 = vmatmul.f32.gmra.mxu0 %v3827
        %v4227 = vpop.f32.mrf.mxu0
        %v4228 = vadd.f32 %v3470, %v4227
        %4229 = vmatmul.f32.gmra.mxu0 %v3830
        %v4230 = vpop.f32.mrf.mxu0
        %v4231 = vadd.f32 %v3470, %v4230
        %4232 = vmatmul.f32.gmra.mxu0 %v3833
        %v4233 = vpop.f32.mrf.mxu0
        %v4234 = vadd.f32 %v3470, %v4233
        %4235 = vmatmul.f32.gmra.mxu0 %v3836
        %v4236 = vpop.f32.mrf.mxu0
        %v4237 = vadd.f32 %v3470, %v4236
        %4238 = vmatmul.f32.gmra.mxu0 %v3839
        %v4239 = vpop.f32.mrf.mxu0
        %v4240 = vadd.f32 %v3470, %v4239
        %4241 = vmatmul.f32.gmra.mxu0 %v3842
        %v4242 = vpop.f32.mrf.mxu0
        %v4243 = vadd.f32 %v3470, %v4242
        %4244 = vmatmul.f32.gmra.mxu0 %v3845
        %v4245 = vpop.f32.mrf.mxu0
        %v4246 = vadd.f32 %v3470, %v4245
        %4247 = vmatmul.f32.gmra.mxu0 %v3848
        %v4248 = vpop.f32.mrf.mxu0
        %v4249 = vadd.f32 %v3470, %v4248
        %4250 = vmatmul.f32.gmra.mxu0 %v3851
        %v4251 = vpop.f32.mrf.mxu0
        %v4252 = vadd.f32 %v3470, %v4251
        %4253 = vmatmul.f32.gmra.mxu0 %v3854
        %v4254 = vpop.f32.mrf.mxu0
        %v4255 = vadd.f32 %v3470, %v4254
        %4256 = vdwg.mxu0
        %v4257 = vmax.f32 %v3874, 0.0
        %v4258 = vmax.f32 %v3877, 0.0
        %v4259 = vmax.f32 %v3880, 0.0
        %v4260 = vmax.f32 %v3883, 0.0
        %v4261 = vmax.f32 %v3886, 0.0
        %v4262 = vmax.f32 %v3889, 0.0
        %v4263 = vmax.f32 %v3892, 0.0
        %v4264 = vmax.f32 %v3895, 0.0
        %v4265 = vmax.f32 %v3898, 0.0
        %v4266 = vmax.f32 %v3901, 0.0
        %v4267 = vmax.f32 %v3904, 0.0
        %v4268 = vmax.f32 %v3907, 0.0
        %v4269 = vmax.f32 %v3910, 0.0
        %v4270 = vmax.f32 %v3913, 0.0
        %v4271 = vmax.f32 %v3916, 0.0
        %v4272 = vmax.f32 %v3919, 0.0
        %v4273 = vmax.f32 %v3922, 0.0
        %v4274 = vmax.f32 %v3925, 0.0
        %v4275 = vmax.f32 %v3928, 0.0
        %v4276 = vmax.f32 %v3931, 0.0
        %v4277 = vmax.f32 %v3934, 0.0
        %v4278 = vmax.f32 %v3937, 0.0
        %v4279 = vmax.f32 %v3940, 0.0
        %v4280 = vmax.f32 %v3943, 0.0
        %v4281 = vmax.f32 %v3946, 0.0
        %v4282 = vmax.f32 %v3949, 0.0
        %v4283 = vmax.f32 %v3952, 0.0
        %v4284 = vmax.f32 %v3955, 0.0
        %v4285 = vmax.f32 %v3958, 0.0
        %v4286 = vmax.f32 %v3961, 0.0
        %v4287 = vmax.f32 %v3964, 0.0
        %v4288 = vmax.f32 %v3967, 0.0
        %v4289 = vmax.f32 %v3970, 0.0
        %v4290 = vmax.f32 %v3973, 0.0
        %v4291 = vmax.f32 %v3976, 0.0
        %v4292 = vmax.f32 %v3979, 0.0
        %v4293 = vmax.f32 %v3982, 0.0
        %v4294 = vmax.f32 %v3985, 0.0
        %v4295 = vmax.f32 %v3988, 0.0
        %v4296 = vmax.f32 %v3991, 0.0
        %v4297 = vmax.f32 %v3994, 0.0
        %v4298 = vmax.f32 %v3997, 0.0
        %v4299 = vmax.f32 %v4000, 0.0
        %v4300 = vmax.f32 %v4003, 0.0
        %v4301 = vmax.f32 %v4006, 0.0
        %v4302 = vmax.f32 %v4009, 0.0
        %v4303 = vmax.f32 %v4012, 0.0
        %v4304 = vmax.f32 %v4015, 0.0
        %v4305 = vmax.f32 %v4018, 0.0
        %v4306 = vmax.f32 %v4021, 0.0
        %v4307 = vmax.f32 %v4024, 0.0
        %v4308 = vmax.f32 %v4027, 0.0
        %v4309 = vmax.f32 %v4030, 0.0
        %v4310 = vmax.f32 %v4033, 0.0
        %v4311 = vmax.f32 %v4036, 0.0
        %v4312 = vmax.f32 %v4039, 0.0
        %v4313 = vmax.f32 %v4042, 0.0
        %v4314 = vmax.f32 %v4045, 0.0
        %v4315 = vmax.f32 %v4048, 0.0
        %v4316 = vmax.f32 %v4051, 0.0
        %v4317 = vmax.f32 %v4054, 0.0
        %v4318 = vmax.f32 %v4057, 0.0
        %v4319 = vmax.f32 %v4060, 0.0
        %v4320 = vmax.f32 %v4063, 0.0
        %v4321 = vmax.f32 %v4066, 0.0
        %v4322 = vmax.f32 %v4069, 0.0
        %v4323 = vmax.f32 %v4072, 0.0
        %v4324 = vmax.f32 %v4075, 0.0
        %v4325 = vmax.f32 %v4078, 0.0
        %v4326 = vmax.f32 %v4081, 0.0
        %v4327 = vmax.f32 %v4084, 0.0
        %v4328 = vmax.f32 %v4087, 0.0
        %v4329 = vmax.f32 %v4090, 0.0
        %v4330 = vmax.f32 %v4093, 0.0
        %v4331 = vmax.f32 %v4096, 0.0
        %v4332 = vmax.f32 %v4099, 0.0
        %v4333 = vmax.f32 %v4102, 0.0
        %v4334 = vmax.f32 %v4105, 0.0
        %v4335 = vmax.f32 %v4108, 0.0
        %v4336 = vmax.f32 %v4111, 0.0
        %v4337 = vmax.f32 %v4114, 0.0
        %v4338 = vmax.f32 %v4117, 0.0
        %v4339 = vmax.f32 %v4120, 0.0
        %v4340 = vmax.f32 %v4123, 0.0
        %v4341 = vmax.f32 %v4126, 0.0
        %v4342 = vmax.f32 %v4129, 0.0
        %v4343 = vmax.f32 %v4132, 0.0
        %v4344 = vmax.f32 %v4135, 0.0
        %v4345 = vmax.f32 %v4138, 0.0
        %v4346 = vmax.f32 %v4141, 0.0
        %v4347 = vmax.f32 %v4144, 0.0
        %v4348 = vmax.f32 %v4147, 0.0
        %v4349 = vmax.f32 %v4150, 0.0
        %v4350 = vmax.f32 %v4153, 0.0
        %v4351 = vmax.f32 %v4156, 0.0
        %v4352 = vmax.f32 %v4159, 0.0
        %v4353 = vmax.f32 %v4162, 0.0
        %v4354 = vmax.f32 %v4165, 0.0
        %v4355 = vmax.f32 %v4168, 0.0
        %v4356 = vmax.f32 %v4171, 0.0
        %v4357 = vmax.f32 %v4174, 0.0
        %v4358 = vmax.f32 %v4177, 0.0
        %v4359 = vmax.f32 %v4180, 0.0
        %v4360 = vmax.f32 %v4183, 0.0
        %v4361 = vmax.f32 %v4186, 0.0
        %v4362 = vmax.f32 %v4189, 0.0
        %v4363 = vmax.f32 %v4192, 0.0
        %v4364 = vmax.f32 %v4195, 0.0
        %v4365 = vmax.f32 %v4198, 0.0
        %v4366 = vmax.f32 %v4201, 0.0
        %v4367 = vmax.f32 %v4204, 0.0
        %v4368 = vmax.f32 %v4207, 0.0
        %v4369 = vmax.f32 %v4210, 0.0
        %v4370 = vmax.f32 %v4213, 0.0
        %v4371 = vmax.f32 %v4216, 0.0
        %v4372 = vmax.f32 %v4219, 0.0
        %v4373 = vmax.f32 %v4222, 0.0
        %v4374 = vmax.f32 %v4225, 0.0
        %v4375 = vmax.f32 %v4228, 0.0
        %v4376 = vmax.f32 %v4231, 0.0
        %v4377 = vmax.f32 %v4234, 0.0
        %v4378 = vmax.f32 %v4237, 0.0
        %v4379 = vmax.f32 %v4240, 0.0
        %v4380 = vmax.f32 %v4243, 0.0
        %v4381 = vmax.f32 %v4246, 0.0
        %v4382 = vmax.f32 %v4249, 0.0
        %v4383 = vmax.f32 %v4252, 0.0
        %v4384 = vmax.f32 %v4255, 0.0
        %v4385 = vld [vmem:[%s5] sm:$0xff]
        %v4386 = vld [vmem:[%s5 + $0x8] sm:$0xff]
        %v4387 = vld [vmem:[%s5 + $0x10] sm:$0xff]
        %v4388 = vld [vmem:[%s5 + $0x18] sm:$0xff]
        %v4389 = vld [vmem:[%s5 + $0x20] sm:$0xff]
        %v4390 = vld [vmem:[%s5 + $0x28] sm:$0xff]
        %v4391 = vld [vmem:[%s5 + $0x30] sm:$0xff]
        %v4392 = vld [vmem:[%s5 + $0x38] sm:$0xff]
        %v4393 = vld [vmem:[%s6] sm:$0x1]
        %v4395 = vperm.slane %v4393, 0
        %v4398 = vsel %vm1753, %v4257, 0
        %v4401 = vsel %vm1753, %v4258, 0
        %v4404 = vsel %vm1753, %v4259, 0
        %v4407 = vsel %vm1753, %v4260, 0
        %v4410 = vsel %vm1753, %v4261, 0
        %v4413 = vsel %vm1753, %v4262, 0
        %v4416 = vsel %vm1753, %v4263, 0
        %v4419 = vsel %vm1753, %v4264, 0
        %v4422 = vsel %vm1753, %v4265, 0
        %v4425 = vsel %vm1753, %v4266, 0
        %v4428 = vsel %vm1753, %v4267, 0
        %v4431 = vsel %vm1753, %v4268, 0
        %v4434 = vsel %vm1753, %v4269, 0
        %v4437 = vsel %vm1753, %v4270, 0
        %v4440 = vsel %vm1753, %v4271, 0
        %v4443 = vsel %vm1753, %v4272, 0
        %v4446 = vsel %vm1753, %v4273, 0
        %v4449 = vsel %vm1753, %v4274, 0
        %v4452 = vsel %vm1753, %v4275, 0
        %v4455 = vsel %vm1753, %v4276, 0
        %v4458 = vsel %vm1753, %v4277, 0
        %v4461 = vsel %vm1753, %v4278, 0
        %v4464 = vsel %vm1753, %v4279, 0
        %v4467 = vsel %vm1753, %v4280, 0
        %v4470 = vsel %vm1753, %v4281, 0
        %v4473 = vsel %vm1753, %v4282, 0
        %v4476 = vsel %vm1753, %v4283, 0
        %v4479 = vsel %vm1753, %v4284, 0
        %v4482 = vsel %vm1753, %v4285, 0
        %v4485 = vsel %vm1753, %v4286, 0
        %v4488 = vsel %vm1753, %v4287, 0
        %v4491 = vsel %vm1753, %v4288, 0
        %v4494 = vsel %vm1753, %v4289, 0
        %v4497 = vsel %vm1753, %v4290, 0
        %v4500 = vsel %vm1753, %v4291, 0
        %v4503 = vsel %vm1753, %v4292, 0
        %v4506 = vsel %vm1753, %v4293, 0
        %v4509 = vsel %vm1753, %v4294, 0
        %v4512 = vsel %vm1753, %v4295, 0
        %v4515 = vsel %vm1753, %v4296, 0
        %v4518 = vsel %vm1753, %v4297, 0
        %v4521 = vsel %vm1753, %v4298, 0
        %v4524 = vsel %vm1753, %v4299, 0
        %v4527 = vsel %vm1753, %v4300, 0
        %v4530 = vsel %vm1753, %v4301, 0
        %v4533 = vsel %vm1753, %v4302, 0
        %v4536 = vsel %vm1753, %v4303, 0
        %v4539 = vsel %vm1753, %v4304, 0
        %v4542 = vsel %vm1753, %v4305, 0
        %v4545 = vsel %vm1753, %v4306, 0
        %v4548 = vsel %vm1753, %v4307, 0
        %v4551 = vsel %vm1753, %v4308, 0
        %v4554 = vsel %vm1753, %v4309, 0
        %v4557 = vsel %vm1753, %v4310, 0
        %v4560 = vsel %vm1753, %v4311, 0
        %v4563 = vsel %vm1753, %v4312, 0
        %v4566 = vsel %vm1753, %v4313, 0
        %v4569 = vsel %vm1753, %v4314, 0
        %v4572 = vsel %vm1753, %v4315, 0
        %v4575 = vsel %vm1753, %v4316, 0
        %v4578 = vsel %vm1753, %v4317, 0
        %v4581 = vsel %vm1753, %v4318, 0
        %v4584 = vsel %vm1753, %v4319, 0
        %v4587 = vsel %vm1753, %v4320, 0
        %v4590 = vsel %vm1753, %v4321, 0
        %v4593 = vsel %vm1753, %v4322, 0
        %v4596 = vsel %vm1753, %v4323, 0
        %v4599 = vsel %vm1753, %v4324, 0
        %v4602 = vsel %vm1753, %v4325, 0
        %v4605 = vsel %vm1753, %v4326, 0
        %v4608 = vsel %vm1753, %v4327, 0
        %v4611 = vsel %vm1753, %v4328, 0
        %v4614 = vsel %vm1753, %v4329, 0
        %v4617 = vsel %vm1753, %v4330, 0
        %v4620 = vsel %vm1753, %v4331, 0
        %v4623 = vsel %vm1753, %v4332, 0
        %v4626 = vsel %vm1753, %v4333, 0
        %v4629 = vsel %vm1753, %v4334, 0
        %v4632 = vsel %vm1753, %v4335, 0
        %v4635 = vsel %vm1753, %v4336, 0
        %v4638 = vsel %vm1753, %v4337, 0
        %v4641 = vsel %vm1753, %v4338, 0
        %v4644 = vsel %vm1753, %v4339, 0
        %v4647 = vsel %vm1753, %v4340, 0
        %v4650 = vsel %vm1753, %v4341, 0
        %v4653 = vsel %vm1753, %v4342, 0
        %v4656 = vsel %vm1753, %v4343, 0
        %v4659 = vsel %vm1753, %v4344, 0
        %v4662 = vsel %vm1753, %v4345, 0
        %v4665 = vsel %vm1753, %v4346, 0
        %v4668 = vsel %vm1753, %v4347, 0
        %v4671 = vsel %vm1753, %v4348, 0
        %v4674 = vsel %vm1753, %v4349, 0
        %v4677 = vsel %vm1753, %v4350, 0
        %v4680 = vsel %vm1753, %v4351, 0
        %v4683 = vsel %vm1753, %v4352, 0
        %v4686 = vsel %vm1753, %v4353, 0
        %v4689 = vsel %vm1753, %v4354, 0
        %v4692 = vsel %vm1753, %v4355, 0
        %v4695 = vsel %vm1753, %v4356, 0
        %v4698 = vsel %vm1753, %v4357, 0
        %v4701 = vsel %vm1753, %v4358, 0
        %v4704 = vsel %vm1753, %v4359, 0
        %v4707 = vsel %vm1753, %v4360, 0
        %v4710 = vsel %vm1753, %v4361, 0
        %v4713 = vsel %vm1753, %v4362, 0
        %v4716 = vsel %vm1753, %v4363, 0
        %v4719 = vsel %vm1753, %v4364, 0
        %v4722 = vsel %vm1753, %v4365, 0
        %v4725 = vsel %vm1753, %v4366, 0
        %v4728 = vsel %vm1753, %v4367, 0
        %v4731 = vsel %vm1753, %v4368, 0
        %v4734 = vsel %vm1753, %v4369, 0
        %v4737 = vsel %vm1753, %v4370, 0
        %v4740 = vsel %vm1753, %v4371, 0
        %v4743 = vsel %vm1753, %v4372, 0
        %v4746 = vsel %vm1753, %v4373, 0
        %v4749 = vsel %vm1753, %v4374, 0
        %v4752 = vsel %vm1753, %v4375, 0
        %v4755 = vsel %vm1753, %v4376, 0
        %v4758 = vsel %vm1753, %v4377, 0
        %v4761 = vsel %vm1753, %v4378, 0
        %v4764 = vsel %vm1753, %v4379, 0
        %v4767 = vsel %vm1753, %v4380, 0
        %v4770 = vsel %vm1753, %v4381, 0
        %v4773 = vsel %vm1753, %v4382, 0
        %v4776 = vsel %vm1753, %v4383, 0
        %v4779 = vsel %vm1753, %v4384, 0
        %4781 = vmatpush.msra.mxu0 0.0
        %4782 = vmatpush.msra.mxu0 0.0
        %4783 = vmatpush.msra.mxu0 0.0
        %4784 = vmatpush.msra.mxu0 0.0
        %4785 = vmatpush.msra.mxu0 0.0
        %4786 = vmatpush.msra.mxu0 0.0
        %4787 = vmatpush.msra.mxu0 0.0
        %4788 = vmatpush.msra.mxu0 0.0
        %4789 = vmatpush.msra.mxu0 %v4392
        %4790 = vmatpush.msra.mxu0 %v4391
        %4791 = vmatpush.msra.mxu0 %v4390
        %4792 = vmatpush.msra.mxu0 %v4389
        %4793 = vmatpush.msra.mxu0 %v4388
        %4794 = vmatpush.msra.mxu0 %v4387
        %4795 = vmatpush.msra.mxu0 %v4386
        %4796 = vmatpush.msra.mxu0 %v4385
        %4797 = vmatmul.f32.gmra.mxu0 %v4398
        %v4798 = vpop.f32.mrf.mxu0
        %v4799 = vadd.f32 %v4395, %v4798
        %4800 = vmatmul.f32.gmra.mxu0 %v4401
        %v4801 = vpop.f32.mrf.mxu0
        %v4802 = vadd.f32 %v4395, %v4801
        %4803 = vmatmul.f32.gmra.mxu0 %v4404
        %v4804 = vpop.f32.mrf.mxu0
        %v4805 = vadd.f32 %v4395, %v4804
        %4806 = vmatmul.f32.gmra.mxu0 %v4407
        %v4807 = vpop.f32.mrf.mxu0
        %v4808 = vadd.f32 %v4395, %v4807
        %4809 = vmatmul.f32.gmra.mxu0 %v4410
        %v4810 = vpop.f32.mrf.mxu0
        %v4811 = vadd.f32 %v4395, %v4810
        %4812 = vmatmul.f32.gmra.mxu0 %v4413
        %v4813 = vpop.f32.mrf.mxu0
        %v4814 = vadd.f32 %v4395, %v4813
        %4815 = vmatmul.f32.gmra.mxu0 %v4416
        %v4816 = vpop.f32.mrf.mxu0
        %v4817 = vadd.f32 %v4395, %v4816
        %4818 = vmatmul.f32.gmra.mxu0 %v4419
        %v4819 = vpop.f32.mrf.mxu0
        %v4820 = vadd.f32 %v4395, %v4819
        %4821 = vmatmul.f32.gmra.mxu0 %v4422
        %v4822 = vpop.f32.mrf.mxu0
        %v4823 = vadd.f32 %v4395, %v4822
        %4824 = vmatmul.f32.gmra.mxu0 %v4425
        %v4825 = vpop.f32.mrf.mxu0
        %v4826 = vadd.f32 %v4395, %v4825
        %4827 = vmatmul.f32.gmra.mxu0 %v4428
        %v4828 = vpop.f32.mrf.mxu0
        %v4829 = vadd.f32 %v4395, %v4828
        %4830 = vmatmul.f32.gmra.mxu0 %v4431
        %v4831 = vpop.f32.mrf.mxu0
        %v4832 = vadd.f32 %v4395, %v4831
        %4833 = vmatmul.f32.gmra.mxu0 %v4434
        %v4834 = vpop.f32.mrf.mxu0
        %v4835 = vadd.f32 %v4395, %v4834
        %4836 = vmatmul.f32.gmra.mxu0 %v4437
        %v4837 = vpop.f32.mrf.mxu0
        %v4838 = vadd.f32 %v4395, %v4837
        %4839 = vmatmul.f32.gmra.mxu0 %v4440
        %v4840 = vpop.f32.mrf.mxu0
        %v4841 = vadd.f32 %v4395, %v4840
        %4842 = vmatmul.f32.gmra.mxu0 %v4443
        %v4843 = vpop.f32.mrf.mxu0
        %v4844 = vadd.f32 %v4395, %v4843
        %4845 = vmatmul.f32.gmra.mxu0 %v4446
        %v4846 = vpop.f32.mrf.mxu0
        %v4847 = vadd.f32 %v4395, %v4846
        %4848 = vmatmul.f32.gmra.mxu0 %v4449
        %v4849 = vpop.f32.mrf.mxu0
        %v4850 = vadd.f32 %v4395, %v4849
        %4851 = vmatmul.f32.gmra.mxu0 %v4452
        %v4852 = vpop.f32.mrf.mxu0
        %v4853 = vadd.f32 %v4395, %v4852
        %4854 = vmatmul.f32.gmra.mxu0 %v4455
        %v4855 = vpop.f32.mrf.mxu0
        %v4856 = vadd.f32 %v4395, %v4855
        %4857 = vmatmul.f32.gmra.mxu0 %v4458
        %v4858 = vpop.f32.mrf.mxu0
        %v4859 = vadd.f32 %v4395, %v4858
        %4860 = vmatmul.f32.gmra.mxu0 %v4461
        %v4861 = vpop.f32.mrf.mxu0
        %v4862 = vadd.f32 %v4395, %v4861
        %4863 = vmatmul.f32.gmra.mxu0 %v4464
        %v4864 = vpop.f32.mrf.mxu0
        %v4865 = vadd.f32 %v4395, %v4864
        %4866 = vmatmul.f32.gmra.mxu0 %v4467
        %v4867 = vpop.f32.mrf.mxu0
        %v4868 = vadd.f32 %v4395, %v4867
        %4869 = vmatmul.f32.gmra.mxu0 %v4470
        %v4870 = vpop.f32.mrf.mxu0
        %v4871 = vadd.f32 %v4395, %v4870
        %4872 = vmatmul.f32.gmra.mxu0 %v4473
        %v4873 = vpop.f32.mrf.mxu0
        %v4874 = vadd.f32 %v4395, %v4873
        %4875 = vmatmul.f32.gmra.mxu0 %v4476
        %v4876 = vpop.f32.mrf.mxu0
        %v4877 = vadd.f32 %v4395, %v4876
        %4878 = vmatmul.f32.gmra.mxu0 %v4479
        %v4879 = vpop.f32.mrf.mxu0
        %v4880 = vadd.f32 %v4395, %v4879
        %4881 = vmatmul.f32.gmra.mxu0 %v4482
        %v4882 = vpop.f32.mrf.mxu0
        %v4883 = vadd.f32 %v4395, %v4882
        %4884 = vmatmul.f32.gmra.mxu0 %v4485
        %v4885 = vpop.f32.mrf.mxu0
        %v4886 = vadd.f32 %v4395, %v4885
        %4887 = vmatmul.f32.gmra.mxu0 %v4488
        %v4888 = vpop.f32.mrf.mxu0
        %v4889 = vadd.f32 %v4395, %v4888
        %4890 = vmatmul.f32.gmra.mxu0 %v4491
        %v4891 = vpop.f32.mrf.mxu0
        %v4892 = vadd.f32 %v4395, %v4891
        %4893 = vmatmul.f32.gmra.mxu0 %v4494
        %v4894 = vpop.f32.mrf.mxu0
        %v4895 = vadd.f32 %v4395, %v4894
        %4896 = vmatmul.f32.gmra.mxu0 %v4497
        %v4897 = vpop.f32.mrf.mxu0
        %v4898 = vadd.f32 %v4395, %v4897
        %4899 = vmatmul.f32.gmra.mxu0 %v4500
        %v4900 = vpop.f32.mrf.mxu0
        %v4901 = vadd.f32 %v4395, %v4900
        %4902 = vmatmul.f32.gmra.mxu0 %v4503
        %v4903 = vpop.f32.mrf.mxu0
        %v4904 = vadd.f32 %v4395, %v4903
        %4905 = vmatmul.f32.gmra.mxu0 %v4506
        %v4906 = vpop.f32.mrf.mxu0
        %v4907 = vadd.f32 %v4395, %v4906
        %4908 = vmatmul.f32.gmra.mxu0 %v4509
        %v4909 = vpop.f32.mrf.mxu0
        %v4910 = vadd.f32 %v4395, %v4909
        %4911 = vmatmul.f32.gmra.mxu0 %v4512
        %v4912 = vpop.f32.mrf.mxu0
        %v4913 = vadd.f32 %v4395, %v4912
        %4914 = vmatmul.f32.gmra.mxu0 %v4515
        %v4915 = vpop.f32.mrf.mxu0
        %v4916 = vadd.f32 %v4395, %v4915
        %4917 = vmatmul.f32.gmra.mxu0 %v4518
        %v4918 = vpop.f32.mrf.mxu0
        %v4919 = vadd.f32 %v4395, %v4918
        %4920 = vmatmul.f32.gmra.mxu0 %v4521
        %v4921 = vpop.f32.mrf.mxu0
        %v4922 = vadd.f32 %v4395, %v4921
        %4923 = vmatmul.f32.gmra.mxu0 %v4524
        %v4924 = vpop.f32.mrf.mxu0
        %v4925 = vadd.f32 %v4395, %v4924
        %4926 = vmatmul.f32.gmra.mxu0 %v4527
        %v4927 = vpop.f32.mrf.mxu0
        %v4928 = vadd.f32 %v4395, %v4927
        %4929 = vmatmul.f32.gmra.mxu0 %v4530
        %v4930 = vpop.f32.mrf.mxu0
        %v4931 = vadd.f32 %v4395, %v4930
        %4932 = vmatmul.f32.gmra.mxu0 %v4533
        %v4933 = vpop.f32.mrf.mxu0
        %v4934 = vadd.f32 %v4395, %v4933
        %4935 = vmatmul.f32.gmra.mxu0 %v4536
        %v4936 = vpop.f32.mrf.mxu0
        %v4937 = vadd.f32 %v4395, %v4936
        %4938 = vmatmul.f32.gmra.mxu0 %v4539
        %v4939 = vpop.f32.mrf.mxu0
        %v4940 = vadd.f32 %v4395, %v4939
        %4941 = vmatmul.f32.gmra.mxu0 %v4542
        %v4942 = vpop.f32.mrf.mxu0
        %v4943 = vadd.f32 %v4395, %v4942
        %4944 = vmatmul.f32.gmra.mxu0 %v4545
        %v4945 = vpop.f32.mrf.mxu0
        %v4946 = vadd.f32 %v4395, %v4945
        %4947 = vmatmul.f32.gmra.mxu0 %v4548
        %v4948 = vpop.f32.mrf.mxu0
        %v4949 = vadd.f32 %v4395, %v4948
        %4950 = vmatmul.f32.gmra.mxu0 %v4551
        %v4951 = vpop.f32.mrf.mxu0
        %v4952 = vadd.f32 %v4395, %v4951
        %4953 = vmatmul.f32.gmra.mxu0 %v4554
        %v4954 = vpop.f32.mrf.mxu0
        %v4955 = vadd.f32 %v4395, %v4954
        %4956 = vmatmul.f32.gmra.mxu0 %v4557
        %v4957 = vpop.f32.mrf.mxu0
        %v4958 = vadd.f32 %v4395, %v4957
        %4959 = vmatmul.f32.gmra.mxu0 %v4560
        %v4960 = vpop.f32.mrf.mxu0
        %v4961 = vadd.f32 %v4395, %v4960
        %4962 = vmatmul.f32.gmra.mxu0 %v4563
        %v4963 = vpop.f32.mrf.mxu0
        %v4964 = vadd.f32 %v4395, %v4963
        %4965 = vmatmul.f32.gmra.mxu0 %v4566
        %v4966 = vpop.f32.mrf.mxu0
        %v4967 = vadd.f32 %v4395, %v4966
        %4968 = vmatmul.f32.gmra.mxu0 %v4569
        %v4969 = vpop.f32.mrf.mxu0
        %v4970 = vadd.f32 %v4395, %v4969
        %4971 = vmatmul.f32.gmra.mxu0 %v4572
        %v4972 = vpop.f32.mrf.mxu0
        %v4973 = vadd.f32 %v4395, %v4972
        %4974 = vmatmul.f32.gmra.mxu0 %v4575
        %v4975 = vpop.f32.mrf.mxu0
        %v4976 = vadd.f32 %v4395, %v4975
        %4977 = vmatmul.f32.gmra.mxu0 %v4578
        %v4978 = vpop.f32.mrf.mxu0
        %v4979 = vadd.f32 %v4395, %v4978
        %4980 = vmatmul.f32.gmra.mxu0 %v4581
        %v4981 = vpop.f32.mrf.mxu0
        %v4982 = vadd.f32 %v4395, %v4981
        %4983 = vmatmul.f32.gmra.mxu0 %v4584
        %v4984 = vpop.f32.mrf.mxu0
        %v4985 = vadd.f32 %v4395, %v4984
        %4986 = vmatmul.f32.gmra.mxu0 %v4587
        %v4987 = vpop.f32.mrf.mxu0
        %v4988 = vadd.f32 %v4395, %v4987
        %4989 = vmatmul.f32.gmra.mxu0 %v4590
        %v4990 = vpop.f32.mrf.mxu0
        %v4991 = vadd.f32 %v4395, %v4990
        %4992 = vmatmul.f32.gmra.mxu0 %v4593
        %v4993 = vpop.f32.mrf.mxu0
        %v4994 = vadd.f32 %v4395, %v4993
        %4995 = vmatmul.f32.gmra.mxu0 %v4596
        %v4996 = vpop.f32.mrf.mxu0
        %v4997 = vadd.f32 %v4395, %v4996
        %4998 = vmatmul.f32.gmra.mxu0 %v4599
        %v4999 = vpop.f32.mrf.mxu0
        %v5000 = vadd.f32 %v4395, %v4999
        %5001 = vmatmul.f32.gmra.mxu0 %v4602
        %v5002 = vpop.f32.mrf.mxu0
        %v5003 = vadd.f32 %v4395, %v5002
        %5004 = vmatmul.f32.gmra.mxu0 %v4605
        %v5005 = vpop.f32.mrf.mxu0
        %v5006 = vadd.f32 %v4395, %v5005
        %5007 = vmatmul.f32.gmra.mxu0 %v4608
        %v5008 = vpop.f32.mrf.mxu0
        %v5009 = vadd.f32 %v4395, %v5008
        %5010 = vmatmul.f32.gmra.mxu0 %v4611
        %v5011 = vpop.f32.mrf.mxu0
        %v5012 = vadd.f32 %v4395, %v5011
        %5013 = vmatmul.f32.gmra.mxu0 %v4614
        %v5014 = vpop.f32.mrf.mxu0
        %v5015 = vadd.f32 %v4395, %v5014
        %5016 = vmatmul.f32.gmra.mxu0 %v4617
        %v5017 = vpop.f32.mrf.mxu0
        %v5018 = vadd.f32 %v4395, %v5017
        %5019 = vmatmul.f32.gmra.mxu0 %v4620
        %v5020 = vpop.f32.mrf.mxu0
        %v5021 = vadd.f32 %v4395, %v5020
        %5022 = vmatmul.f32.gmra.mxu0 %v4623
        %v5023 = vpop.f32.mrf.mxu0
        %v5024 = vadd.f32 %v4395, %v5023
        %5025 = vmatmul.f32.gmra.mxu0 %v4626
        %v5026 = vpop.f32.mrf.mxu0
        %v5027 = vadd.f32 %v4395, %v5026
        %5028 = vmatmul.f32.gmra.mxu0 %v4629
        %v5029 = vpop.f32.mrf.mxu0
        %v5030 = vadd.f32 %v4395, %v5029
        %5031 = vmatmul.f32.gmra.mxu0 %v4632
        %v5032 = vpop.f32.mrf.mxu0
        %v5033 = vadd.f32 %v4395, %v5032
        %5034 = vmatmul.f32.gmra.mxu0 %v4635
        %v5035 = vpop.f32.mrf.mxu0
        %v5036 = vadd.f32 %v4395, %v5035
        %5037 = vmatmul.f32.gmra.mxu0 %v4638
        %v5038 = vpop.f32.mrf.mxu0
        %v5039 = vadd.f32 %v4395, %v5038
        %5040 = vmatmul.f32.gmra.mxu0 %v4641
        %v5041 = vpop.f32.mrf.mxu0
        %v5042 = vadd.f32 %v4395, %v5041
        %5043 = vmatmul.f32.gmra.mxu0 %v4644
        %v5044 = vpop.f32.mrf.mxu0
        %v5045 = vadd.f32 %v4395, %v5044
        %5046 = vmatmul.f32.gmra.mxu0 %v4647
        %v5047 = vpop.f32.mrf.mxu0
        %v5048 = vadd.f32 %v4395, %v5047
        %5049 = vmatmul.f32.gmra.mxu0 %v4650
        %v5050 = vpop.f32.mrf.mxu0
        %v5051 = vadd.f32 %v4395, %v5050
        %5052 = vmatmul.f32.gmra.mxu0 %v4653
        %v5053 = vpop.f32.mrf.mxu0
        %v5054 = vadd.f32 %v4395, %v5053
        %5055 = vmatmul.f32.gmra.mxu0 %v4656
        %v5056 = vpop.f32.mrf.mxu0
        %v5057 = vadd.f32 %v4395, %v5056
        %5058 = vmatmul.f32.gmra.mxu0 %v4659
        %v5059 = vpop.f32.mrf.mxu0
        %v5060 = vadd.f32 %v4395, %v5059
        %5061 = vmatmul.f32.gmra.mxu0 %v4662
        %v5062 = vpop.f32.mrf.mxu0
        %v5063 = vadd.f32 %v4395, %v5062
        %5064 = vmatmul.f32.gmra.mxu0 %v4665
        %v5065 = vpop.f32.mrf.mxu0
        %v5066 = vadd.f32 %v4395, %v5065
        %5067 = vmatmul.f32.gmra.mxu0 %v4668
        %v5068 = vpop.f32.mrf.mxu0
        %v5069 = vadd.f32 %v4395, %v5068
        %5070 = vmatmul.f32.gmra.mxu0 %v4671
        %v5071 = vpop.f32.mrf.mxu0
        %v5072 = vadd.f32 %v4395, %v5071
        %5073 = vmatmul.f32.gmra.mxu0 %v4674
        %v5074 = vpop.f32.mrf.mxu0
        %v5075 = vadd.f32 %v4395, %v5074
        %5076 = vmatmul.f32.gmra.mxu0 %v4677
        %v5077 = vpop.f32.mrf.mxu0
        %v5078 = vadd.f32 %v4395, %v5077
        %5079 = vmatmul.f32.gmra.mxu0 %v4680
        %v5080 = vpop.f32.mrf.mxu0
        %v5081 = vadd.f32 %v4395, %v5080
        %5082 = vmatmul.f32.gmra.mxu0 %v4683
        %v5083 = vpop.f32.mrf.mxu0
        %v5084 = vadd.f32 %v4395, %v5083
        %5085 = vmatmul.f32.gmra.mxu0 %v4686
        %v5086 = vpop.f32.mrf.mxu0
        %v5087 = vadd.f32 %v4395, %v5086
        %5088 = vmatmul.f32.gmra.mxu0 %v4689
        %v5089 = vpop.f32.mrf.mxu0
        %v5090 = vadd.f32 %v4395, %v5089
        %5091 = vmatmul.f32.gmra.mxu0 %v4692
        %v5092 = vpop.f32.mrf.mxu0
        %v5093 = vadd.f32 %v4395, %v5092
        %5094 = vmatmul.f32.gmra.mxu0 %v4695
        %v5095 = vpop.f32.mrf.mxu0
        %v5096 = vadd.f32 %v4395, %v5095
        %5097 = vmatmul.f32.gmra.mxu0 %v4698
        %v5098 = vpop.f32.mrf.mxu0
        %v5099 = vadd.f32 %v4395, %v5098
        %5100 = vmatmul.f32.gmra.mxu0 %v4701
        %v5101 = vpop.f32.mrf.mxu0
        %v5102 = vadd.f32 %v4395, %v5101
        %5103 = vmatmul.f32.gmra.mxu0 %v4704
        %v5104 = vpop.f32.mrf.mxu0
        %v5105 = vadd.f32 %v4395, %v5104
        %5106 = vmatmul.f32.gmra.mxu0 %v4707
        %v5107 = vpop.f32.mrf.mxu0
        %v5108 = vadd.f32 %v4395, %v5107
        %5109 = vmatmul.f32.gmra.mxu0 %v4710
        %v5110 = vpop.f32.mrf.mxu0
        %v5111 = vadd.f32 %v4395, %v5110
        %5112 = vmatmul.f32.gmra.mxu0 %v4713
        %v5113 = vpop.f32.mrf.mxu0
        %v5114 = vadd.f32 %v4395, %v5113
        %5115 = vmatmul.f32.gmra.mxu0 %v4716
        %v5116 = vpop.f32.mrf.mxu0
        %v5117 = vadd.f32 %v4395, %v5116
        %5118 = vmatmul.f32.gmra.mxu0 %v4719
        %v5119 = vpop.f32.mrf.mxu0
        %v5120 = vadd.f32 %v4395, %v5119
        %5121 = vmatmul.f32.gmra.mxu0 %v4722
        %v5122 = vpop.f32.mrf.mxu0
        %v5123 = vadd.f32 %v4395, %v5122
        %5124 = vmatmul.f32.gmra.mxu0 %v4725
        %v5125 = vpop.f32.mrf.mxu0
        %v5126 = vadd.f32 %v4395, %v5125
        %5127 = vmatmul.f32.gmra.mxu0 %v4728
        %v5128 = vpop.f32.mrf.mxu0
        %v5129 = vadd.f32 %v4395, %v5128
        %5130 = vmatmul.f32.gmra.mxu0 %v4731
        %v5131 = vpop.f32.mrf.mxu0
        %v5132 = vadd.f32 %v4395, %v5131
        %5133 = vmatmul.f32.gmra.mxu0 %v4734
        %v5134 = vpop.f32.mrf.mxu0
        %v5135 = vadd.f32 %v4395, %v5134
        %5136 = vmatmul.f32.gmra.mxu0 %v4737
        %v5137 = vpop.f32.mrf.mxu0
        %v5138 = vadd.f32 %v4395, %v5137
        %5139 = vmatmul.f32.gmra.mxu0 %v4740
        %v5140 = vpop.f32.mrf.mxu0
        %v5141 = vadd.f32 %v4395, %v5140
        %5142 = vmatmul.f32.gmra.mxu0 %v4743
        %v5143 = vpop.f32.mrf.mxu0
        %v5144 = vadd.f32 %v4395, %v5143
        %5145 = vmatmul.f32.gmra.mxu0 %v4746
        %v5146 = vpop.f32.mrf.mxu0
        %v5147 = vadd.f32 %v4395, %v5146
        %5148 = vmatmul.f32.gmra.mxu0 %v4749
        %v5149 = vpop.f32.mrf.mxu0
        %v5150 = vadd.f32 %v4395, %v5149
        %5151 = vmatmul.f32.gmra.mxu0 %v4752
        %v5152 = vpop.f32.mrf.mxu0
        %v5153 = vadd.f32 %v4395, %v5152
        %5154 = vmatmul.f32.gmra.mxu0 %v4755
        %v5155 = vpop.f32.mrf.mxu0
        %v5156 = vadd.f32 %v4395, %v5155
        %5157 = vmatmul.f32.gmra.mxu0 %v4758
        %v5158 = vpop.f32.mrf.mxu0
        %v5159 = vadd.f32 %v4395, %v5158
        %5160 = vmatmul.f32.gmra.mxu0 %v4761
        %v5161 = vpop.f32.mrf.mxu0
        %v5162 = vadd.f32 %v4395, %v5161
        %5163 = vmatmul.f32.gmra.mxu0 %v4764
        %v5164 = vpop.f32.mrf.mxu0
        %v5165 = vadd.f32 %v4395, %v5164
        %5166 = vmatmul.f32.gmra.mxu0 %v4767
        %v5167 = vpop.f32.mrf.mxu0
        %v5168 = vadd.f32 %v4395, %v5167
        %5169 = vmatmul.f32.gmra.mxu0 %v4770
        %v5170 = vpop.f32.mrf.mxu0
        %v5171 = vadd.f32 %v4395, %v5170
        %5172 = vmatmul.f32.gmra.mxu0 %v4773
        %v5173 = vpop.f32.mrf.mxu0
        %v5174 = vadd.f32 %v4395, %v5173
        %5175 = vmatmul.f32.gmra.mxu0 %v4776
        %v5176 = vpop.f32.mrf.mxu0
        %v5177 = vadd.f32 %v4395, %v5176
        %5178 = vmatmul.f32.gmra.mxu0 %v4779
        %v5179 = vpop.f32.mrf.mxu0
        %v5180 = vadd.f32 %v4395, %v5179
        %5181 = vdwg.mxu0
        %v5182 = vmax.f32 %v4799, 0.0
        %v5183 = vmax.f32 %v4802, 0.0
        %v5184 = vmax.f32 %v4805, 0.0
        %v5185 = vmax.f32 %v4808, 0.0
        %v5186 = vmax.f32 %v4811, 0.0
        %v5187 = vmax.f32 %v4814, 0.0
        %v5188 = vmax.f32 %v4817, 0.0
        %v5189 = vmax.f32 %v4820, 0.0
        %v5190 = vmax.f32 %v4823, 0.0
        %v5191 = vmax.f32 %v4826, 0.0
        %v5192 = vmax.f32 %v4829, 0.0
        %v5193 = vmax.f32 %v4832, 0.0
        %v5194 = vmax.f32 %v4835, 0.0
        %v5195 = vmax.f32 %v4838, 0.0
        %v5196 = vmax.f32 %v4841, 0.0
        %v5197 = vmax.f32 %v4844, 0.0
        %v5198 = vmax.f32 %v4847, 0.0
        %v5199 = vmax.f32 %v4850, 0.0
        %v5200 = vmax.f32 %v4853, 0.0
        %v5201 = vmax.f32 %v4856, 0.0
        %v5202 = vmax.f32 %v4859, 0.0
        %v5203 = vmax.f32 %v4862, 0.0
        %v5204 = vmax.f32 %v4865, 0.0
        %v5205 = vmax.f32 %v4868, 0.0
        %v5206 = vmax.f32 %v4871, 0.0
        %v5207 = vmax.f32 %v4874, 0.0
        %v5208 = vmax.f32 %v4877, 0.0
        %v5209 = vmax.f32 %v4880, 0.0
        %v5210 = vmax.f32 %v4883, 0.0
        %v5211 = vmax.f32 %v4886, 0.0
        %v5212 = vmax.f32 %v4889, 0.0
        %v5213 = vmax.f32 %v4892, 0.0
        %v5214 = vmax.f32 %v4895, 0.0
        %v5215 = vmax.f32 %v4898, 0.0
        %v5216 = vmax.f32 %v4901, 0.0
        %v5217 = vmax.f32 %v4904, 0.0
        %v5218 = vmax.f32 %v4907, 0.0
        %v5219 = vmax.f32 %v4910, 0.0
        %v5220 = vmax.f32 %v4913, 0.0
        %v5221 = vmax.f32 %v4916, 0.0
        %v5222 = vmax.f32 %v4919, 0.0
        %v5223 = vmax.f32 %v4922, 0.0
        %v5224 = vmax.f32 %v4925, 0.0
        %v5225 = vmax.f32 %v4928, 0.0
        %v5226 = vmax.f32 %v4931, 0.0
        %v5227 = vmax.f32 %v4934, 0.0
        %v5228 = vmax.f32 %v4937, 0.0
        %v5229 = vmax.f32 %v4940, 0.0
        %v5230 = vmax.f32 %v4943, 0.0
        %v5231 = vmax.f32 %v4946, 0.0
        %v5232 = vmax.f32 %v4949, 0.0
        %v5233 = vmax.f32 %v4952, 0.0
        %v5234 = vmax.f32 %v4955, 0.0
        %v5235 = vmax.f32 %v4958, 0.0
        %v5236 = vmax.f32 %v4961, 0.0
        %v5237 = vmax.f32 %v4964, 0.0
        %v5238 = vmax.f32 %v4967, 0.0
        %v5239 = vmax.f32 %v4970, 0.0
        %v5240 = vmax.f32 %v4973, 0.0
        %v5241 = vmax.f32 %v4976, 0.0
        %v5242 = vmax.f32 %v4979, 0.0
        %v5243 = vmax.f32 %v4982, 0.0
        %v5244 = vmax.f32 %v4985, 0.0
        %v5245 = vmax.f32 %v4988, 0.0
        %v5246 = vmax.f32 %v4991, 0.0
        %v5247 = vmax.f32 %v4994, 0.0
        %v5248 = vmax.f32 %v4997, 0.0
        %v5249 = vmax.f32 %v5000, 0.0
        %v5250 = vmax.f32 %v5003, 0.0
        %v5251 = vmax.f32 %v5006, 0.0
        %v5252 = vmax.f32 %v5009, 0.0
        %v5253 = vmax.f32 %v5012, 0.0
        %v5254 = vmax.f32 %v5015, 0.0
        %v5255 = vmax.f32 %v5018, 0.0
        %v5256 = vmax.f32 %v5021, 0.0
        %v5257 = vmax.f32 %v5024, 0.0
        %v5258 = vmax.f32 %v5027, 0.0
        %v5259 = vmax.f32 %v5030, 0.0
        %v5260 = vmax.f32 %v5033, 0.0
        %v5261 = vmax.f32 %v5036, 0.0
        %v5262 = vmax.f32 %v5039, 0.0
        %v5263 = vmax.f32 %v5042, 0.0
        %v5264 = vmax.f32 %v5045, 0.0
        %v5265 = vmax.f32 %v5048, 0.0
        %v5266 = vmax.f32 %v5051, 0.0
        %v5267 = vmax.f32 %v5054, 0.0
        %v5268 = vmax.f32 %v5057, 0.0
        %v5269 = vmax.f32 %v5060, 0.0
        %v5270 = vmax.f32 %v5063, 0.0
        %v5271 = vmax.f32 %v5066, 0.0
        %v5272 = vmax.f32 %v5069, 0.0
        %v5273 = vmax.f32 %v5072, 0.0
        %v5274 = vmax.f32 %v5075, 0.0
        %v5275 = vmax.f32 %v5078, 0.0
        %v5276 = vmax.f32 %v5081, 0.0
        %v5277 = vmax.f32 %v5084, 0.0
        %v5278 = vmax.f32 %v5087, 0.0
        %v5279 = vmax.f32 %v5090, 0.0
        %v5280 = vmax.f32 %v5093, 0.0
        %v5281 = vmax.f32 %v5096, 0.0
        %v5282 = vmax.f32 %v5099, 0.0
        %v5283 = vmax.f32 %v5102, 0.0
        %v5284 = vmax.f32 %v5105, 0.0
        %v5285 = vmax.f32 %v5108, 0.0
        %v5286 = vmax.f32 %v5111, 0.0
        %v5287 = vmax.f32 %v5114, 0.0
        %v5288 = vmax.f32 %v5117, 0.0
        %v5289 = vmax.f32 %v5120, 0.0
        %v5290 = vmax.f32 %v5123, 0.0
        %v5291 = vmax.f32 %v5126, 0.0
        %v5292 = vmax.f32 %v5129, 0.0
        %v5293 = vmax.f32 %v5132, 0.0
        %v5294 = vmax.f32 %v5135, 0.0
        %v5295 = vmax.f32 %v5138, 0.0
        %v5296 = vmax.f32 %v5141, 0.0
        %v5297 = vmax.f32 %v5144, 0.0
        %v5298 = vmax.f32 %v5147, 0.0
        %v5299 = vmax.f32 %v5150, 0.0
        %v5300 = vmax.f32 %v5153, 0.0
        %v5301 = vmax.f32 %v5156, 0.0
        %v5302 = vmax.f32 %v5159, 0.0
        %v5303 = vmax.f32 %v5162, 0.0
        %v5304 = vmax.f32 %v5165, 0.0
        %v5305 = vmax.f32 %v5168, 0.0
        %v5306 = vmax.f32 %v5171, 0.0
        %v5307 = vmax.f32 %v5174, 0.0
        %v5308 = vmax.f32 %v5177, 0.0
        %v5309 = vmax.f32 %v5180, 0.0
        %v5310 = vld [vmem:[%s7] sm:$0xff]
        %vm5311 = vcmask 261120
        %v5313 = vsel %vm5311, %v5310, 0
        %v5316 = vsel %vm5311, %v5182, 0
        %v5319 = vsel %vm5311, %v5183, 0
        %v5322 = vsel %vm5311, %v5184, 0
        %v5325 = vsel %vm5311, %v5185, 0
        %v5328 = vsel %vm5311, %v5186, 0
        %v5331 = vsel %vm5311, %v5187, 0
        %v5334 = vsel %vm5311, %v5188, 0
        %v5337 = vsel %vm5311, %v5189, 0
        %v5340 = vsel %vm5311, %v5190, 0
        %v5343 = vsel %vm5311, %v5191, 0
        %v5346 = vsel %vm5311, %v5192, 0
        %v5349 = vsel %vm5311, %v5193, 0
        %v5352 = vsel %vm5311, %v5194, 0
        %v5355 = vsel %vm5311, %v5195, 0
        %v5358 = vsel %vm5311, %v5196, 0
        %v5361 = vsel %vm5311, %v5197, 0
        %v5364 = vsel %vm5311, %v5198, 0
        %v5367 = vsel %vm5311, %v5199, 0
        %v5370 = vsel %vm5311, %v5200, 0
        %v5373 = vsel %vm5311, %v5201, 0
        %v5376 = vsel %vm5311, %v5202, 0
        %v5379 = vsel %vm5311, %v5203, 0
        %v5382 = vsel %vm5311, %v5204, 0
        %v5385 = vsel %vm5311, %v5205, 0
        %v5388 = vsel %vm5311, %v5206, 0
        %v5391 = vsel %vm5311, %v5207, 0
        %v5394 = vsel %vm5311, %v5208, 0
        %v5397 = vsel %vm5311, %v5209, 0
        %v5400 = vsel %vm5311, %v5210, 0
        %v5403 = vsel %vm5311, %v5211, 0
        %v5406 = vsel %vm5311, %v5212, 0
        %v5409 = vsel %vm5311, %v5213, 0
        %v5412 = vsel %vm5311, %v5214, 0
        %v5415 = vsel %vm5311, %v5215, 0
        %v5418 = vsel %vm5311, %v5216, 0
        %v5421 = vsel %vm5311, %v5217, 0
        %v5424 = vsel %vm5311, %v5218, 0
        %v5427 = vsel %vm5311, %v5219, 0
        %v5430 = vsel %vm5311, %v5220, 0
        %v5433 = vsel %vm5311, %v5221, 0
        %v5436 = vsel %vm5311, %v5222, 0
        %v5439 = vsel %vm5311, %v5223, 0
        %v5442 = vsel %vm5311, %v5224, 0
        %v5445 = vsel %vm5311, %v5225, 0
        %v5448 = vsel %vm5311, %v5226, 0
        %v5451 = vsel %vm5311, %v5227, 0
        %v5454 = vsel %vm5311, %v5228, 0
        %v5457 = vsel %vm5311, %v5229, 0
        %v5460 = vsel %vm5311, %v5230, 0
        %v5463 = vsel %vm5311, %v5231, 0
        %v5466 = vsel %vm5311, %v5232, 0
        %v5469 = vsel %vm5311, %v5233, 0
        %v5472 = vsel %vm5311, %v5234, 0
        %v5475 = vsel %vm5311, %v5235, 0
        %v5478 = vsel %vm5311, %v5236, 0
        %v5481 = vsel %vm5311, %v5237, 0
        %v5484 = vsel %vm5311, %v5238, 0
        %v5487 = vsel %vm5311, %v5239, 0
        %v5490 = vsel %vm5311, %v5240, 0
        %v5493 = vsel %vm5311, %v5241, 0
        %v5496 = vsel %vm5311, %v5242, 0
        %v5499 = vsel %vm5311, %v5243, 0
        %v5502 = vsel %vm5311, %v5244, 0
        %v5505 = vsel %vm5311, %v5245, 0
        %v5508 = vsel %vm5311, %v5246, 0
        %v5511 = vsel %vm5311, %v5247, 0
        %v5514 = vsel %vm5311, %v5248, 0
        %v5517 = vsel %vm5311, %v5249, 0
        %v5520 = vsel %vm5311, %v5250, 0
        %v5523 = vsel %vm5311, %v5251, 0
        %v5526 = vsel %vm5311, %v5252, 0
        %v5529 = vsel %vm5311, %v5253, 0
        %v5532 = vsel %vm5311, %v5254, 0
        %v5535 = vsel %vm5311, %v5255, 0
        %v5538 = vsel %vm5311, %v5256, 0
        %v5541 = vsel %vm5311, %v5257, 0
        %v5544 = vsel %vm5311, %v5258, 0
        %v5547 = vsel %vm5311, %v5259, 0
        %v5550 = vsel %vm5311, %v5260, 0
        %v5553 = vsel %vm5311, %v5261, 0
        %v5556 = vsel %vm5311, %v5262, 0
        %v5559 = vsel %vm5311, %v5263, 0
        %v5562 = vsel %vm5311, %v5264, 0
        %v5565 = vsel %vm5311, %v5265, 0
        %v5568 = vsel %vm5311, %v5266, 0
        %v5571 = vsel %vm5311, %v5267, 0
        %v5574 = vsel %vm5311, %v5268, 0
        %v5577 = vsel %vm5311, %v5269, 0
        %v5580 = vsel %vm5311, %v5270, 0
        %v5583 = vsel %vm5311, %v5271, 0
        %v5586 = vsel %vm5311, %v5272, 0
        %v5589 = vsel %vm5311, %v5273, 0
        %v5592 = vsel %vm5311, %v5274, 0
        %v5595 = vsel %vm5311, %v5275, 0
        %v5598 = vsel %vm5311, %v5276, 0
        %v5601 = vsel %vm5311, %v5277, 0
        %v5604 = vsel %vm5311, %v5278, 0
        %v5607 = vsel %vm5311, %v5279, 0
        %v5610 = vsel %vm5311, %v5280, 0
        %v5613 = vsel %vm5311, %v5281, 0
        %v5616 = vsel %vm5311, %v5282, 0
        %v5619 = vsel %vm5311, %v5283, 0
        %v5622 = vsel %vm5311, %v5284, 0
        %v5625 = vsel %vm5311, %v5285, 0
        %v5628 = vsel %vm5311, %v5286, 0
        %v5631 = vsel %vm5311, %v5287, 0
        %v5634 = vsel %vm5311, %v5288, 0
        %v5637 = vsel %vm5311, %v5289, 0
        %v5640 = vsel %vm5311, %v5290, 0
        %v5643 = vsel %vm5311, %v5291, 0
        %v5646 = vsel %vm5311, %v5292, 0
        %v5649 = vsel %vm5311, %v5293, 0
        %v5652 = vsel %vm5311, %v5294, 0
        %v5655 = vsel %vm5311, %v5295, 0
        %v5658 = vsel %vm5311, %v5296, 0
        %v5661 = vsel %vm5311, %v5297, 0
        %v5664 = vsel %vm5311, %v5298, 0
        %v5667 = vsel %vm5311, %v5299, 0
        %v5670 = vsel %vm5311, %v5300, 0
        %v5673 = vsel %vm5311, %v5301, 0
        %v5676 = vsel %vm5311, %v5302, 0
        %v5679 = vsel %vm5311, %v5303, 0
        %v5682 = vsel %vm5311, %v5304, 0
        %v5685 = vsel %vm5311, %v5305, 0
        %v5688 = vsel %vm5311, %v5306, 0
        %v5691 = vsel %vm5311, %v5307, 0
        %v5694 = vsel %vm5311, %v5308, 0
        %v5697 = vsel %vm5311, %v5309, 0
        %5699 = vmatpush.xpose.msra.mxu0 %v5361
        %5700 = vmatpush.xpose.msra.mxu0 %v5358
        %5701 = vmatpush.xpose.msra.mxu0 %v5355
        %5702 = vmatpush.xpose.msra.mxu0 %v5352
        %5703 = vmatpush.xpose.msra.mxu0 %v5349
        %5704 = vmatpush.xpose.msra.mxu0 %v5346
        %5705 = vmatpush.xpose.msra.mxu0 %v5343
        %5706 = vmatpush.xpose.msra.mxu0 %v5340
        %5707 = vmatpush.xpose.msra.mxu0 %v5337
        %5708 = vmatpush.xpose.msra.mxu0 %v5334
        %5709 = vmatpush.xpose.msra.mxu0 %v5331
        %5710 = vmatpush.xpose.msra.mxu0 %v5328
        %5711 = vmatpush.xpose.msra.mxu0 %v5325
        %5712 = vmatpush.xpose.msra.mxu0 %v5322
        %5713 = vmatpush.xpose.msra.mxu0 %v5319
        %5714 = vmatpush.xpose.msra.mxu0 %v5316
        %5715 = vmatmul.f32.gmra.mxu0 %v5313
        %v5716 = vpop.f32.mrf.mxu0
        %v5717 = vadd.f32 0.0, %v5716
        %5718 = vdwg.mxu0
        %5719 = vmatpush.xpose.msra.mxu0 %v5409
        %5720 = vmatpush.xpose.msra.mxu0 %v5406
        %5721 = vmatpush.xpose.msra.mxu0 %v5403
        %5722 = vmatpush.xpose.msra.mxu0 %v5400
        %5723 = vmatpush.xpose.msra.mxu0 %v5397
        %5724 = vmatpush.xpose.msra.mxu0 %v5394
        %5725 = vmatpush.xpose.msra.mxu0 %v5391
        %5726 = vmatpush.xpose.msra.mxu0 %v5388
        %5727 = vmatpush.xpose.msra.mxu0 %v5385
        %5728 = vmatpush.xpose.msra.mxu0 %v5382
        %5729 = vmatpush.xpose.msra.mxu0 %v5379
        %5730 = vmatpush.xpose.msra.mxu0 %v5376
        %5731 = vmatpush.xpose.msra.mxu0 %v5373
        %5732 = vmatpush.xpose.msra.mxu0 %v5370
        %5733 = vmatpush.xpose.msra.mxu0 %v5367
        %5734 = vmatpush.xpose.msra.mxu0 %v5364
        %5735 = vmatmul.f32.gmra.mxu0 %v5313
        %v5736 = vpop.f32.mrf.mxu0
        %v5737 = vadd.f32 0.0, %v5736
        %5738 = vdwg.mxu0
        %5739 = vmatpush.xpose.msra.mxu0 %v5457
        %5740 = vmatpush.xpose.msra.mxu0 %v5454
        %5741 = vmatpush.xpose.msra.mxu0 %v5451
        %5742 = vmatpush.xpose.msra.mxu0 %v5448
        %5743 = vmatpush.xpose.msra.mxu0 %v5445
        %5744 = vmatpush.xpose.msra.mxu0 %v5442
        %5745 = vmatpush.xpose.msra.mxu0 %v5439
        %5746 = vmatpush.xpose.msra.mxu0 %v5436
        %5747 = vmatpush.xpose.msra.mxu0 %v5433
        %5748 = vmatpush.xpose.msra.mxu0 %v5430
        %5749 = vmatpush.xpose.msra.mxu0 %v5427
        %5750 = vmatpush.xpose.msra.mxu0 %v5424
        %5751 = vmatpush.xpose.msra.mxu0 %v5421
        %5752 = vmatpush.xpose.msra.mxu0 %v5418
        %5753 = vmatpush.xpose.msra.mxu0 %v5415
        %5754 = vmatpush.xpose.msra.mxu0 %v5412
        %5755 = vmatmul.f32.gmra.mxu0 %v5313
        %v5756 = vpop.f32.mrf.mxu0
        %v5757 = vadd.f32 0.0, %v5756
        %5758 = vdwg.mxu0
        %5759 = vmatpush.xpose.msra.mxu0 %v5505
        %5760 = vmatpush.xpose.msra.mxu0 %v5502
        %5761 = vmatpush.xpose.msra.mxu0 %v5499
        %5762 = vmatpush.xpose.msra.mxu0 %v5496
        %5763 = vmatpush.xpose.msra.mxu0 %v5493
        %5764 = vmatpush.xpose.msra.mxu0 %v5490
        %5765 = vmatpush.xpose.msra.mxu0 %v5487
        %5766 = vmatpush.xpose.msra.mxu0 %v5484
        %5767 = vmatpush.xpose.msra.mxu0 %v5481
        %5768 = vmatpush.xpose.msra.mxu0 %v5478
        %5769 = vmatpush.xpose.msra.mxu0 %v5475
        %5770 = vmatpush.xpose.msra.mxu0 %v5472
        %5771 = vmatpush.xpose.msra.mxu0 %v5469
        %5772 = vmatpush.xpose.msra.mxu0 %v5466
        %5773 = vmatpush.xpose.msra.mxu0 %v5463
        %5774 = vmatpush.xpose.msra.mxu0 %v5460
        %5775 = vmatmul.f32.gmra.mxu0 %v5313
        %v5776 = vpop.f32.mrf.mxu0
        %v5777 = vadd.f32 0.0, %v5776
        %5778 = vdwg.mxu0
        %5779 = vmatpush.xpose.msra.mxu0 %v5553
        %5780 = vmatpush.xpose.msra.mxu0 %v5550
        %5781 = vmatpush.xpose.msra.mxu0 %v5547
        %5782 = vmatpush.xpose.msra.mxu0 %v5544
        %5783 = vmatpush.xpose.msra.mxu0 %v5541
        %5784 = vmatpush.xpose.msra.mxu0 %v5538
        %5785 = vmatpush.xpose.msra.mxu0 %v5535
        %5786 = vmatpush.xpose.msra.mxu0 %v5532
        %5787 = vmatpush.xpose.msra.mxu0 %v5529
        %5788 = vmatpush.xpose.msra.mxu0 %v5526
        %5789 = vmatpush.xpose.msra.mxu0 %v5523
        %5790 = vmatpush.xpose.msra.mxu0 %v5520
        %5791 = vmatpush.xpose.msra.mxu0 %v5517
        %5792 = vmatpush.xpose.msra.mxu0 %v5514
        %5793 = vmatpush.xpose.msra.mxu0 %v5511
        %5794 = vmatpush.xpose.msra.mxu0 %v5508
        %5795 = vmatmul.f32.gmra.mxu0 %v5313
        %v5796 = vpop.f32.mrf.mxu0
        %v5797 = vadd.f32 0.0, %v5796
        %5798 = vdwg.mxu0
        %5799 = vmatpush.xpose.msra.mxu0 %v5601
        %5800 = vmatpush.xpose.msra.mxu0 %v5598
        %5801 = vmatpush.xpose.msra.mxu0 %v5595
        %5802 = vmatpush.xpose.msra.mxu0 %v5592
        %5803 = vmatpush.xpose.msra.mxu0 %v5589
        %5804 = vmatpush.xpose.msra.mxu0 %v5586
        %5805 = vmatpush.xpose.msra.mxu0 %v5583
        %5806 = vmatpush.xpose.msra.mxu0 %v5580
        %5807 = vmatpush.xpose.msra.mxu0 %v5577
        %5808 = vmatpush.xpose.msra.mxu0 %v5574
        %5809 = vmatpush.xpose.msra.mxu0 %v5571
        %5810 = vmatpush.xpose.msra.mxu0 %v5568
        %5811 = vmatpush.xpose.msra.mxu0 %v5565
        %5812 = vmatpush.xpose.msra.mxu0 %v5562
        %5813 = vmatpush.xpose.msra.mxu0 %v5559
        %5814 = vmatpush.xpose.msra.mxu0 %v5556
        %5815 = vmatmul.f32.gmra.mxu0 %v5313
        %v5816 = vpop.f32.mrf.mxu0
        %v5817 = vadd.f32 0.0, %v5816
        %5818 = vdwg.mxu0
        %5819 = vmatpush.xpose.msra.mxu0 %v5649
        %5820 = vmatpush.xpose.msra.mxu0 %v5646
        %5821 = vmatpush.xpose.msra.mxu0 %v5643
        %5822 = vmatpush.xpose.msra.mxu0 %v5640
        %5823 = vmatpush.xpose.msra.mxu0 %v5637
        %5824 = vmatpush.xpose.msra.mxu0 %v5634
        %5825 = vmatpush.xpose.msra.mxu0 %v5631
        %5826 = vmatpush.xpose.msra.mxu0 %v5628
        %5827 = vmatpush.xpose.msra.mxu0 %v5625
        %5828 = vmatpush.xpose.msra.mxu0 %v5622
        %5829 = vmatpush.xpose.msra.mxu0 %v5619
        %5830 = vmatpush.xpose.msra.mxu0 %v5616
        %5831 = vmatpush.xpose.msra.mxu0 %v5613
        %5832 = vmatpush.xpose.msra.mxu0 %v5610
        %5833 = vmatpush.xpose.msra.mxu0 %v5607
        %5834 = vmatpush.xpose.msra.mxu0 %v5604
        %5835 = vmatmul.f32.gmra.mxu0 %v5313
        %v5836 = vpop.f32.mrf.mxu0
        %v5837 = vadd.f32 0.0, %v5836
        %5838 = vdwg.mxu0
        %5839 = vmatpush.xpose.msra.mxu0 %v5697
        %5840 = vmatpush.xpose.msra.mxu0 %v5694
        %5841 = vmatpush.xpose.msra.mxu0 %v5691
        %5842 = vmatpush.xpose.msra.mxu0 %v5688
        %5843 = vmatpush.xpose.msra.mxu0 %v5685
        %5844 = vmatpush.xpose.msra.mxu0 %v5682
        %5845 = vmatpush.xpose.msra.mxu0 %v5679
        %5846 = vmatpush.xpose.msra.mxu0 %v5676
        %5847 = vmatpush.xpose.msra.mxu0 %v5673
        %5848 = vmatpush.xpose.msra.mxu0 %v5670
        %5849 = vmatpush.xpose.msra.mxu0 %v5667
        %5850 = vmatpush.xpose.msra.mxu0 %v5664
        %5851 = vmatpush.xpose.msra.mxu0 %v5661
        %5852 = vmatpush.xpose.msra.mxu0 %v5658
        %5853 = vmatpush.xpose.msra.mxu0 %v5655
        %5854 = vmatpush.xpose.msra.mxu0 %v5652
        %5855 = vmatmul.f32.gmra.mxu0 %v5313
        %v5856 = vpop.f32.mrf.mxu0
        %v5857 = vadd.f32 0.0, %v5856
        %5858 = vdwg.mxu0
        %s5859 = sld [smem:[#allocation2]]
        %v5860 = vstv %s5859
        %v5861 = vadd.f32 %v5717, %v5860
        %v5862 = vadd.f32 %v5737, %v5860
        %v5863 = vadd.f32 %v5757, %v5860
        %v5864 = vadd.f32 %v5777, %v5860
        %v5865 = vadd.f32 %v5797, %v5860
        %v5866 = vadd.f32 %v5817, %v5860
        %v5867 = vadd.f32 %v5837, %v5860
        %v5868 = vadd.f32 %v5857, %v5860
        %v5869 = vxor.u32 %v5861, 2147483648
        %v5870 = vxor.u32 %v5862, 2147483648
        %v5871 = vxor.u32 %v5863, 2147483648
        %v5872 = vxor.u32 %v5864, 2147483648
        %v5873 = vxor.u32 %v5865, 2147483648
        %v5874 = vxor.u32 %v5866, 2147483648
        %v5875 = vxor.u32 %v5867, 2147483648
        %v5876 = vxor.u32 %v5868, 2147483648
        %v5877 = vmul.f32 %v5869, 1.442695
        %v5878 = vpow.pop %v5877
        %v5879 = vmul.f32 %v5870, 1.442695
        %v5880 = vpow.pop %v5879
        %v5881 = vmul.f32 %v5871, 1.442695
        %v5882 = vpow.pop %v5881
        %v5883 = vmul.f32 %v5872, 1.442695
        %v5884 = vpow.pop %v5883
        %v5885 = vmul.f32 %v5873, 1.442695
        %v5886 = vpow.pop %v5885
        %v5887 = vmul.f32 %v5874, 1.442695
        %v5888 = vpow.pop %v5887
        %v5889 = vmul.f32 %v5875, 1.442695
        %v5890 = vpow.pop %v5889
        %v5891 = vmul.f32 %v5876, 1.442695
        %v5892 = vpow.pop %v5891
        %v5893 = vadd.f32 %v5878, 1.0
        %v5894 = vadd.f32 %v5880, 1.0
        %v5895 = vadd.f32 %v5882, 1.0
        %v5896 = vadd.f32 %v5884, 1.0
        %v5897 = vadd.f32 %v5886, 1.0
        %v5898 = vadd.f32 %v5888, 1.0
        %v5899 = vadd.f32 %v5890, 1.0
        %v5900 = vadd.f32 %v5892, 1.0
        %v5901 = vrcp.pop %v5893
        %v5902 = vmul.f32 %v5893, %v5901
        %v5903 = vsub.f32 1.0, %v5902
        %v5904 = vmul.f32 %v5901, %v5903
        %v5905 = vadd.f32 %v5901, %v5904
        %vm5906 = vweird.f32 %v5893
        %vm5907 = vweird.f32 %v5901
        %vm5908 = vmor %vm5906, %vm5907
        %v5909 = vsel %vm5908, %v5901, %v5905
        %v5910 = vand.u32 2147483647, %v5893
        %vm5911 = vcmp.eq.f32.partialorder %v5910, 8.507059e+37
        %v5912 = vand.u32 %v5893, 2147483648
        %v5913 = vor.u32 1.1754944e-38, %v5912
        %v5914 = vsel %vm5911, %v5913, %v5909
        %v5915 = vmul.f32 1.0, %v5914
        %v5916 = vrcp.pop %v5894
        %v5917 = vmul.f32 %v5894, %v5916
        %v5918 = vsub.f32 1.0, %v5917
        %v5919 = vmul.f32 %v5916, %v5918
        %v5920 = vadd.f32 %v5916, %v5919
        %vm5921 = vweird.f32 %v5894
        %vm5922 = vweird.f32 %v5916
        %vm5923 = vmor %vm5921, %vm5922
        %v5924 = vsel %vm5923, %v5916, %v5920
        %v5925 = vand.u32 2147483647, %v5894
        %vm5926 = vcmp.eq.f32.partialorder %v5925, 8.507059e+37
        %v5927 = vand.u32 %v5894, 2147483648
        %v5928 = vor.u32 1.1754944e-38, %v5927
        %v5929 = vsel %vm5926, %v5928, %v5924
        %v5930 = vmul.f32 1.0, %v5929
        %v5931 = vrcp.pop %v5895
        %v5932 = vmul.f32 %v5895, %v5931
        %v5933 = vsub.f32 1.0, %v5932
        %v5934 = vmul.f32 %v5931, %v5933
        %v5935 = vadd.f32 %v5931, %v5934
        %vm5936 = vweird.f32 %v5895
        %vm5937 = vweird.f32 %v5931
        %vm5938 = vmor %vm5936, %vm5937
        %v5939 = vsel %vm5938, %v5931, %v5935
        %v5940 = vand.u32 2147483647, %v5895
        %vm5941 = vcmp.eq.f32.partialorder %v5940, 8.507059e+37
        %v5942 = vand.u32 %v5895, 2147483648
        %v5943 = vor.u32 1.1754944e-38, %v5942
        %v5944 = vsel %vm5941, %v5943, %v5939
        %v5945 = vmul.f32 1.0, %v5944
        %v5946 = vrcp.pop %v5896
        %v5947 = vmul.f32 %v5896, %v5946
        %v5948 = vsub.f32 1.0, %v5947
        %v5949 = vmul.f32 %v5946, %v5948
        %v5950 = vadd.f32 %v5946, %v5949
        %vm5951 = vweird.f32 %v5896
        %vm5952 = vweird.f32 %v5946
        %vm5953 = vmor %vm5951, %vm5952
        %v5954 = vsel %vm5953, %v5946, %v5950
        %v5955 = vand.u32 2147483647, %v5896
        %vm5956 = vcmp.eq.f32.partialorder %v5955, 8.507059e+37
        %v5957 = vand.u32 %v5896, 2147483648
        %v5958 = vor.u32 1.1754944e-38, %v5957
        %v5959 = vsel %vm5956, %v5958, %v5954
        %v5960 = vmul.f32 1.0, %v5959
        %v5961 = vrcp.pop %v5897
        %v5962 = vmul.f32 %v5897, %v5961
        %v5963 = vsub.f32 1.0, %v5962
        %v5964 = vmul.f32 %v5961, %v5963
        %v5965 = vadd.f32 %v5961, %v5964
        %vm5966 = vweird.f32 %v5897
        %vm5967 = vweird.f32 %v5961
        %vm5968 = vmor %vm5966, %vm5967
        %v5969 = vsel %vm5968, %v5961, %v5965
        %v5970 = vand.u32 2147483647, %v5897
        %vm5971 = vcmp.eq.f32.partialorder %v5970, 8.507059e+37
        %v5972 = vand.u32 %v5897, 2147483648
        %v5973 = vor.u32 1.1754944e-38, %v5972
        %v5974 = vsel %vm5971, %v5973, %v5969
        %v5975 = vmul.f32 1.0, %v5974
        %v5976 = vrcp.pop %v5898
        %v5977 = vmul.f32 %v5898, %v5976
        %v5978 = vsub.f32 1.0, %v5977
        %v5979 = vmul.f32 %v5976, %v5978
        %v5980 = vadd.f32 %v5976, %v5979
        %vm5981 = vweird.f32 %v5898
        %vm5982 = vweird.f32 %v5976
        %vm5983 = vmor %vm5981, %vm5982
        %v5984 = vsel %vm5983, %v5976, %v5980
        %v5985 = vand.u32 2147483647, %v5898
        %vm5986 = vcmp.eq.f32.partialorder %v5985, 8.507059e+37
        %v5987 = vand.u32 %v5898, 2147483648
        %v5988 = vor.u32 1.1754944e-38, %v5987
        %v5989 = vsel %vm5986, %v5988, %v5984
        %v5990 = vmul.f32 1.0, %v5989
        %v5991 = vrcp.pop %v5899
        %v5992 = vmul.f32 %v5899, %v5991
        %v5993 = vsub.f32 1.0, %v5992
        %v5994 = vmul.f32 %v5991, %v5993
        %v5995 = vadd.f32 %v5991, %v5994
        %vm5996 = vweird.f32 %v5899
        %vm5997 = vweird.f32 %v5991
        %vm5998 = vmor %vm5996, %vm5997
        %v5999 = vsel %vm5998, %v5991, %v5995
        %v6000 = vand.u32 2147483647, %v5899
        %vm6001 = vcmp.eq.f32.partialorder %v6000, 8.507059e+37
        %v6002 = vand.u32 %v5899, 2147483648
        %v6003 = vor.u32 1.1754944e-38, %v6002
        %v6004 = vsel %vm6001, %v6003, %v5999
        %v6005 = vmul.f32 1.0, %v6004
        %v6006 = vrcp.pop %v5900
        %v6007 = vmul.f32 %v5900, %v6006
        %v6008 = vsub.f32 1.0, %v6007
        %v6009 = vmul.f32 %v6006, %v6008
        %v6010 = vadd.f32 %v6006, %v6009
        %vm6011 = vweird.f32 %v5900
        %vm6012 = vweird.f32 %v6006
        %vm6013 = vmor %vm6011, %vm6012
        %v6014 = vsel %vm6013, %v6006, %v6010
        %v6015 = vand.u32 2147483647, %v5900
        %vm6016 = vcmp.eq.f32.partialorder %v6015, 8.507059e+37
        %v6017 = vand.u32 %v5900, 2147483648
        %v6018 = vor.u32 1.1754944e-38, %v6017
        %v6019 = vsel %vm6016, %v6018, %v6014
        %v6020 = vmul.f32 1.0, %v6019
        %v6029 = vrot.slane %v5930, 7
        %v6030 = vrot.slane %v5945, 6
        %v6031 = vrot.slane %v5960, 5
        %v6032 = vrot.slane %v5975, 4
        %v6033 = vrot.slane %v5990, 3
        %v6034 = vrot.slane %v6005, 2
        %v6035 = vrot.slane %v6020, 1
        %vm6036 = vcmask 1040384
        %v6037 = vsel %vm6036, %v5915, %v6029
        %vm6038 = vcmask 1042434
        %v6039 = vsel %vm6038, %v6030, %v6031
        %vm6040 = vcmask 1041408
        %v6041 = vsel %vm6040, %v6037, %v6039
        %vm6042 = vcmask 1044484
        %v6043 = vsel %vm6042, %v6032, %v6033
        %vm6044 = vcmask 1046534
        %v6045 = vsel %vm6044, %v6034, %v6035
        %vm6046 = vcmask 1045508
        %v6047 = vsel %vm6046, %v6043, %v6045
        %vm6048 = vcmask 1043456
        %v6049 = vsel %vm6048, %v6041, %v6047
        %6051 = vst [vmem:[%s327] sm:$0xff] %v6049
        %s6052 = sand.u32 %s226, 1
        %s6053 = scalar_lea.sflag [#allocation4], %s6052
        %s6054 = sand.u32 %s226, 1
        %s6055 = smul.addr %s6054, 8
        %s6056 = scalar_lea.vmem [#allocation3], %s6055
        // Predicated region
        $region57: #{tpu_custom_call.1} parent=55 // pred_check
          %p6057 = pneg %p236
        $region58: #{tpu_custom_call.1} parent=55 // pred_check_branch
          %6059 = sbr.rel (%p6057) target = $region60
        $region59: #{tpu_custom_call.1} parent=55 // pred_region
          %s6060 = smul.u32 8, %s24
          %6062 = vsyncadd %s6053, 0
          %s6063 = scalar_lea.hbm %s9, %s6060
          %s6065 = sshll.u32 %s6056, 4
          %s6066 = int_to_ptr.vmem [resolvable:$true] %s6065
          %s6067 = sshll.u32 %s6063, 4
          %s6068 = int_to_ptr.hbm [resolvable:$true] %s6067
          %6070 = dma.vmem_to_hbm [thread:$0]  %s6066, 128, %s6068, %s6053
        $region60: #{tpu_custom_call.1} parent=55 // pred_fallthru
          _
      $region56: #{tpu_custom_call.1} parent=5 // pred_fallthru
        _
      %p6071 = scmp.le.s32.totalorder 2, %s19
      // Predicated region
      $region61: #{tpu_custom_call.1} parent=5 // pred_check
        %p6072 = pneg %p6071
      $region62: #{tpu_custom_call.1} parent=5 // pred_check_branch
        %6074 = sbr.rel (%p6072) target = $region64
      $region63: #{tpu_custom_call.1} parent=5 // pred_region
        %s6075 = ssub.s32 %s19, 2
        // Predicated region
        $region65: #{tpu_custom_call.1} parent=63 // pred_check
          %p6076 = pneg %p242
        $region66: #{tpu_custom_call.1} parent=63 // pred_check_branch
          %6078 = sbr.rel (%p6076) target = $region68
        $region67: #{tpu_custom_call.1} parent=63 // pred_region
          %s6079 = sand.u32 %s227, 1
          %s6080 = scalar_lea.sflag [#allocation4], %s6079
          %s6081 = sand.u32 %s227, 1
          %s6082 = smul.addr %s6081, 8
          %s6083 = scalar_lea.vmem [#allocation3], %s6082
          %6085 = dma.done %s6080, 128
        $region68: #{tpu_custom_call.1} parent=63 // pred_fallthru
          _
      $region64: #{tpu_custom_call.1} parent=5 // pred_fallthru
        _
    $region6: #{tpu_custom_call.1} parent=1 // loop_footer
      %s23 = sadd.s32 1, %s19
    $region7: #{tpu_custom_call.1} parent=1 // loop_footer_branch
      %18 = sbr.rel target = $region3
    $region8: #{tpu_custom_call.1} parent=1 // loop_exit
      _
    %6086 = vsyncpa [#allocation4], 1
    %s6087 = scalar_lea.sflag [#allocation4], 1
    %6088 = vsyncpa %s6087, 1

</llo_original>
